<compile_context>
chip_gen: v6e
topology: v6e:2x2x1
jax: 0.10.0
libtpu: 0.0.40
codegen_flags: <defaults>
</compile_context>

<pallas_src>
import functools

import jax
import jax.numpy as jnp
from jax.experimental import pallas as pl
from jax.experimental.pallas import tpu as pltpu

BN_EPS = 1e-5

# Raised from the 16/32 MiB scoped default so large double-buffered tiles fit.
# (It is a compile-time check limit, not a reservation.)
# TODO(synk): re-derive the budget for v7x (64 MiB physical VMEM) if tiles or
# channel counts are scaled up.
_VMEM_LIMIT = 64 * 1024 * 1024


# ----------------------------------------------------------------------------
# Kernels
# ----------------------------------------------------------------------------
def _pw_conv_bias_relu_kernel(x_ref, w_ref, b_ref, o_ref):
    """1x1x1 conv (matmul; BN scale pre-folded into w) + bias + ReLU."""
    y = jnp.dot(x_ref[...], w_ref[...], preferred_element_type=jnp.float32)
    y = y + b_ref[...]
    o_ref[...] = jnp.maximum(y, 0.0).astype(o_ref.dtype)


def _conv2_conv3_res_kernel(s0_ref, s1_ref, s2_ref, w2_ref, b2_ref,
                            w3_ref, b3_ref, res_ref, o_ref, *, H, W, dil):
    """Fused conv2(3x3x3)+bn2+ReLU -> conv3(1x1x1)+bn3 -> +residual -> ReLU.

    s{k}_ref : (1, 1, Hp, Wp, Cmid)  padded-h1 slab at depth (d + k*dil)
    w2_ref   : (3, 3, 3, Cmid, Cmid) all 27 taps, VMEM-resident
    w3_ref   : (Cmid, Cout)          VMEM-resident
    res_ref  : (1, 1, H*W, Cout)     identity residual tile (f32)
    o_ref    : (1, 1, H*W, Cout)

    The full 27-tap reduction and the conv3/residual epilogue happen inside a
    single grid step, so neither im2col taps nor h2 ever touch HBM.
    """
    slabs = (s0_ref, s1_ref, s2_ref)
    cmid = w2_ref.shape[-1]

    acc = jnp.zeros((H * W, cmid), jnp.float32)
    for kd in range(3):                      # statically unrolled 27-tap loop
        s_ref = slabs[kd]
        for kh in range(3):
            for kw in range(3):
                tap = s_ref[0, 0,
                            kh * dil:kh * dil + H,
                            kw * dil:kw * dil + W, :]
                acc = acc + jnp.dot(tap.reshape(H * W, cmid),
                                    w2_ref[kd, kh, kw],
                                    preferred_element_type=jnp.float32)

    # bn2 (bias only; scale folded) + ReLU, then conv3 on the in-VMEM result.
    h2 = jnp.maximum(acc + b2_ref[...], 0.0).astype(w3_ref.dtype)
    y = jnp.dot(h2, w3_ref[...], preferred_element_type=jnp.float32)
    y = y + b3_ref[...] + res_ref[0, 0].astype(jnp.float32)
    o_ref[0, 0] = jnp.maximum(y, 0.0).astype(o_ref.dtype)


# ----------------------------------------------------------------------------
# pallas_call wrappers
# ----------------------------------------------------------------------------
def pointwise_conv_bias_relu(x2d, w, b, *, out_dtype, tm=512):
    """(M, Cin) @ (Cin, Cout) + bias + ReLU with large M tiles."""
    M, Cin = x2d.shape
    Cout = w.shape[1]
    tm = min(tm, M)
    return pl.pallas_call(
        _pw_conv_bias_relu_kernel,
        out_shape=jax.ShapeDtypeStruct((M, Cout), out_dtype),
        grid_spec=pltpu.PrefetchScalarGridSpec(
            num_scalar_prefetch=0,
            grid=(pl.cdiv(M, tm),),
            in_specs=[
                pl.BlockSpec((tm, Cin), lambda i: (i, 0)),
                pl.BlockSpec((Cin, Cout), lambda i: (0, 0)),   # resident
                pl.BlockSpec((1, Cout), lambda i: (0, 0)),     # resident
            ],
            out_specs=pl.BlockSpec((tm, Cout), lambda i: (i, 0)),
        ),
        compiler_params=pltpu.CompilerParams(
            dimension_semantics=("parallel",),
            vmem_limit_bytes=_VMEM_LIMIT),
    )(x2d, w, b)


def conv2_conv3_residual(h1p, w2, b2, w3, b3, res, *, D, H, W, dilation):
    """Fused conv2/conv3/residual stage.  Grid over (batch, output depth)."""
    N, Dp, Hp, Wp, Cmid = h1p.shape
    Cout = w3.shape[1]
    dil = dilation
    kernel = functools.partial(_conv2_conv3_res_kernel, H=H, W=W, dil=dil)

    def slab_spec(kd):
        # block size 1 along D -> block index == element index, so the kd*dil
        # depth shift is expressed directly in the index_map (no im2col).
        return pl.BlockSpec(
            (1, 1, Hp, Wp, Cmid),
            lambda n, d, _kd=kd: (n, d + _kd * dil, 0, 0, 0))

    return pl.pallas_call(
        kernel,
        out_shape=jax.ShapeDtypeStruct((N, D, H * W, Cout), jnp.float32),
        grid_spec=pltpu.PrefetchScalarGridSpec(
            num_scalar_prefetch=0,
            grid=(N, D),
            in_specs=[
                slab_spec(0), slab_spec(1), slab_spec(2),
                # weights / biases: constant index_map -> fetched once, resident
                pl.BlockSpec((3, 3, 3, Cmid, Cmid), lambda n, d: (0, 0, 0, 0, 0)),
                pl.BlockSpec((1, Cmid), lambda n, d: (0, 0)),
                pl.BlockSpec((Cmid, Cout), lambda n, d: (0, 0)),
                pl.BlockSpec((1, Cout), lambda n, d: (0, 0)),
                pl.BlockSpec((1, 1, H * W, Cout), lambda n, d: (n, d, 0, 0)),
            ],
            out_specs=pl.BlockSpec((1, 1, H * W, Cout),
                                   lambda n, d: (n, d, 0, 0)),
        ),
        compiler_params=pltpu.CompilerParams(
            dimension_semantics=("parallel", "parallel"),
            vmem_limit_bytes=_VMEM_LIMIT),
    )(h1p, h1p, h1p, w2, b2, w3, b3, res)


# ----------------------------------------------------------------------------
# BN folding + layout plumbing (plain JAX, one-time tiny ops)
# ----------------------------------------------------------------------------
def _bn_scale_bias(bn):
    s = bn["gamma"] / jnp.sqrt(bn["var"] + BN_EPS)
    b = bn["beta"] - bn["mean"] * s
    return s, b


def prepare_params(params, compute_dtype):
    """Fold BN scales into conv weights and reshape to matmul layout."""
    planes, inplanes = params["w1"].shape[:2]
    cout = params["w3"].shape[0]

    s1, b1 = _bn_scale_bias(params["bn1"])
    w1 = (params["w1"].reshape(planes, inplanes) * s1[:, None]).T     # (Cin, planes)

    s2, b2 = _bn_scale_bias(params["bn2"])
    w2 = params["w2"] * s2[:, None, None, None, None]                 # scale out-chan
    w2 = jnp.transpose(w2, (2, 3, 4, 1, 0))                           # (3,3,3,Cin,Cout)

    s3, b3 = _bn_scale_bias(params["bn3"])
    w3 = (params["w3"].reshape(cout, planes) * s3[:, None]).T         # (planes, Cout)

    cast = lambda a: a.astype(compute_dtype)
    row = lambda a: a.reshape(1, -1).astype(jnp.float32)
    return dict(w1=cast(w1), b1=row(b1),
                w2=cast(w2), b2=row(b2),
                w3=cast(w3), b3=row(b3))


def bottleneck_forward(x_ncdhw, params, *, stride=1, dilation=1,
                       compute_dtype=jnp.bfloat16):
    """Bottleneck forward.  x_ncdhw: (N, C, D, H, W) float32."""
    if stride != 1:
        # TODO(synk): downsample submodule is None in the reference default;
        # only the identity residual path (stride == 1) is implemented.
        raise NotImplementedError("stride != 1 (downsample path) not implemented")

    N, Cin, D, H, W = x_ncdhw.shape
    planes = params["w1"].shape[0]
    Cout = params["w3"].shape[0]
    if Cout != Cin:
        raise NotImplementedError("identity residual requires inplanes == planes*4")

    p = prepare_params(params, compute_dtype)
    pad = dilation

    # NCDHW -> channels-last.  TODO(synk): when chaining blocks keep NDHWC
    # end-to-end to avoid these two full HBM transpose passes.
    x_cl = jnp.transpose(x_ncdhw, (0, 2, 3, 4, 1))            # (N, D, H, W, Cin)

    # conv1 (1x1x1) + bn1 + ReLU  (large-tile pointwise matmul)
    h1 = pointwise_conv_bias_relu(
        x_cl.reshape(-1, Cin).astype(compute_dtype), p["w1"], p["b1"],
        out_dtype=compute_dtype)
    h1 = h1.reshape(N, D, H, W, planes)
    # Single cheap pad pass (replaces the old 27x im2col materialization).
    h1p = jnp.pad(h1, ((0, 0), (pad, pad), (pad, pad), (pad, pad), (0, 0)))

    # Fused conv2+bn2+ReLU -> conv3+bn3 -> +residual -> ReLU
    res = x_cl.reshape(N, D, H * W, Cin)                      # f32 identity residual
    out = conv2_conv3_residual(h1p, p["w2"], p["b2"], p["w3"], p["b3"], res,
                               D=D, H=H, W=W, dilation=dilation)
    out = out.reshape(N, D, H, W, Cout)
    return jnp.transpose(out, (0, 4, 1, 2, 3))                # back to NCDHW


# ----------------------------------------------------------------------------
# Deterministic parameter init + pure-JAX reference for validation
# ----------------------------------------------------------------------------
def init_params(key, inplanes, planes):
    ks = jax.random.split(key, 6)

    def conv_w(k, shape):
        return 0.1 * jax.random.normal(k, shape, jnp.float32)

    def bn_p(k, c):
        k1, k2, k3, k4 = jax.random.split(k, 4)
        return dict(
            gamma=1.0 + 0.1 * jax.random.normal(k1, (c,), jnp.float32),
            beta=0.1 * jax.random.normal(k2, (c,), jnp.float32),
            mean=0.1 * jax.random.normal(k3, (c,), jnp.float32),
            var=jax.random.uniform(k4, (c,), jnp.float32, 0.5, 1.5),
        )

    return dict(
        w1=conv_w(ks[0], (planes, inplanes, 1, 1, 1)),
        bn1=bn_p(ks[1], planes),
        w2=conv_w(ks[2], (planes, planes, 3, 3, 3)),
        bn2=bn_p(ks[3], planes),
        w3=conv_w(ks[4], (planes * 4, planes, 1, 1, 1)),
        bn3=bn_p(ks[5], planes * 4),
    )


def reference_forward(x, params, stride, dilation):
    def conv(h, w, s, d, pad):
        return jax.lax.conv_general_dilated(
            h, w, window_strides=(s,) * 3, padding=[(pad, pad)] * 3,
            rhs_dilation=(d,) * 3,
            dimension_numbers=("NCDHW", "OIDHW", "NCDHW"))

    def bn(h, p):
        sc = p["gamma"] / jnp.sqrt(p["var"] + BN_EPS)
        bi = p["beta"] - p["mean"] * sc
        return h * sc[None, :, None, None, None] + bi[None, :, None, None, None]

    out = jax.nn.relu(bn(conv(x, params["w1"], 1, 1, 0), params["bn1"]))
    out = jax.nn.relu(bn(conv(out, params["w2"], stride, dilation, dilation),
                         params["bn2"]))
    out = bn(conv(out, params["w3"], 1, 1, 0), params["bn3"])
    return jax.nn.relu(out + x)


# ----------------------------------------------------------------------------
if __name__ == "__main__":
    key = jax.random.PRNGKey(0)
    kx, kp = jax.random.split(key)

    # planes * expansion(=4) == inplanes so the identity residual is valid.
    inplanes, planes = 32, 8
    N, D, H, W = 2, 8, 8, 8

    x = jax.random.normal(kx, (N, inplanes, D, H, W), jnp.float32)
    params = init_params(kp, inplanes, planes)

    checks = [
        # (compute_dtype, dilation, tolerance)
        (jnp.float32, 1, 2e-3),    # tight correctness check
        (jnp.bfloat16, 1, 6e-2),   # bf16 fast path
        (jnp.bfloat16, 2, 6e-2),   # dilated conv2 path
    ]
    for dtype, dil, tol in checks:
        fwd = jax.jit(functools.partial(bottleneck_forward, stride=1,
                                        dilation=dil, compute_dtype=dtype))
        out = jax.block_until_ready(fwd(x, params))
        ref = reference_forward(x, params, 1, dil)
        assert out.shape == (N, planes * 4, D, H, W), out.shape
        max_err = float(jnp.max(jnp.abs(out - ref)))
        assert jnp.allclose(out, ref, rtol=tol, atol=tol), (str(dtype), dil, max_err)

    print("KERNEL_OK")
</pallas_src>

<mosaic_0001>
module attributes {stable_mosaic.version = 11 : i64} {
  func.func @_pw_conv_bias_relu_kernel(%arg0: i32, %arg1: memref<512x32xf32, #tpu.memory_space<vmem>>, %arg2: memref<32x8xf32, #tpu.memory_space<vmem>>, %arg3: memref<1x8xf32, #tpu.memory_space<vmem>>, %arg4: memref<512x8xf32, #tpu.memory_space<vmem>>) attributes {dimension_semantics = [#tpu.dimension_semantics<parallel>], iteration_bounds = array<i64: 2>, scalar_prefetch = 0 : i64, scratch_operands = 0 : i64, tpu.core_type = #tpu.core_type<tc>, window_params = [{transform_indices = @transform_0, window_bounds = array<i64: 512, 32>}, {pipeline_mode = #tpu.pipeline_mode<synchronous>, transform_indices = @transform_1, window_bounds = array<i64: 32, 8>}, {pipeline_mode = #tpu.pipeline_mode<synchronous>, transform_indices = @transform_2, window_bounds = array<i64: 1, 8>}, {transform_indices = @transform_3, window_bounds = array<i64: 512, 8>}]} {
    %c0 = arith.constant 0 : index
    %c0_0 = arith.constant 0 : index
    %0 = vector.load %arg1[%c0, %c0_0] : memref<512x32xf32, #tpu.memory_space<vmem>>, vector<512x32xf32>
    %c0_1 = arith.constant 0 : index
    %c0_2 = arith.constant 0 : index
    %1 = vector.load %arg2[%c0_1, %c0_2] : memref<32x8xf32, #tpu.memory_space<vmem>>, vector<32x8xf32>
    %cst = arith.constant dense<0.000000e+00> : vector<512x8xf32>
    %2 = tpu.matmul %0, %1, %cst {dimension_numbers = #tpu.dot_dimension_numbers<[1], [0], [0], [1], [0, 0, 1, 1], [], []>} : vector<512x32xf32>, vector<32x8xf32>, vector<512x8xf32> -> vector<512x8xf32>
    %c0_3 = arith.constant 0 : index
    %c0_4 = arith.constant 0 : index
    %3 = vector.load %arg3[%c0_3, %c0_4] : memref<1x8xf32, #tpu.memory_space<vmem>>, vector<1x8xf32>
    %4 = vector.broadcast %3 : vector<1x8xf32> to vector<512x8xf32>
    %5 = arith.addf %2, %4 : vector<512x8xf32>
    %cst_5 = arith.constant 0.000000e+00 : f32
    %6 = vector.broadcast %cst_5 : f32 to vector<512x8xf32>
    %7 = arith.maximumf %5, %6 : vector<512x8xf32>
    %c0_6 = arith.constant 0 : index
    %c0_7 = arith.constant 0 : index
    %8 = vector.load %arg4[%c0_6, %c0_7] : memref<512x8xf32, #tpu.memory_space<vmem>>, vector<512x8xf32>
    tpu.vector_store %arg4[%c0_6, %c0_7], %7 {strides = array<i32>} : memref<512x8xf32, #tpu.memory_space<vmem>>, vector<512x8xf32>,
    return
  }
  func.func @transform_0(%arg0: i32) -> (i32, i32) {
    %c0_i32 = arith.constant 0 : i32
    %c0_i32_0 = arith.constant 0 : i32
    return %arg0, %c0_i32 : i32, i32
  }
  func.func @transform_1(%arg0: i32) -> (i32, i32) {
    %c0_i32 = arith.constant 0 : i32
    %c0_i32_0 = arith.constant 0 : i32
    %c0_i32_1 = arith.constant 0 : i32
    return %c0_i32, %c0_i32_0 : i32, i32
  }
  func.func @transform_2(%arg0: i32) -> (i32, i32) {
    %c0_i32 = arith.constant 0 : i32
    %c0_i32_0 = arith.constant 0 : i32
    %c0_i32_1 = arith.constant 0 : i32
    return %c0_i32, %c0_i32_0 : i32, i32
  }
  func.func @transform_3(%arg0: i32) -> (i32, i32) {
    %c0_i32 = arith.constant 0 : i32
    %c0_i32_0 = arith.constant 0 : i32
    return %arg0, %c0_i32 : i32, i32
  }
}

module attributes {stable_mosaic.version = 11 : i64} {
  func.func @_conv2_conv3_res_kernel(%arg0: i32, %arg1: i32, %arg2: memref<1x1x10x10x8xf32, #tpu.memory_space<vmem>>, %arg3: memref<1x1x10x10x8xf32, #tpu.memory_space<vmem>>, %arg4: memref<1x1x10x10x8xf32, #tpu.memory_space<vmem>>, %arg5: memref<3x3x3x8x8xf32, #tpu.memory_space<vmem>>, %arg6: memref<1x8xf32, #tpu.memory_space<vmem>>, %arg7: memref<8x32xf32, #tpu.memory_space<vmem>>, %arg8: memref<1x32xf32, #tpu.memory_space<vmem>>, %arg9: memref<1x1x64x32xf32, #tpu.memory_space<vmem>>, %arg10: memref<1x1x64x32xf32, #tpu.memory_space<vmem>>) attributes {dimension_semantics = [#tpu.dimension_semantics<parallel>, #tpu.dimension_semantics<parallel>], iteration_bounds = array<i64: 2, 8>, scalar_prefetch = 0 : i64, scratch_operands = 0 : i64, tpu.core_type = #tpu.core_type<tc>, window_params = [{transform_indices = @transform_0, window_bounds = array<i64: 1, 1, 10, 10, 8>}, {transform_indices = @transform_1, window_bounds = array<i64: 1, 1, 10, 10, 8>}, {transform_indices = @transform_2, window_bounds = array<i64: 1, 1, 10, 10, 8>}, {pipeline_mode = #tpu.pipeline_mode<synchronous>, transform_indices = @transform_3, window_bounds = array<i64: 3, 3, 3, 8, 8>}, {pipeline_mode = #tpu.pipeline_mode<synchronous>, transform_indices = @transform_4, window_bounds = array<i64: 1, 8>}, {pipeline_mode = #tpu.pipeline_mode<synchronous>, transform_indices = @transform_5, window_bounds = array<i64: 8, 32>}, {pipeline_mode = #tpu.pipeline_mode<synchronous>, transform_indices = @transform_6, window_bounds = array<i64: 1, 32>}, {transform_indices = @transform_7, window_bounds = array<i64: 1, 1, 64, 32>}, {transform_indices = @transform_8, window_bounds = array<i64: 1, 1, 64, 32>}]} {
    %cst = arith.constant 0.000000e+00 : f32
    %0 = vector.broadcast %cst : f32 to vector<64x8xf32>
    %c0 = arith.constant 0 : index
    %c0_0 = arith.constant 0 : index
    %c0_1 = arith.constant 0 : index
    %c0_2 = arith.constant 0 : index
    %c0_3 = arith.constant 0 : index
    %1 = vector.load %arg2[%c0, %c0_0, %c0_1, %c0_2, %c0_3] : memref<1x1x10x10x8xf32, #tpu.memory_space<vmem>>, vector<1x1x8x8x8xf32>
    %2 = vector.shape_cast %1 : vector<1x1x8x8x8xf32> to vector<8x8x8xf32>
    %3 = vector.shape_cast %2 : vector<8x8x8xf32> to vector<64x8xf32>
    %c0_4 = arith.constant 0 : index
    %c0_5 = arith.constant 0 : index
    %c0_6 = arith.constant 0 : index
    %c0_7 = arith.constant 0 : index
    %c0_8 = arith.constant 0 : index
    %4 = vector.load %arg5[%c0_4, %c0_5, %c0_6, %c0_7, %c0_8] : memref<3x3x3x8x8xf32, #tpu.memory_space<vmem>>, vector<1x1x1x8x8xf32>
    %5 = vector.shape_cast %4 : vector<1x1x1x8x8xf32> to vector<8x8xf32>
    %cst_9 = arith.constant dense<0.000000e+00> : vector<64x8xf32>
    %6 = tpu.matmul %3, %5, %cst_9 {dimension_numbers = #tpu.dot_dimension_numbers<[1], [0], [0], [1], [0, 0, 1, 1], [], []>} : vector<64x8xf32>, vector<8x8xf32>, vector<64x8xf32> -> vector<64x8xf32>
    %7 = arith.addf %0, %6 : vector<64x8xf32>
    %c0_10 = arith.constant 0 : index
    %c0_11 = arith.constant 0 : index
    %c0_12 = arith.constant 0 : index
    %c1 = arith.constant 1 : index
    %c0_13 = arith.constant 0 : index
    %8 = vector.load %arg2[%c0_10, %c0_11, %c0_12, %c1, %c0_13] : memref<1x1x10x10x8xf32, #tpu.memory_space<vmem>>, vector<1x1x8x8x8xf32>
    %9 = vector.shape_cast %8 : vector<1x1x8x8x8xf32> to vector<8x8x8xf32>
    %10 = vector.shape_cast %9 : vector<8x8x8xf32> to vector<64x8xf32>
    %c0_14 = arith.constant 0 : index
    %c0_15 = arith.constant 0 : index
    %c1_16 = arith.constant 1 : index
    %c0_17 = arith.constant 0 : index
    %c0_18 = arith.constant 0 : index
    %11 = vector.load %arg5[%c0_14, %c0_15, %c1_16, %c0_17, %c0_18] : memref<3x3x3x8x8xf32, #tpu.memory_space<vmem>>, vector<1x1x1x8x8xf32>
    %12 = vector.shape_cast %11 : vector<1x1x1x8x8xf32> to vector<8x8xf32>
    %cst_19 = arith.constant dense<0.000000e+00> : vector<64x8xf32>
    %13 = tpu.matmul %10, %12, %cst_19 {dimension_numbers = #tpu.dot_dimension_numbers<[1], [0], [0], [1], [0, 0, 1, 1], [], []>} : vector<64x8xf32>, vector<8x8xf32>, vector<64x8xf32> -> vector<64x8xf32>
    %14 = arith.addf %7, %13 : vector<64x8xf32>
    %c0_20 = arith.constant 0 : index
    %c0_21 = arith.constant 0 : index
    %c0_22 = arith.constant 0 : index
    %c2 = arith.constant 2 : index
    %c0_23 = arith.constant 0 : index
    %15 = vector.load %arg2[%c0_20, %c0_21, %c0_22, %c2, %c0_23] : memref<1x1x10x10x8xf32, #tpu.memory_space<vmem>>, vector<1x1x8x8x8xf32>
    %16 = vector.shape_cast %15 : vector<1x1x8x8x8xf32> to vector<8x8x8xf32>
    %17 = vector.shape_cast %16 : vector<8x8x8xf32> to vector<64x8xf32>
    %c0_24 = arith.constant 0 : index
    %c0_25 = arith.constant 0 : index
    %c2_26 = arith.constant 2 : index
    %c0_27 = arith.constant 0 : index
    %c0_28 = arith.constant 0 : index
    %18 = vector.load %arg5[%c0_24, %c0_25, %c2_26, %c0_27, %c0_28] : memref<3x3x3x8x8xf32, #tpu.memory_space<vmem>>, vector<1x1x1x8x8xf32>
    %19 = vector.shape_cast %18 : vector<1x1x1x8x8xf32> to vector<8x8xf32>
    %cst_29 = arith.constant dense<0.000000e+00> : vector<64x8xf32>
    %20 = tpu.matmul %17, %19, %cst_29 {dimension_numbers = #tpu.dot_dimension_numbers<[1], [0], [0], [1], [0, 0, 1, 1], [], []>} : vector<64x8xf32>, vector<8x8xf32>, vector<64x8xf32> -> vector<64x8xf32>
    %21 = arith.addf %14, %20 : vector<64x8xf32>
    %c0_30 = arith.constant 0 : index
    %c0_31 = arith.constant 0 : index
    %c1_32 = arith.constant 1 : index
    %c0_33 = arith.constant 0 : index
    %c0_34 = arith.constant 0 : index
    %22 = vector.load %arg2[%c0_30, %c0_31, %c1_32, %c0_33, %c0_34] : memref<1x1x10x10x8xf32, #tpu.memory_space<vmem>>, vector<1x1x8x8x8xf32>
    %23 = vector.shape_cast %22 : vector<1x1x8x8x8xf32> to vector<8x8x8xf32>
    %24 = vector.shape_cast %23 : vector<8x8x8xf32> to vector<64x8xf32>
    %c0_35 = arith.constant 0 : index
    %c1_36 = arith.constant 1 : index
    %c0_37 = arith.constant 0 : index
    %c0_38 = arith.constant 0 : index
    %c0_39 = arith.constant 0 : index
    %25 = vector.load %arg5[%c0_35, %c1_36, %c0_37, %c0_38, %c0_39] : memref<3x3x3x8x8xf32, #tpu.memory_space<vmem>>, vector<1x1x1x8x8xf32>
    %26 = vector.shape_cast %25 : vector<1x1x1x8x8xf32> to vector<8x8xf32>
    %cst_40 = arith.constant dense<0.000000e+00> : vector<64x8xf32>
    %27 = tpu.matmul %24, %26, %cst_40 {dimension_numbers = #tpu.dot_dimension_numbers<[1], [0], [0], [1], [0, 0, 1, 1], [], []>} : vector<64x8xf32>, vector<8x8xf32>, vector<64x8xf32> -> vector<64x8xf32>
    %28 = arith.addf %21, %27 : vector<64x8xf32>
    %c0_41 = arith.constant 0 : index
    %c0_42 = arith.constant 0 : index
    %c1_43 = arith.constant 1 : index
    %c1_44 = arith.constant 1 : index
    %c0_45 = arith.constant 0 : index
    %29 = vector.load %arg2[%c0_41, %c0_42, %c1_43, %c1_44, %c0_45] : memref<1x1x10x10x8xf32, #tpu.memory_space<vmem>>, vector<1x1x8x8x8xf32>
    %30 = vector.shape_cast %29 : vector<1x1x8x8x8xf32> to vector<8x8x8xf32>
    %31 = vector.shape_cast %30 : vector<8x8x8xf32> to vector<64x8xf32>
    %c0_46 = arith.constant 0 : index
    %c1_47 = arith.constant 1 : index
    %c1_48 = arith.constant 1 : index
    %c0_49 = arith.constant 0 : index
    %c0_50 = arith.constant 0 : index
    %32 = vector.load %arg5[%c0_46, %c1_47, %c1_48, %c0_49, %c0_50] : memref<3x3x3x8x8xf32, #tpu.memory_space<vmem>>, vector<1x1x1x8x8xf32>
    %33 = vector.shape_cast %32 : vector<1x1x1x8x8xf32> to vector<8x8xf32>
    %cst_51 = arith.constant dense<0.000000e+00> : vector<64x8xf32>
    %34 = tpu.matmul %31, %33, %cst_51 {dimension_numbers = #tpu.dot_dimension_numbers<[1], [0], [0], [1], [0, 0, 1, 1], [], []>} : vector<64x8xf32>, vector<8x8xf32>, vector<64x8xf32> -> vector<64x8xf32>
    %35 = arith.addf %28, %34 : vector<64x8xf32>
    %c0_52 = arith.constant 0 : index
    %c0_53 = arith.constant 0 : index
    %c1_54 = arith.constant 1 : index
    %c2_55 = arith.constant 2 : index
    %c0_56 = arith.constant 0 : index
    %36 = vector.load %arg2[%c0_52, %c0_53, %c1_54, %c2_55, %c0_56] : memref<1x1x10x10x8xf32, #tpu.memory_space<vmem>>, vector<1x1x8x8x8xf32>
    %37 = vector.shape_cast %36 : vector<1x1x8x8x8xf32> to vector<8x8x8xf32>
    %38 = vector.shape_cast %37 : vector<8x8x8xf32> to vector<64x8xf32>
    %c0_57 = arith.constant 0 : index
    %c1_58 = arith.constant 1 : index
    %c2_59 = arith.constant 2 : index
    %c0_60 = arith.constant 0 : index
    %c0_61 = arith.constant 0 : index
    %39 = vector.load %arg5[%c0_57, %c1_58, %c2_59, %c0_60, %c0_61] : memref<3x3x3x8x8xf32, #tpu.memory_space<vmem>>, vector<1x1x1x8x8xf32>
    %40 = vector.shape_cast %39 : vector<1x1x1x8x8xf32> to vector<8x8xf32>
    %cst_62 = arith.constant dense<0.000000e+00> : vector<64x8xf32>
    %41 = tpu.matmul %38, %40, %cst_62 {dimension_numbers = #tpu.dot_dimension_numbers<[1], [0], [0], [1], [0, 0, 1, 1], [], []>} : vector<64x8xf32>, vector<8x8xf32>, vector<64x8xf32> -> vector<64x8xf32>
    %42 = arith.addf %35, %41 : vector<64x8xf32>
    %c0_63 = arith.constant 0 : index
    %c0_64 = arith.constant 0 : index
    %c2_65 = arith.constant 2 : index
    %c0_66 = arith.constant 0 : index
    %c0_67 = arith.constant 0 : index
    %43 = vector.load %arg2[%c0_63, %c0_64, %c2_65, %c0_66, %c0_67] : memref<1x1x10x10x8xf32, #tpu.memory_space<vmem>>, vector<1x1x8x8x8xf32>
    %44 = vector.shape_cast %43 : vector<1x1x8x8x8xf32> to vector<8x8x8xf32>
    %45 = vector.shape_cast %44 : vector<8x8x8xf32> to vector<64x8xf32>
    %c0_68 = arith.constant 0 : index
    %c2_69 = arith.constant 2 : index
    %c0_70 = arith.constant 0 : index
    %c0_71 = arith.constant 0 : index
    %c0_72 = arith.constant 0 : index
    %46 = vector.load %arg5[%c0_68, %c2_69, %c0_70, %c0_71, %c0_72] : memref<3x3x3x8x8xf32, #tpu.memory_space<vmem>>, vector<1x1x1x8x8xf32>
    %47 = vector.shape_cast %46 : vector<1x1x1x8x8xf32> to vector<8x8xf32>
    %cst_73 = arith.constant dense<0.000000e+00> : vector<64x8xf32>
    %48 = tpu.matmul %45, %47, %cst_73 {dimension_numbers = #tpu.dot_dimension_numbers<[1], [0], [0], [1], [0, 0, 1, 1], [], []>} : vector<64x8xf32>, vector<8x8xf32>, vector<64x8xf32> -> vector<64x8xf32>
    %49 = arith.addf %42, %48 : vector<64x8xf32>
    %c0_74 = arith.constant 0 : index
    %c0_75 = arith.constant 0 : index
    %c2_76 = arith.constant 2 : index
    %c1_77 = arith.constant 1 : index
    %c0_78 = arith.constant 0 : index
    %50 = vector.load %arg2[%c0_74, %c0_75, %c2_76, %c1_77, %c0_78] : memref<1x1x10x10x8xf32, #tpu.memory_space<vmem>>, vector<1x1x8x8x8xf32>
    %51 = vector.shape_cast %50 : vector<1x1x8x8x8xf32> to vector<8x8x8xf32>
    %52 = vector.shape_cast %51 : vector<8x8x8xf32> to vector<64x8xf32>
    %c0_79 = arith.constant 0 : index
    %c2_80 = arith.constant 2 : index
    %c1_81 = arith.constant 1 : index
    %c0_82 = arith.constant 0 : index
    %c0_83 = arith.constant 0 : index
    %53 = vector.load %arg5[%c0_79, %c2_80, %c1_81, %c0_82, %c0_83] : memref<3x3x3x8x8xf32, #tpu.memory_space<vmem>>, vector<1x1x1x8x8xf32>
    %54 = vector.shape_cast %53 : vector<1x1x1x8x8xf32> to vector<8x8xf32>
    %cst_84 = arith.constant dense<0.000000e+00> : vector<64x8xf32>
    %55 = tpu.matmul %52, %54, %cst_84 {dimension_numbers = #tpu.dot_dimension_numbers<[1], [0], [0], [1], [0, 0, 1, 1], [], []>} : vector<64x8xf32>, vector<8x8xf32>, vector<64x8xf32> -> vector<64x8xf32>
    %56 = arith.addf %49, %55 : vector<64x8xf32>
    %c0_85 = arith.constant 0 : index
    %c0_86 = arith.constant 0 : index
    %c2_87 = arith.constant 2 : index
    %c2_88 = arith.constant 2 : index
    %c0_89 = arith.constant 0 : index
    %57 = vector.load %arg2[%c0_85, %c0_86, %c2_87, %c2_88, %c0_89] : memref<1x1x10x10x8xf32, #tpu.memory_space<vmem>>, vector<1x1x8x8x8xf32>
    %58 = vector.shape_cast %57 : vector<1x1x8x8x8xf32> to vector<8x8x8xf32>
    %59 = vector.shape_cast %58 : vector<8x8x8xf32> to vector<64x8xf32>
    %c0_90 = arith.constant 0 : index
    %c2_91 = arith.constant 2 : index
    %c2_92 = arith.constant 2 : index
    %c0_93 = arith.constant 0 : index
    %c0_94 = arith.constant 0 : index
    %60 = vector.load %arg5[%c0_90, %c2_91, %c2_92, %c0_93, %c0_94] : memref<3x3x3x8x8xf32, #tpu.memory_space<vmem>>, vector<1x1x1x8x8xf32>
    %61 = vector.shape_cast %60 : vector<1x1x1x8x8xf32> to vector<8x8xf32>
    %cst_95 = arith.constant dense<0.000000e+00> : vector<64x8xf32>
    %62 = tpu.matmul %59, %61, %cst_95 {dimension_numbers = #tpu.dot_dimension_numbers<[1], [0], [0], [1], [0, 0, 1, 1], [], []>} : vector<64x8xf32>, vector<8x8xf32>, vector<64x8xf32> -> vector<64x8xf32>
    %63 = arith.addf %56, %62 : vector<64x8xf32>
    %c0_96 = arith.constant 0 : index
    %c0_97 = arith.constant 0 : index
    %c0_98 = arith.constant 0 : index
    %c0_99 = arith.constant 0 : index
    %c0_100 = arith.constant 0 : index
    %64 = vector.load %arg3[%c0_96, %c0_97, %c0_98, %c0_99, %c0_100] : memref<1x1x10x10x8xf32, #tpu.memory_space<vmem>>, vector<1x1x8x8x8xf32>
    %65 = vector.shape_cast %64 : vector<1x1x8x8x8xf32> to vector<8x8x8xf32>
    %66 = vector.shape_cast %65 : vector<8x8x8xf32> to vector<64x8xf32>
    %c1_101 = arith.constant 1 : index
    %c0_102 = arith.constant 0 : index
    %c0_103 = arith.constant 0 : index
    %c0_104 = arith.constant 0 : index
    %c0_105 = arith.constant 0 : index
    %67 = vector.load %arg5[%c1_101, %c0_102, %c0_103, %c0_104, %c0_105] : memref<3x3x3x8x8xf32, #tpu.memory_space<vmem>>, vector<1x1x1x8x8xf32>
    %68 = vector.shape_cast %67 : vector<1x1x1x8x8xf32> to vector<8x8xf32>
    %cst_106 = arith.constant dense<0.000000e+00> : vector<64x8xf32>
    %69 = tpu.matmul %66, %68, %cst_106 {dimension_numbers = #tpu.dot_dimension_numbers<[1], [0], [0], [1], [0, 0, 1, 1], [], []>} : vector<64x8xf32>, vector<8x8xf32>, vector<64x8xf32> -> vector<64x8xf32>
    %70 = arith.addf %63, %69 : vector<64x8xf32>
    %c0_107 = arith.constant 0 : index
    %c0_108 = arith.constant 0 : index
    %c0_109 = arith.constant 0 : index
    %c1_110 = arith.constant 1 : index
    %c0_111 = arith.constant 0 : index
    %71 = vector.load %arg3[%c0_107, %c0_108, %c0_109, %c1_110, %c0_111] : memref<1x1x10x10x8xf32, #tpu.memory_space<vmem>>, vector<1x1x8x8x8xf32>
    %72 = vector.shape_cast %71 : vector<1x1x8x8x8xf32> to vector<8x8x8xf32>
    %73 = vector.shape_cast %72 : vector<8x8x8xf32> to vector<64x8xf32>
    %c1_112 = arith.constant 1 : index
    %c0_113 = arith.constant 0 : index
    %c1_114 = arith.constant 1 : index
    %c0_115 = arith.constant 0 : index
    %c0_116 = arith.constant 0 : index
    %74 = vector.load %arg5[%c1_112, %c0_113, %c1_114, %c0_115, %c0_116] : memref<3x3x3x8x8xf32, #tpu.memory_space<vmem>>, vector<1x1x1x8x8xf32>
    %75 = vector.shape_cast %74 : vector<1x1x1x8x8xf32> to vector<8x8xf32>
    %cst_117 = arith.constant dense<0.000000e+00> : vector<64x8xf32>
    %76 = tpu.matmul %73, %75, %cst_117 {dimension_numbers = #tpu.dot_dimension_numbers<[1], [0], [0], [1], [0, 0, 1, 1], [], []>} : vector<64x8xf32>, vector<8x8xf32>, vector<64x8xf32> -> vector<64x8xf32>
    %77 = arith.addf %70, %76 : vector<64x8xf32>
    %c0_118 = arith.constant 0 : index
    %c0_119 = arith.constant 0 : index
    %c0_120 = arith.constant 0 : index
    %c2_121 = arith.constant 2 : index
    %c0_122 = arith.constant 0 : index
    %78 = vector.load %arg3[%c0_118, %c0_119, %c0_120, %c2_121, %c0_122] : memref<1x1x10x10x8xf32, #tpu.memory_space<vmem>>, vector<1x1x8x8x8xf32>
    %79 = vector.shape_cast %78 : vector<1x1x8x8x8xf32> to vector<8x8x8xf32>
    %80 = vector.shape_cast %79 : vector<8x8x8xf32> to vector<64x8xf32>
    %c1_123 = arith.constant 1 : index
    %c0_124 = arith.constant 0 : index
    %c2_125 = arith.constant 2 : index
    %c0_126 = arith.constant 0 : index
    %c0_127 = arith.constant 0 : index
    %81 = vector.load %arg5[%c1_123, %c0_124, %c2_125, %c0_126, %c0_127] : memref<3x3x3x8x8xf32, #tpu.memory_space<vmem>>, vector<1x1x1x8x8xf32>
    %82 = vector.shape_cast %81 : vector<1x1x1x8x8xf32> to vector<8x8xf32>
    %cst_128 = arith.constant dense<0.000000e+00> : vector<64x8xf32>
    %83 = tpu.matmul %80, %82, %cst_128 {dimension_numbers = #tpu.dot_dimension_numbers<[1], [0], [0], [1], [0, 0, 1, 1], [], []>} : vector<64x8xf32>, vector<8x8xf32>, vector<64x8xf32> -> vector<64x8xf32>
    %84 = arith.addf %77, %83 : vector<64x8xf32>
    %c0_129 = arith.constant 0 : index
    %c0_130 = arith.constant 0 : index
    %c1_131 = arith.constant 1 : index
    %c0_132 = arith.constant 0 : index
    %c0_133 = arith.constant 0 : index
    %85 = vector.load %arg3[%c0_129, %c0_130, %c1_131, %c0_132, %c0_133] : memref<1x1x10x10x8xf32, #tpu.memory_space<vmem>>, vector<1x1x8x8x8xf32>
    %86 = vector.shape_cast %85 : vector<1x1x8x8x8xf32> to vector<8x8x8xf32>
    %87 = vector.shape_cast %86 : vector<8x8x8xf32> to vector<64x8xf32>
    %c1_134 = arith.constant 1 : index
    %c1_135 = arith.constant 1 : index
    %c0_136 = arith.constant 0 : index
    %c0_137 = arith.constant 0 : index
    %c0_138 = arith.constant 0 : index
    %88 = vector.load %arg5[%c1_134, %c1_135, %c0_136, %c0_137, %c0_138] : memref<3x3x3x8x8xf32, #tpu.memory_space<vmem>>, vector<1x1x1x8x8xf32>
    %89 = vector.shape_cast %88 : vector<1x1x1x8x8xf32> to vector<8x8xf32>
    %cst_139 = arith.constant dense<0.000000e+00> : vector<64x8xf32>
    %90 = tpu.matmul %87, %89, %cst_139 {dimension_numbers = #tpu.dot_dimension_numbers<[1], [0], [0], [1], [0, 0, 1, 1], [], []>} : vector<64x8xf32>, vector<8x8xf32>, vector<64x8xf32> -> vector<64x8xf32>
    %91 = arith.addf %84, %90 : vector<64x8xf32>
    %c0_140 = arith.constant 0 : index
    %c0_141 = arith.constant 0 : index
    %c1_142 = arith.constant 1 : index
    %c1_143 = arith.constant 1 : index
    %c0_144 = arith.constant 0 : index
    %92 = vector.load %arg3[%c0_140, %c0_141, %c1_142, %c1_143, %c0_144] : memref<1x1x10x10x8xf32, #tpu.memory_space<vmem>>, vector<1x1x8x8x8xf32>
    %93 = vector.shape_cast %92 : vector<1x1x8x8x8xf32> to vector<8x8x8xf32>
    %94 = vector.shape_cast %93 : vector<8x8x8xf32> to vector<64x8xf32>
    %c1_145 = arith.constant 1 : index
    %c1_146 = arith.constant 1 : index
    %c1_147 = arith.constant 1 : index
    %c0_148 = arith.constant 0 : index
    %c0_149 = arith.constant 0 : index
    %95 = vector.load %arg5[%c1_145, %c1_146, %c1_147, %c0_148, %c0_149] : memref<3x3x3x8x8xf32, #tpu.memory_space<vmem>>, vector<1x1x1x8x8xf32>
    %96 = vector.shape_cast %95 : vector<1x1x1x8x8xf32> to vector<8x8xf32>
    %cst_150 = arith.constant dense<0.000000e+00> : vector<64x8xf32>
    %97 = tpu.matmul %94, %96, %cst_150 {dimension_numbers = #tpu.dot_dimension_numbers<[1], [0], [0], [1], [0, 0, 1, 1], [], []>} : vector<64x8xf32>, vector<8x8xf32>, vector<64x8xf32> -> vector<64x8xf32>
    %98 = arith.addf %91, %97 : vector<64x8xf32>
    %c0_151 = arith.constant 0 : index
    %c0_152 = arith.constant 0 : index
    %c1_153 = arith.constant 1 : index
    %c2_154 = arith.constant 2 : index
    %c0_155 = arith.constant 0 : index
    %99 = vector.load %arg3[%c0_151, %c0_152, %c1_153, %c2_154, %c0_155] : memref<1x1x10x10x8xf32, #tpu.memory_space<vmem>>, vector<1x1x8x8x8xf32>
    %100 = vector.shape_cast %99 : vector<1x1x8x8x8xf32> to vector<8x8x8xf32>
    %101 = vector.shape_cast %100 : vector<8x8x8xf32> to vector<64x8xf32>
    %c1_156 = arith.constant 1 : index
    %c1_157 = arith.constant 1 : index
    %c2_158 = arith.constant 2 : index
    %c0_159 = arith.constant 0 : index
    %c0_160 = arith.constant 0 : index
    %102 = vector.load %arg5[%c1_156, %c1_157, %c2_158, %c0_159, %c0_160] : memref<3x3x3x8x8xf32, #tpu.memory_space<vmem>>, vector<1x1x1x8x8xf32>
    %103 = vector.shape_cast %102 : vector<1x1x1x8x8xf32> to vector<8x8xf32>
    %cst_161 = arith.constant dense<0.000000e+00> : vector<64x8xf32>
    %104 = tpu.matmul %101, %103, %cst_161 {dimension_numbers = #tpu.dot_dimension_numbers<[1], [0], [0], [1], [0, 0, 1, 1], [], []>} : vector<64x8xf32>, vector<8x8xf32>, vector<64x8xf32> -> vector<64x8xf32>
    %105 = arith.addf %98, %104 : vector<64x8xf32>
    %c0_162 = arith.constant 0 : index
    %c0_163 = arith.constant 0 : index
    %c2_164 = arith.constant 2 : index
    %c0_165 = arith.constant 0 : index
    %c0_166 = arith.constant 0 : index
    %106 = vector.load %arg3[%c0_162, %c0_163, %c2_164, %c0_165, %c0_166] : memref<1x1x10x10x8xf32, #tpu.memory_space<vmem>>, vector<1x1x8x8x8xf32>
    %107 = vector.shape_cast %106 : vector<1x1x8x8x8xf32> to vector<8x8x8xf32>
    %108 = vector.shape_cast %107 : vector<8x8x8xf32> to vector<64x8xf32>
    %c1_167 = arith.constant 1 : index
    %c2_168 = arith.constant 2 : index
    %c0_169 = arith.constant 0 : index
    %c0_170 = arith.constant 0 : index
    %c0_171 = arith.constant 0 : index
    %109 = vector.load %arg5[%c1_167, %c2_168, %c0_169, %c0_170, %c0_171] : memref<3x3x3x8x8xf32, #tpu.memory_space<vmem>>, vector<1x1x1x8x8xf32>
    %110 = vector.shape_cast %109 : vector<1x1x1x8x8xf32> to vector<8x8xf32>
    %cst_172 = arith.constant dense<0.000000e+00> : vector<64x8xf32>
    %111 = tpu.matmul %108, %110, %cst_172 {dimension_numbers = #tpu.dot_dimension_numbers<[1], [0], [0], [1], [0, 0, 1, 1], [], []>} : vector<64x8xf32>, vector<8x8xf32>, vector<64x8xf32> -> vector<64x8xf32>
    %112 = arith.addf %105, %111 : vector<64x8xf32>
    %c0_173 = arith.constant 0 : index
    %c0_174 = arith.constant 0 : index
    %c2_175 = arith.constant 2 : index
    %c1_176 = arith.constant 1 : index
    %c0_177 = arith.constant 0 : index
    %113 = vector.load %arg3[%c0_173, %c0_174, %c2_175, %c1_176, %c0_177] : memref<1x1x10x10x8xf32, #tpu.memory_space<vmem>>, vector<1x1x8x8x8xf32>
    %114 = vector.shape_cast %113 : vector<1x1x8x8x8xf32> to vector<8x8x8xf32>
    %115 = vector.shape_cast %114 : vector<8x8x8xf32> to vector<64x8xf32>
    %c1_178 = arith.constant 1 : index
    %c2_179 = arith.constant 2 : index
    %c1_180 = arith.constant 1 : index
    %c0_181 = arith.constant 0 : index
    %c0_182 = arith.constant 0 : index
    %116 = vector.load %arg5[%c1_178, %c2_179, %c1_180, %c0_181, %c0_182] : memref<3x3x3x8x8xf32, #tpu.memory_space<vmem>>, vector<1x1x1x8x8xf32>
    %117 = vector.shape_cast %116 : vector<1x1x1x8x8xf32> to vector<8x8xf32>
    %cst_183 = arith.constant dense<0.000000e+00> : vector<64x8xf32>
    %118 = tpu.matmul %115, %117, %cst_183 {dimension_numbers = #tpu.dot_dimension_numbers<[1], [0], [0], [1], [0, 0, 1, 1], [], []>} : vector<64x8xf32>, vector<8x8xf32>, vector<64x8xf32> -> vector<64x8xf32>
    %119 = arith.addf %112, %118 : vector<64x8xf32>
    %c0_184 = arith.constant 0 : index
    %c0_185 = arith.constant 0 : index
    %c2_186 = arith.constant 2 : index
    %c2_187 = arith.constant 2 : index
    %c0_188 = arith.constant 0 : index
    %120 = vector.load %arg3[%c0_184, %c0_185, %c2_186, %c2_187, %c0_188] : memref<1x1x10x10x8xf32, #tpu.memory_space<vmem>>, vector<1x1x8x8x8xf32>
    %121 = vector.shape_cast %120 : vector<1x1x8x8x8xf32> to vector<8x8x8xf32>
    %122 = vector.shape_cast %121 : vector<8x8x8xf32> to vector<64x8xf32>
    %c1_189 = arith.constant 1 : index
    %c2_190 = arith.constant 2 : index
    %c2_191 = arith.constant 2 : index
    %c0_192 = arith.constant 0 : index
    %c0_193 = arith.constant 0 : index
    %123 = vector.load %arg5[%c1_189, %c2_190, %c2_191, %c0_192, %c0_193] : memref<3x3x3x8x8xf32, #tpu.memory_space<vmem>>, vector<1x1x1x8x8xf32>
    %124 = vector.shape_cast %123 : vector<1x1x1x8x8xf32> to vector<8x8xf32>
    %cst_194 = arith.constant dense<0.000000e+00> : vector<64x8xf32>
    %125 = tpu.matmul %122, %124, %cst_194 {dimension_numbers = #tpu.dot_dimension_numbers<[1], [0], [0], [1], [0, 0, 1, 1], [], []>} : vector<64x8xf32>, vector<8x8xf32>, vector<64x8xf32> -> vector<64x8xf32>
    %126 = arith.addf %119, %125 : vector<64x8xf32>
    %c0_195 = arith.constant 0 : index
    %c0_196 = arith.constant 0 : index
    %c0_197 = arith.constant 0 : index
    %c0_198 = arith.constant 0 : index
    %c0_199 = arith.constant 0 : index
    %127 = vector.load %arg4[%c0_195, %c0_196, %c0_197, %c0_198, %c0_199] : memref<1x1x10x10x8xf32, #tpu.memory_space<vmem>>, vector<1x1x8x8x8xf32>
    %128 = vector.shape_cast %127 : vector<1x1x8x8x8xf32> to vector<8x8x8xf32>
    %129 = vector.shape_cast %128 : vector<8x8x8xf32> to vector<64x8xf32>
    %c2_200 = arith.constant 2 : index
    %c0_201 = arith.constant 0 : index
    %c0_202 = arith.constant 0 : index
    %c0_203 = arith.constant 0 : index
    %c0_204 = arith.constant 0 : index
    %130 = vector.load %arg5[%c2_200, %c0_201, %c0_202, %c0_203, %c0_204] : memref<3x3x3x8x8xf32, #tpu.memory_space<vmem>>, vector<1x1x1x8x8xf32>
    %131 = vector.shape_cast %130 : vector<1x1x1x8x8xf32> to vector<8x8xf32>
    %cst_205 = arith.constant dense<0.000000e+00> : vector<64x8xf32>
    %132 = tpu.matmul %129, %131, %cst_205 {dimension_numbers = #tpu.dot_dimension_numbers<[1], [0], [0], [1], [0, 0, 1, 1], [], []>} : vector<64x8xf32>, vector<8x8xf32>, vector<64x8xf32> -> vector<64x8xf32>
    %133 = arith.addf %126, %132 : vector<64x8xf32>
    %c0_206 = arith.constant 0 : index
    %c0_207 = arith.constant 0 : index
    %c0_208 = arith.constant 0 : index
    %c1_209 = arith.constant 1 : index
    %c0_210 = arith.constant 0 : index
    %134 = vector.load %arg4[%c0_206, %c0_207, %c0_208, %c1_209, %c0_210] : memref<1x1x10x10x8xf32, #tpu.memory_space<vmem>>, vector<1x1x8x8x8xf32>
    %135 = vector.shape_cast %134 : vector<1x1x8x8x8xf32> to vector<8x8x8xf32>
    %136 = vector.shape_cast %135 : vector<8x8x8xf32> to vector<64x8xf32>
    %c2_211 = arith.constant 2 : index
    %c0_212 = arith.constant 0 : index
    %c1_213 = arith.constant 1 : index
    %c0_214 = arith.constant 0 : index
    %c0_215 = arith.constant 0 : index
    %137 = vector.load %arg5[%c2_211, %c0_212, %c1_213, %c0_214, %c0_215] : memref<3x3x3x8x8xf32, #tpu.memory_space<vmem>>, vector<1x1x1x8x8xf32>
    %138 = vector.shape_cast %137 : vector<1x1x1x8x8xf32> to vector<8x8xf32>
    %cst_216 = arith.constant dense<0.000000e+00> : vector<64x8xf32>
    %139 = tpu.matmul %136, %138, %cst_216 {dimension_numbers = #tpu.dot_dimension_numbers<[1], [0], [0], [1], [0, 0, 1, 1], [], []>} : vector<64x8xf32>, vector<8x8xf32>, vector<64x8xf32> -> vector<64x8xf32>
    %140 = arith.addf %133, %139 : vector<64x8xf32>
    %c0_217 = arith.constant 0 : index
    %c0_218 = arith.constant 0 : index
    %c0_219 = arith.constant 0 : index
    %c2_220 = arith.constant 2 : index
    %c0_221 = arith.constant 0 : index
    %141 = vector.load %arg4[%c0_217, %c0_218, %c0_219, %c2_220, %c0_221] : memref<1x1x10x10x8xf32, #tpu.memory_space<vmem>>, vector<1x1x8x8x8xf32>
    %142 = vector.shape_cast %141 : vector<1x1x8x8x8xf32> to vector<8x8x8xf32>
    %143 = vector.shape_cast %142 : vector<8x8x8xf32> to vector<64x8xf32>
    %c2_222 = arith.constant 2 : index
    %c0_223 = arith.constant 0 : index
    %c2_224 = arith.constant 2 : index
    %c0_225 = arith.constant 0 : index
    %c0_226 = arith.constant 0 : index
    %144 = vector.load %arg5[%c2_222, %c0_223, %c2_224, %c0_225, %c0_226] : memref<3x3x3x8x8xf32, #tpu.memory_space<vmem>>, vector<1x1x1x8x8xf32>
    %145 = vector.shape_cast %144 : vector<1x1x1x8x8xf32> to vector<8x8xf32>
    %cst_227 = arith.constant dense<0.000000e+00> : vector<64x8xf32>
    %146 = tpu.matmul %143, %145, %cst_227 {dimension_numbers = #tpu.dot_dimension_numbers<[1], [0], [0], [1], [0, 0, 1, 1], [], []>} : vector<64x8xf32>, vector<8x8xf32>, vector<64x8xf32> -> vector<64x8xf32>
    %147 = arith.addf %140, %146 : vector<64x8xf32>
    %c0_228 = arith.constant 0 : index
    %c0_229 = arith.constant 0 : index
    %c1_230 = arith.constant 1 : index
    %c0_231 = arith.constant 0 : index
    %c0_232 = arith.constant 0 : index
    %148 = vector.load %arg4[%c0_228, %c0_229, %c1_230, %c0_231, %c0_232] : memref<1x1x10x10x8xf32, #tpu.memory_space<vmem>>, vector<1x1x8x8x8xf32>
    %149 = vector.shape_cast %148 : vector<1x1x8x8x8xf32> to vector<8x8x8xf32>
    %150 = vector.shape_cast %149 : vector<8x8x8xf32> to vector<64x8xf32>
    %c2_233 = arith.constant 2 : index
    %c1_234 = arith.constant 1 : index
    %c0_235 = arith.constant 0 : index
    %c0_236 = arith.constant 0 : index
    %c0_237 = arith.constant 0 : index
    %151 = vector.load %arg5[%c2_233, %c1_234, %c0_235, %c0_236, %c0_237] : memref<3x3x3x8x8xf32, #tpu.memory_space<vmem>>, vector<1x1x1x8x8xf32>
    %152 = vector.shape_cast %151 : vector<1x1x1x8x8xf32> to vector<8x8xf32>
    %cst_238 = arith.constant dense<0.000000e+00> : vector<64x8xf32>
    %153 = tpu.matmul %150, %152, %cst_238 {dimension_numbers = #tpu.dot_dimension_numbers<[1], [0], [0], [1], [0, 0, 1, 1], [], []>} : vector<64x8xf32>, vector<8x8xf32>, vector<64x8xf32> -> vector<64x8xf32>
    %154 = arith.addf %147, %153 : vector<64x8xf32>
    %c0_239 = arith.constant 0 : index
    %c0_240 = arith.constant 0 : index
    %c1_241 = arith.constant 1 : index
    %c1_242 = arith.constant 1 : index
    %c0_243 = arith.constant 0 : index
    %155 = vector.load %arg4[%c0_239, %c0_240, %c1_241, %c1_242, %c0_243] : memref<1x1x10x10x8xf32, #tpu.memory_space<vmem>>, vector<1x1x8x8x8xf32>
    %156 = vector.shape_cast %155 : vector<1x1x8x8x8xf32> to vector<8x8x8xf32>
    %157 = vector.shape_cast %156 : vector<8x8x8xf32> to vector<64x8xf32>
    %c2_244 = arith.constant 2 : index
    %c1_245 = arith.constant 1 : index
    %c1_246 = arith.constant 1 : index
    %c0_247 = arith.constant 0 : index
    %c0_248 = arith.constant 0 : index
    %158 = vector.load %arg5[%c2_244, %c1_245, %c1_246, %c0_247, %c0_248] : memref<3x3x3x8x8xf32, #tpu.memory_space<vmem>>, vector<1x1x1x8x8xf32>
    %159 = vector.shape_cast %158 : vector<1x1x1x8x8xf32> to vector<8x8xf32>
    %cst_249 = arith.constant dense<0.000000e+00> : vector<64x8xf32>
    %160 = tpu.matmul %157, %159, %cst_249 {dimension_numbers = #tpu.dot_dimension_numbers<[1], [0], [0], [1], [0, 0, 1, 1], [], []>} : vector<64x8xf32>, vector<8x8xf32>, vector<64x8xf32> -> vector<64x8xf32>
    %161 = arith.addf %154, %160 : vector<64x8xf32>
    %c0_250 = arith.constant 0 : index
    %c0_251 = arith.constant 0 : index
    %c1_252 = arith.constant 1 : index
    %c2_253 = arith.constant 2 : index
    %c0_254 = arith.constant 0 : index
    %162 = vector.load %arg4[%c0_250, %c0_251, %c1_252, %c2_253, %c0_254] : memref<1x1x10x10x8xf32, #tpu.memory_space<vmem>>, vector<1x1x8x8x8xf32>
    %163 = vector.shape_cast %162 : vector<1x1x8x8x8xf32> to vector<8x8x8xf32>
    %164 = vector.shape_cast %163 : vector<8x8x8xf32> to vector<64x8xf32>
    %c2_255 = arith.constant 2 : index
    %c1_256 = arith.constant 1 : index
    %c2_257 = arith.constant 2 : index
    %c0_258 = arith.constant 0 : index
    %c0_259 = arith.constant 0 : index
    %165 = vector.load %arg5[%c2_255, %c1_256, %c2_257, %c0_258, %c0_259] : memref<3x3x3x8x8xf32, #tpu.memory_space<vmem>>, vector<1x1x1x8x8xf32>
    %166 = vector.shape_cast %165 : vector<1x1x1x8x8xf32> to vector<8x8xf32>
    %cst_260 = arith.constant dense<0.000000e+00> : vector<64x8xf32>
    %167 = tpu.matmul %164, %166, %cst_260 {dimension_numbers = #tpu.dot_dimension_numbers<[1], [0], [0], [1], [0, 0, 1, 1], [], []>} : vector<64x8xf32>, vector<8x8xf32>, vector<64x8xf32> -> vector<64x8xf32>
    %168 = arith.addf %161, %167 : vector<64x8xf32>
    %c0_261 = arith.constant 0 : index
    %c0_262 = arith.constant 0 : index
    %c2_263 = arith.constant 2 : index
    %c0_264 = arith.constant 0 : index
    %c0_265 = arith.constant 0 : index
    %169 = vector.load %arg4[%c0_261, %c0_262, %c2_263, %c0_264, %c0_265] : memref<1x1x10x10x8xf32, #tpu.memory_space<vmem>>, vector<1x1x8x8x8xf32>
    %170 = vector.shape_cast %169 : vector<1x1x8x8x8xf32> to vector<8x8x8xf32>
    %171 = vector.shape_cast %170 : vector<8x8x8xf32> to vector<64x8xf32>
    %c2_266 = arith.constant 2 : index
    %c2_267 = arith.constant 2 : index
    %c0_268 = arith.constant 0 : index
    %c0_269 = arith.constant 0 : index
    %c0_270 = arith.constant 0 : index
    %172 = vector.load %arg5[%c2_266, %c2_267, %c0_268, %c0_269, %c0_270] : memref<3x3x3x8x8xf32, #tpu.memory_space<vmem>>, vector<1x1x1x8x8xf32>
    %173 = vector.shape_cast %172 : vector<1x1x1x8x8xf32> to vector<8x8xf32>
    %cst_271 = arith.constant dense<0.000000e+00> : vector<64x8xf32>
    %174 = tpu.matmul %171, %173, %cst_271 {dimension_numbers = #tpu.dot_dimension_numbers<[1], [0], [0], [1], [0, 0, 1, 1], [], []>} : vector<64x8xf32>, vector<8x8xf32>, vector<64x8xf32> -> vector<64x8xf32>
    %175 = arith.addf %168, %174 : vector<64x8xf32>
    %c0_272 = arith.constant 0 : index
    %c0_273 = arith.constant 0 : index
    %c2_274 = arith.constant 2 : index
    %c1_275 = arith.constant 1 : index
    %c0_276 = arith.constant 0 : index
    %176 = vector.load %arg4[%c0_272, %c0_273, %c2_274, %c1_275, %c0_276] : memref<1x1x10x10x8xf32, #tpu.memory_space<vmem>>, vector<1x1x8x8x8xf32>
    %177 = vector.shape_cast %176 : vector<1x1x8x8x8xf32> to vector<8x8x8xf32>
    %178 = vector.shape_cast %177 : vector<8x8x8xf32> to vector<64x8xf32>
    %c2_277 = arith.constant 2 : index
    %c2_278 = arith.constant 2 : index
    %c1_279 = arith.constant 1 : index
    %c0_280 = arith.constant 0 : index
    %c0_281 = arith.constant 0 : index
    %179 = vector.load %arg5[%c2_277, %c2_278, %c1_279, %c0_280, %c0_281] : memref<3x3x3x8x8xf32, #tpu.memory_space<vmem>>, vector<1x1x1x8x8xf32>
    %180 = vector.shape_cast %179 : vector<1x1x1x8x8xf32> to vector<8x8xf32>
    %cst_282 = arith.constant dense<0.000000e+00> : vector<64x8xf32>
    %181 = tpu.matmul %178, %180, %cst_282 {dimension_numbers = #tpu.dot_dimension_numbers<[1], [0], [0], [1], [0, 0, 1, 1], [], []>} : vector<64x8xf32>, vector<8x8xf32>, vector<64x8xf32> -> vector<64x8xf32>
    %182 = arith.addf %175, %181 : vector<64x8xf32>
    %c0_283 = arith.constant 0 : index
    %c0_284 = arith.constant 0 : index
    %c2_285 = arith.constant 2 : index
    %c2_286 = arith.constant 2 : index
    %c0_287 = arith.constant 0 : index
    %183 = vector.load %arg4[%c0_283, %c0_284, %c2_285, %c2_286, %c0_287] : memref<1x1x10x10x8xf32, #tpu.memory_space<vmem>>, vector<1x1x8x8x8xf32>
    %184 = vector.shape_cast %183 : vector<1x1x8x8x8xf32> to vector<8x8x8xf32>
    %185 = vector.shape_cast %184 : vector<8x8x8xf32> to vector<64x8xf32>
    %c2_288 = arith.constant 2 : index
    %c2_289 = arith.constant 2 : index
    %c2_290 = arith.constant 2 : index
    %c0_291 = arith.constant 0 : index
    %c0_292 = arith.constant 0 : index
    %186 = vector.load %arg5[%c2_288, %c2_289, %c2_290, %c0_291, %c0_292] : memref<3x3x3x8x8xf32, #tpu.memory_space<vmem>>, vector<1x1x1x8x8xf32>
    %187 = vector.shape_cast %186 : vector<1x1x1x8x8xf32> to vector<8x8xf32>
    %cst_293 = arith.constant dense<0.000000e+00> : vector<64x8xf32>
    %188 = tpu.matmul %185, %187, %cst_293 {dimension_numbers = #tpu.dot_dimension_numbers<[1], [0], [0], [1], [0, 0, 1, 1], [], []>} : vector<64x8xf32>, vector<8x8xf32>, vector<64x8xf32> -> vector<64x8xf32>
    %189 = arith.addf %182, %188 : vector<64x8xf32>
    %c0_294 = arith.constant 0 : index
    %c0_295 = arith.constant 0 : index
    %190 = vector.load %arg6[%c0_294, %c0_295] : memref<1x8xf32, #tpu.memory_space<vmem>>, vector<1x8xf32>
    %191 = vector.broadcast %190 : vector<1x8xf32> to vector<64x8xf32>
    %192 = arith.addf %189, %191 : vector<64x8xf32>
    %cst_296 = arith.constant 0.000000e+00 : f32
    %193 = vector.broadcast %cst_296 : f32 to vector<64x8xf32>
    %194 = arith.maximumf %192, %193 : vector<64x8xf32>
    %c0_297 = arith.constant 0 : index
    %c0_298 = arith.constant 0 : index
    %195 = vector.load %arg7[%c0_297, %c0_298] : memref<8x32xf32, #tpu.memory_space<vmem>>, vector<8x32xf32>
    %cst_299 = arith.constant dense<0.000000e+00> : vector<64x32xf32>
    %196 = tpu.matmul %194, %195, %cst_299 {dimension_numbers = #tpu.dot_dimension_numbers<[1], [0], [0], [1], [0, 0, 1, 1], [], []>} : vector<64x8xf32>, vector<8x32xf32>, vector<64x32xf32> -> vector<64x32xf32>
    %c0_300 = arith.constant 0 : index
    %c0_301 = arith.constant 0 : index
    %197 = vector.load %arg8[%c0_300, %c0_301] : memref<1x32xf32, #tpu.memory_space<vmem>>, vector<1x32xf32>
    %198 = vector.broadcast %197 : vector<1x32xf32> to vector<64x32xf32>
    %199 = arith.addf %196, %198 : vector<64x32xf32>
    %c0_302 = arith.constant 0 : index
    %c0_303 = arith.constant 0 : index
    %c0_304 = arith.constant 0 : index
    %c0_305 = arith.constant 0 : index
    %200 = vector.load %arg9[%c0_302, %c0_303, %c0_304, %c0_305] : memref<1x1x64x32xf32, #tpu.memory_space<vmem>>, vector<1x1x64x32xf32>
    %201 = vector.shape_cast %200 : vector<1x1x64x32xf32> to vector<64x32xf32>
    %202 = arith.addf %199, %201 : vector<64x32xf32>
    %cst_306 = arith.constant 0.000000e+00 : f32
    %203 = vector.broadcast %cst_306 : f32 to vector<64x32xf32>
    %204 = arith.maximumf %202, %203 : vector<64x32xf32>
    %c0_307 = arith.constant 0 : index
    %c0_308 = arith.constant 0 : index
    %c0_309 = arith.constant 0 : index
    %c0_310 = arith.constant 0 : index
    %205 = vector.load %arg10[%c0_307, %c0_308, %c0_309, %c0_310] : memref<1x1x64x32xf32, #tpu.memory_space<vmem>>, vector<1x1x64x32xf32>
    %206 = vector.shape_cast %205 : vector<1x1x64x32xf32> to vector<64x32xf32>
    %207 = vector.shape_cast %204 : vector<64x32xf32> to vector<1x1x64x32xf32>
    tpu.vector_store %arg10[%c0_307, %c0_308, %c0_309, %c0_310], %207 {strides = array<i32>} : memref<1x1x64x32xf32, #tpu.memory_space<vmem>>, vector<1x1x64x32xf32>,
    return
  }
  func.func @transform_0(%arg0: i32, %arg1: i32) -> (i32, i32, i32, i32, i32) {
    %c0_i32 = arith.constant 0 : i32
    %0 = arith.addi %arg1, %c0_i32 : i32
    %c0_i32_0 = arith.constant 0 : i32
    %c0_i32_1 = arith.constant 0 : i32
    %c0_i32_2 = arith.constant 0 : i32
    %c0_i32_3 = arith.constant 0 : i32
    return %arg0, %0, %c0_i32_0, %c0_i32_1, %c0_i32_2 : i32, i32, i32, i32, i32
  }
  func.func @transform_1(%arg0: i32, %arg1: i32) -> (i32, i32, i32, i32, i32) {
    %c1_i32 = arith.constant 1 : i32
    %0 = arith.addi %arg1, %c1_i32 : i32
    %c0_i32 = arith.constant 0 : i32
    %c0_i32_0 = arith.constant 0 : i32
    %c0_i32_1 = arith.constant 0 : i32
    %c0_i32_2 = arith.constant 0 : i32
    return %arg0, %0, %c0_i32, %c0_i32_0, %c0_i32_1 : i32, i32, i32, i32, i32
  }
  func.func @transform_2(%arg0: i32, %arg1: i32) -> (i32, i32, i32, i32, i32) {
    %c2_i32 = arith.constant 2 : i32
    %0 = arith.addi %arg1, %c2_i32 : i32
    %c0_i32 = arith.constant 0 : i32
    %c0_i32_0 = arith.constant 0 : i32
    %c0_i32_1 = arith.constant 0 : i32
    %c0_i32_2 = arith.constant 0 : i32
    return %arg0, %0, %c0_i32, %c0_i32_0, %c0_i32_1 : i32, i32, i32, i32, i32
  }
  func.func @transform_3(%arg0: i32, %arg1: i32) -> (i32, i32, i32, i32, i32) {
    %c0_i32 = arith.constant 0 : i32
    %c0_i32_0 = arith.constant 0 : i32
    %c0_i32_1 = arith.constant 0 : i32
    %c0_i32_2 = arith.constant 0 : i32
    %c0_i32_3 = arith.constant 0 : i32
    %c0_i32_4 = arith.constant 0 : i32
    return %c0_i32, %c0_i32_0, %c0_i32_1, %c0_i32_2, %c0_i32_3 : i32, i32, i32, i32, i32
  }
  func.func @transform_4(%arg0: i32, %arg1: i32) -> (i32, i32) {
    %c0_i32 = arith.constant 0 : i32
    %c0_i32_0 = arith.constant 0 : i32
    %c0_i32_1 = arith.constant 0 : i32
    return %c0_i32, %c0_i32_0 : i32, i32
  }
  func.func @transform_5(%arg0: i32, %arg1: i32) -> (i32, i32) {
    %c0_i32 = arith.constant 0 : i32
    %c0_i32_0 = arith.constant 0 : i32
    %c0_i32_1 = arith.constant 0 : i32
    return %c0_i32, %c0_i32_0 : i32, i32
  }
  func.func @transform_6(%arg0: i32, %arg1: i32) -> (i32, i32) {
    %c0_i32 = arith.constant 0 : i32
    %c0_i32_0 = arith.constant 0 : i32
    %c0_i32_1 = arith.constant 0 : i32
    return %c0_i32, %c0_i32_0 : i32, i32
  }
  func.func @transform_7(%arg0: i32, %arg1: i32) -> (i32, i32, i32, i32) {
    %c0_i32 = arith.constant 0 : i32
    %c0_i32_0 = arith.constant 0 : i32
    %c0_i32_1 = arith.constant 0 : i32
    return %arg0, %arg1, %c0_i32, %c0_i32_0 : i32, i32, i32, i32
  }
  func.func @transform_8(%arg0: i32, %arg1: i32) -> (i32, i32, i32, i32) {
    %c0_i32 = arith.constant 0 : i32
    %c0_i32_0 = arith.constant 0 : i32
    %c0_i32_1 = arith.constant 0 : i32
    return %arg0, %arg1, %c0_i32, %c0_i32_0 : i32, i32, i32, i32
  }
}

</mosaic_0001>

<llo_original>
// kernel: bottleneck_forward.2
$region0: #{bottleneck_forward.2}
  #allocation0 [shape = 'u32[]', space=smem, size = 0x4, offset = 0x4, fixed_abs, tag = 'smem constant byte address 0x4 - core index']
  #allocation1 [shape = 'u32[144,128]{1,0:T(1,128)}', space=vmem, size = 0x12000, scoped, tag = 'internal scratch']
  %s0 = inlined_call_operand.hbm [shape: f32[1024,32], index: 0, kind: input, shape index: {}]
  %s1 = inlined_call_operand.vmem [shape: f32[32,8], index: 1, kind: input, shape index: {}]
  %s2 = inlined_call_operand.vmem [shape: f32[1,8], index: 2, kind: input, shape index: {}]
  %s3 = inlined_call_operand.vmem [shape: f32[1024,8], index: 3, kind: output, shape index: {}]
  %s4 = sld [smem:[#allocation0]]
  $region49: #{bottleneck_forward.2} parent=0
    _
  %s6 = ssub.s32 1, %s4
  %s7 = scalar_select 0, %s6, %s4
  $region1: #{bottleneck_forward.2} parent=0
    #allocation2 [shape = 'u8[524288]{0}', space=vmem, size = 0x80000, scoped, tag = 'input window, operand 0']
    #allocation3 [shape = 's32[2]{0}', space=sflag, size = 0x8, scoped, tag = 'scoped memory for bottleneck_forward.2']
    %8 = vsyncpa [#allocation3], 0
    %s9 = scalar_lea.sflag [#allocation3], 1
    %10 = vsyncpa %s9, 0
    loop: start=0, step=1, limit=4
    $region2: #{bottleneck_forward.2} parent=1 // loop_pre_header
      _
    $region3: #{bottleneck_forward.2} parent=1 // loop_header
      %s12 = sphi 0, %s16
      %p13 = scmp.ge.s32.totalorder %s12, 4
      %s22 = sphi 0, %s24
      %s25 = sphi 0, %s22
      %s26 = sphi 0, %s25
      %s42 = sphi 0, %s26
      %s46 = sphi 0, %s46
      %s48 = sphi 0, %s46
      %s49 = sphi 0, %s48
      %s63 = sphi 0, %s49
      %s67 = sphi 0, %s67
      %s69 = sphi 0, %s67
      %s70 = sphi 0, %s69
      %s84 = sphi 0, %s70
      %s90 = sphi 0, %s92
      %s93 = sphi 0, %s90
      %s94 = sphi 0, %s93
      %s110 = sphi 0, %s94
    $region4: #{bottleneck_forward.2} parent=1 // loop_header_branch
      %15 = sbr.rel (%p13) target = $region8
    $region5: #{bottleneck_forward.2} parent=1 // loop_body
      %s17 = ssub.s32 %s12, 1
      %s18 = ssub.s32 %s12, 2
      %s19 = sadd.s32 %s12, 1
      %s20 = ssub.s32 %s12, %s19
      %p21 = scmp.eq.s32.totalorder %s20, 0
      %s23 = sadd.s32 %s22, 1
      %s24 = scalar_select %p21, %s22, %s23
      %p27 = pneg %p21
      %p28 = scmp.eq.s32.totalorder %s12, 1
      %p29 = por %p27, %p28
      %p30 = scmp.ne.s32.totalorder %s22, %s25
      %p31 = scmp.eq.s32.totalorder %s12, 0
      %p32 = por %p30, %p31
      %p33 = scmp.ne.s32.totalorder %s22, %s25
      %p34 = scmp.eq.s32.totalorder %s17, 1
      %p35 = por %p33, %p34
      %p36 = scmp.ne.s32.totalorder %s25, %s26
      %p37 = scmp.eq.s32.totalorder %s17, 0
      %p38 = por %p36, %p37
      %p39 = scmp.ne.s32.totalorder %s25, %s26
      %p40 = scmp.eq.s32.totalorder %s18, 1
      %p41 = por %p39, %p40
      %p43 = scmp.ne.s32.totalorder %s26, %s42
      %p44 = scmp.eq.s32.totalorder %s18, 0
      %p45 = por %p43, %p44
      %s47 = sadd.s32 %s46, 1
      %p50 = scmp.eq.s32.totalorder %s12, 1
      %p51 = scmp.ne.s32.totalorder %s46, %s48
      %p52 = scmp.eq.s32.totalorder %s12, 0
      %p53 = por %p51, %p52
      %p54 = scmp.ne.s32.totalorder %s46, %s48
      %p55 = scmp.eq.s32.totalorder %s17, 1
      %p56 = por %p54, %p55
      %p57 = scmp.ne.s32.totalorder %s48, %s49
      %p58 = scmp.eq.s32.totalorder %s17, 0
      %p59 = por %p57, %p58
      %p60 = scmp.ne.s32.totalorder %s48, %s49
      %p61 = scmp.eq.s32.totalorder %s18, 1
      %p62 = por %p60, %p61
      %p64 = scmp.ne.s32.totalorder %s49, %s63
      %p65 = scmp.eq.s32.totalorder %s18, 0
      %p66 = por %p64, %p65
      %s68 = sadd.s32 %s67, 1
      %p71 = scmp.eq.s32.totalorder %s12, 1
      %p72 = scmp.ne.s32.totalorder %s67, %s69
      %p73 = scmp.eq.s32.totalorder %s12, 0
      %p74 = por %p72, %p73
      %p75 = scmp.ne.s32.totalorder %s67, %s69
      %p76 = scmp.eq.s32.totalorder %s17, 1
      %p77 = por %p75, %p76
      %p78 = scmp.ne.s32.totalorder %s69, %s70
      %p79 = scmp.eq.s32.totalorder %s17, 0
      %p80 = por %p78, %p79
      %p81 = scmp.ne.s32.totalorder %s69, %s70
      %p82 = scmp.eq.s32.totalorder %s18, 1
      %p83 = por %p81, %p82
      %p85 = scmp.ne.s32.totalorder %s70, %s84
      %p86 = scmp.eq.s32.totalorder %s18, 0
      %p87 = por %p85, %p86
      %s88 = ssub.s32 %s12, %s19
      %p89 = scmp.eq.s32.totalorder %s88, 0
      %s91 = sadd.s32 %s90, 1
      %s92 = scalar_select %p89, %s90, %s91
      %p95 = pneg %p89
      %p96 = scmp.eq.s32.totalorder %s12, 1
      %p97 = por %p95, %p96
      %p98 = scmp.ne.s32.totalorder %s90, %s93
      %p99 = scmp.eq.s32.totalorder %s12, 0
      %p100 = por %p98, %p99
      %p101 = scmp.ne.s32.totalorder %s90, %s93
      %p102 = scmp.eq.s32.totalorder %s17, 1
      %p103 = por %p101, %p102
      %p104 = scmp.ne.s32.totalorder %s93, %s94
      %p105 = scmp.eq.s32.totalorder %s17, 0
      %p106 = por %p104, %p105
      %p107 = scmp.ne.s32.totalorder %s93, %s94
      %p108 = scmp.eq.s32.totalorder %s18, 1
      %p109 = por %p107, %p108
      %p111 = scmp.ne.s32.totalorder %s94, %s110
      %p112 = scmp.eq.s32.totalorder %s18, 0
      %p113 = por %p111, %p112
      %p114 = scmp.le.s32.totalorder 1, %s12
      %p115 = scmp.lt.s32.totalorder %s12, 3
      %p116 = pnand %p114, %p115
      %p117 = pneg %p116
      // Predicated region
      $region9: #{bottleneck_forward.2} parent=5 // pred_check
        _
      $region10: #{bottleneck_forward.2} parent=5 // pred_check_branch
        %119 = sbr.rel (%p116) target = $region12
      $region11: #{bottleneck_forward.2} parent=5 // pred_region
        %s120 = ssub.s32 %s12, 1
        // Predicated region
        $region13: #{bottleneck_forward.2} parent=11 // pred_check
          %p121 = pneg %p59
        $region14: #{bottleneck_forward.2} parent=11 // pred_check_branch
          %123 = sbr.rel (%p121) target = $region16
        $region15: #{bottleneck_forward.2} parent=11 // pred_region
          _
        $region16: #{bottleneck_forward.2} parent=11 // pred_fallthru
          _
        // Predicated region
        $region17: #{bottleneck_forward.2} parent=11 // pred_check
          %p124 = pneg %p80
        $region18: #{bottleneck_forward.2} parent=11 // pred_check_branch
          %126 = sbr.rel (%p124) target = $region20
        $region19: #{bottleneck_forward.2} parent=11 // pred_region
          _
        $region20: #{bottleneck_forward.2} parent=11 // pred_fallthru
          _
      $region12: #{bottleneck_forward.2} parent=5 // pred_fallthru
        _
      %p127 = scmp.lt.s32.totalorder %s12, 2
      // Predicated region
      $region21: #{bottleneck_forward.2} parent=5 // pred_check
        %p128 = pneg %p127
      $region22: #{bottleneck_forward.2} parent=5 // pred_check_branch
        %130 = sbr.rel (%p128) target = $region24
      $region23: #{bottleneck_forward.2} parent=5 // pred_region
        // Predicated region
        $region25: #{bottleneck_forward.2} parent=23 // pred_check
          %p131 = pneg %p32
        $region26: #{bottleneck_forward.2} parent=23 // pred_check_branch
          %133 = sbr.rel (%p131) target = $region28
        $region27: #{bottleneck_forward.2} parent=23 // pred_region
          %s134 = sand.u32 %s22, 1
          %s135 = scalar_lea.sflag [#allocation3], %s134
          %s136 = sand.u32 %s22, 1
          %s137 = smul.addr %s136, 512
          %s138 = scalar_lea.vmem [#allocation2], %s137
          %s139 = smul.u32 64, %s12
          %s141 = ssub.s32 8192, 8192
          %142 = vsyncadd %s135, %s141
          %s143 = smul.addr %s139, 128
          %s144 = scalar_lea.hbm %s0, %s143
          %s145 = sshll.u32 %s138, 4
          %s146 = int_to_ptr.vmem [resolvable:$true] %s145
          %151 = dma.hbm_to_vmem [thread:$0]  %s144, 8192, %s146, %s135, 128, 128, 8
        $region28: #{bottleneck_forward.2} parent=23 // pred_fallthru
          _
      $region24: #{bottleneck_forward.2} parent=5 // pred_fallthru
        _
      %p152 = scmp.le.s32.totalorder 1, %s12
      %p153 = scmp.lt.s32.totalorder %s12, 3
      %p154 = pnand %p152, %p153
      %p155 = pneg %p154
      // Predicated region
      $region29: #{bottleneck_forward.2} parent=5 // pred_check
        _
      $region30: #{bottleneck_forward.2} parent=5 // pred_check_branch
        %157 = sbr.rel (%p154) target = $region32
      $region31: #{bottleneck_forward.2} parent=5 // pred_region
        %s158 = ssub.s32 %s12, 1
        %s159 = sand.u32 %s25, 1
        %s160 = scalar_lea.sflag [#allocation3], %s159
        %s161 = sand.u32 %s25, 1
        %s162 = smul.addr %s161, 512
        %s163 = scalar_lea.vmem [#allocation2], %s162
        // Predicated region
        $region33: #{bottleneck_forward.2} parent=31 // pred_check
          %p164 = pneg %p38
        $region34: #{bottleneck_forward.2} parent=31 // pred_check_branch
          %166 = sbr.rel (%p164) target = $region36
        $region35: #{bottleneck_forward.2} parent=31 // pred_region
          %167 = dma.done %s160, 8192
        $region36: #{bottleneck_forward.2} parent=31 // pred_fallthru
          _
        %s168 = sand.u32 %s25, 1
        %s169 = scalar_lea.sflag [#allocation3], %s168
        %s170 = sand.u32 %s25, 1
        %s171 = smul.addr %s170, 512
        %s172 = scalar_lea.vmem [#allocation2], %s171
        %p173 = pneg %p38
        %p174 = pneg %p35
        %p175 = pneg %p59
        %p176 = pneg %p56
        %p177 = pneg %p80
        %p178 = pneg %p77
        %p179 = pneg %p106
        %p180 = pneg %p103
        %s181 = smul.u32 64, %s17
        %p182 = scmp.lt.s32.totalorder %s181, 127
        %s183 = scalar_select %p182, %s181, 127
        %s184 = smul.addr %s183, 8
        %s185 = scalar_lea.vmem %s3, %s184
        %s186 = smul.u32 64, %s17
        %s187 = smul.u32 64, %s17
        %p188 = scmp.lt.s32.totalorder %s187, 127
        %s189 = scalar_select %p188, %s187, 127
        %s190 = smul.addr %s189, 8
        %s191 = scalar_lea.vmem %s3, %s190
        %s192 = smul.u32 64, %s17
        %v193 = vld [vmem:[%s163] sm:$0xff]
        %v194 = vld [vmem:[%s163 + $0x8] sm:$0xff]
        %v195 = vld [vmem:[%s163 + $0x10] sm:$0xff]
        %v196 = vld [vmem:[%s163 + $0x18] sm:$0xff]
        %v197 = vld [vmem:[%s163 + $0x20] sm:$0xff]
        %v198 = vld [vmem:[%s163 + $0x28] sm:$0xff]
        %v199 = vld [vmem:[%s163 + $0x30] sm:$0xff]
        %v200 = vld [vmem:[%s163 + $0x38] sm:$0xff]
        %v201 = vld [vmem:[%s163 + $0x40] sm:$0xff]
        %v202 = vld [vmem:[%s163 + $0x48] sm:$0xff]
        %v203 = vld [vmem:[%s163 + $0x50] sm:$0xff]
        %v204 = vld [vmem:[%s163 + $0x58] sm:$0xff]
        %v205 = vld [vmem:[%s163 + $0x60] sm:$0xff]
        %v206 = vld [vmem:[%s163 + $0x68] sm:$0xff]
        %v207 = vld [vmem:[%s163 + $0x70] sm:$0xff]
        %v208 = vld [vmem:[%s163 + $0x78] sm:$0xff]
        %v209 = vld [vmem:[%s163 + $0x80] sm:$0xff]
        %v210 = vld [vmem:[%s163 + $0x88] sm:$0xff]
        %v211 = vld [vmem:[%s163 + $0x90] sm:$0xff]
        %v212 = vld [vmem:[%s163 + $0x98] sm:$0xff]
        %v213 = vld [vmem:[%s163 + $0xa0] sm:$0xff]
        %v214 = vld [vmem:[%s163 + $0xa8] sm:$0xff]
        %v215 = vld [vmem:[%s163 + $0xb0] sm:$0xff]
        %v216 = vld [vmem:[%s163 + $0xb8] sm:$0xff]
        %v217 = vld [vmem:[%s163 + $0xc0] sm:$0xff]
        %v218 = vld [vmem:[%s163 + $0xc8] sm:$0xff]
        %v219 = vld [vmem:[%s163 + $0xd0] sm:$0xff]
        %v220 = vld [vmem:[%s163 + $0xd8] sm:$0xff]
        %v221 = vld [vmem:[%s163 + $0xe0] sm:$0xff]
        %v222 = vld [vmem:[%s163 + $0xe8] sm:$0xff]
        %v223 = vld [vmem:[%s163 + $0xf0] sm:$0xff]
        %v224 = vld [vmem:[%s163 + $0xf8] sm:$0xff]
        %v225 = vld [vmem:[%s163 + $0x100] sm:$0xff]
        %v226 = vld [vmem:[%s163 + $0x108] sm:$0xff]
        %v227 = vld [vmem:[%s163 + $0x110] sm:$0xff]
        %v228 = vld [vmem:[%s163 + $0x118] sm:$0xff]
        %v229 = vld [vmem:[%s163 + $0x120] sm:$0xff]
        %v230 = vld [vmem:[%s163 + $0x128] sm:$0xff]
        %v231 = vld [vmem:[%s163 + $0x130] sm:$0xff]
        %v232 = vld [vmem:[%s163 + $0x138] sm:$0xff]
        %v233 = vld [vmem:[%s163 + $0x140] sm:$0xff]
        %v234 = vld [vmem:[%s163 + $0x148] sm:$0xff]
        %v235 = vld [vmem:[%s163 + $0x150] sm:$0xff]
        %v236 = vld [vmem:[%s163 + $0x158] sm:$0xff]
        %v237 = vld [vmem:[%s163 + $0x160] sm:$0xff]
        %v238 = vld [vmem:[%s163 + $0x168] sm:$0xff]
        %v239 = vld [vmem:[%s163 + $0x170] sm:$0xff]
        %v240 = vld [vmem:[%s163 + $0x178] sm:$0xff]
        %v241 = vld [vmem:[%s163 + $0x180] sm:$0xff]
        %v242 = vld [vmem:[%s163 + $0x188] sm:$0xff]
        %v243 = vld [vmem:[%s163 + $0x190] sm:$0xff]
        %v244 = vld [vmem:[%s163 + $0x198] sm:$0xff]
        %v245 = vld [vmem:[%s163 + $0x1a0] sm:$0xff]
        %v246 = vld [vmem:[%s163 + $0x1a8] sm:$0xff]
        %v247 = vld [vmem:[%s163 + $0x1b0] sm:$0xff]
        %v248 = vld [vmem:[%s163 + $0x1b8] sm:$0xff]
        %v249 = vld [vmem:[%s163 + $0x1c0] sm:$0xff]
        %v250 = vld [vmem:[%s163 + $0x1c8] sm:$0xff]
        %v251 = vld [vmem:[%s163 + $0x1d0] sm:$0xff]
        %v252 = vld [vmem:[%s163 + $0x1d8] sm:$0xff]
        %v253 = vld [vmem:[%s163 + $0x1e0] sm:$0xff]
        %v254 = vld [vmem:[%s163 + $0x1e8] sm:$0xff]
        %v255 = vld [vmem:[%s163 + $0x1f0] sm:$0xff]
        %v256 = vld [vmem:[%s163 + $0x1f8] sm:$0xff]
        %v257 = vld [vmem:[%s1] sm:$0xff]
        %v258 = vld [vmem:[%s1 + $0x8] sm:$0xff]
        %v259 = vld [vmem:[%s1 + $0x10] sm:$0xff]
        %v260 = vld [vmem:[%s1 + $0x18] sm:$0xff]
        %v261 = vld [vmem:[%s2] sm:$0x1]
        %v263 = vlaneseq
        %v264 = vshrl.u32 %v263, 7
        %v265 = vsub.s32 0, %v264
        %v266 = vrot.slane %v261, %v265
        %vm268 = vcmask 261120
        %v270 = vsel %vm268, %v193, 0
        %v273 = vsel %vm268, %v194, 0
        %v276 = vsel %vm268, %v195, 0
        %v279 = vsel %vm268, %v196, 0
        %v282 = vsel %vm268, %v197, 0
        %v285 = vsel %vm268, %v198, 0
        %v288 = vsel %vm268, %v199, 0
        %v291 = vsel %vm268, %v200, 0
        %v294 = vsel %vm268, %v201, 0
        %v297 = vsel %vm268, %v202, 0
        %v300 = vsel %vm268, %v203, 0
        %v303 = vsel %vm268, %v204, 0
        %v306 = vsel %vm268, %v205, 0
        %v309 = vsel %vm268, %v206, 0
        %v312 = vsel %vm268, %v207, 0
        %v315 = vsel %vm268, %v208, 0
        %v318 = vsel %vm268, %v209, 0
        %v321 = vsel %vm268, %v210, 0
        %v324 = vsel %vm268, %v211, 0
        %v327 = vsel %vm268, %v212, 0
        %v330 = vsel %vm268, %v213, 0
        %v333 = vsel %vm268, %v214, 0
        %v336 = vsel %vm268, %v215, 0
        %v339 = vsel %vm268, %v216, 0
        %v342 = vsel %vm268, %v217, 0
        %v345 = vsel %vm268, %v218, 0
        %v348 = vsel %vm268, %v219, 0
        %v351 = vsel %vm268, %v220, 0
        %v354 = vsel %vm268, %v221, 0
        %v357 = vsel %vm268, %v222, 0
        %v360 = vsel %vm268, %v223, 0
        %v363 = vsel %vm268, %v224, 0
        %v366 = vsel %vm268, %v225, 0
        %v369 = vsel %vm268, %v226, 0
        %v372 = vsel %vm268, %v227, 0
        %v375 = vsel %vm268, %v228, 0
        %v378 = vsel %vm268, %v229, 0
        %v381 = vsel %vm268, %v230, 0
        %v384 = vsel %vm268, %v231, 0
        %v387 = vsel %vm268, %v232, 0
        %v390 = vsel %vm268, %v233, 0
        %v393 = vsel %vm268, %v234, 0
        %v396 = vsel %vm268, %v235, 0
        %v399 = vsel %vm268, %v236, 0
        %v402 = vsel %vm268, %v237, 0
        %v405 = vsel %vm268, %v238, 0
        %v408 = vsel %vm268, %v239, 0
        %v411 = vsel %vm268, %v240, 0
        %v414 = vsel %vm268, %v241, 0
        %v417 = vsel %vm268, %v242, 0
        %v420 = vsel %vm268, %v243, 0
        %v423 = vsel %vm268, %v244, 0
        %v426 = vsel %vm268, %v245, 0
        %v429 = vsel %vm268, %v246, 0
        %v432 = vsel %vm268, %v247, 0
        %v435 = vsel %vm268, %v248, 0
        %v438 = vsel %vm268, %v249, 0
        %v441 = vsel %vm268, %v250, 0
        %v444 = vsel %vm268, %v251, 0
        %v447 = vsel %vm268, %v252, 0
        %v450 = vsel %vm268, %v253, 0
        %v453 = vsel %vm268, %v254, 0
        %v456 = vsel %vm268, %v255, 0
        %v459 = vsel %vm268, %v256, 0
        %461 = vmatprep.subr.mxu0 0.0
        %462 = vmatpush1.msra.mxu0 0.0
        %463 = vmatprep.subr.mxu0 0.0
        %464 = vmatpush1.msra.mxu0 0.0
        %465 = vmatprep.subr.mxu0 0.0
        %466 = vmatpush1.msra.mxu0 0.0
        %467 = vmatprep.subr.mxu0 0.0
        %468 = vmatpush1.msra.mxu0 0.0
        %469 = vmatprep.subr.mxu0 0.0
        %470 = vmatpush1.msra.mxu0 0.0
        %471 = vmatprep.subr.mxu0 0.0
        %472 = vmatpush1.msra.mxu0 0.0
        %473 = vmatprep.subr.mxu0 0.0
        %474 = vmatpush1.msra.mxu0 0.0
        %475 = vmatprep.subr.mxu0 0.0
        %476 = vmatpush1.msra.mxu0 0.0
        %477 = vmatprep.subr.mxu0 0.0
        %478 = vmatpush1.msra.mxu0 0.0
        %479 = vmatprep.subr.mxu0 0.0
        %480 = vmatpush1.msra.mxu0 0.0
        %481 = vmatprep.subr.mxu0 0.0
        %482 = vmatpush1.msra.mxu0 0.0
        %483 = vmatprep.subr.mxu0 0.0
        %484 = vmatpush1.msra.mxu0 0.0
        %485 = vmatprep.subr.mxu0 0.0
        %486 = vmatpush1.msra.mxu0 %v260
        %487 = vmatprep.subr.mxu0 0.0
        %488 = vmatpush1.msra.mxu0 %v259
        %489 = vmatprep.subr.mxu0 0.0
        %490 = vmatpush1.msra.mxu0 %v258
        %491 = vmatprep.subr.mxu0 0.0
        %492 = vmatpush1.msra.mxu0 %v257
        %493 = vmatprep.subr.mxu0 0.0
        %494 = vmatpush2.msra.mxu0 0.0
        %495 = vmatprep.subr.mxu0 0.0
        %496 = vmatpush2.msra.mxu0 0.0
        %497 = vmatprep.subr.mxu0 0.0
        %498 = vmatpush2.msra.mxu0 0.0
        %499 = vmatprep.subr.mxu0 0.0
        %500 = vmatpush2.msra.mxu0 0.0
        %501 = vmatprep.subr.mxu0 0.0
        %502 = vmatpush2.msra.mxu0 0.0
        %503 = vmatprep.subr.mxu0 0.0
        %504 = vmatpush2.msra.mxu0 0.0
        %505 = vmatprep.subr.mxu0 0.0
        %506 = vmatpush2.msra.mxu0 0.0
        %507 = vmatprep.subr.mxu0 0.0
        %508 = vmatpush2.msra.mxu0 0.0
        %509 = vmatprep.subr.mxu0 0.0
        %510 = vmatpush2.msra.mxu0 0.0
        %511 = vmatprep.subr.mxu0 0.0
        %512 = vmatpush2.msra.mxu0 0.0
        %513 = vmatprep.subr.mxu0 0.0
        %514 = vmatpush2.msra.mxu0 0.0
        %515 = vmatprep.subr.mxu0 0.0
        %516 = vmatpush2.msra.mxu0 0.0
        %517 = vmatprep.subr.mxu0 0.0
        %518 = vmatpush2.msra.mxu0 0.0
        %519 = vmatprep.subr.mxu0 0.0
        %520 = vmatpush2.msra.mxu0 0.0
        %521 = vmatprep.subr.mxu0 0.0
        %522 = vmatpush2.msra.mxu0 0.0
        %523 = vmatprep.subr.mxu0 0.0
        %524 = vmatpush2.msra.mxu0 0.0
        %525 = vmatprep.mubr.f32.mxu0 0.0
        %526 = vmatmul.mubr.f32.gmra.mxu0 %v270
        %v527 = vpop.f32.mrf.mxu0
        %v528 = vadd.f32 %v266, %v527
        %v529 = vpop.f32.mrf.mxu0
        %530 = vmatprep.mubr.f32.mxu0 0.0
        %531 = vmatmul.mubr.f32.gmra.mxu0 %v273
        %v532 = vpop.f32.mrf.mxu0
        %v533 = vadd.f32 %v266, %v532
        %v534 = vpop.f32.mrf.mxu0
        %535 = vmatprep.mubr.f32.mxu0 0.0
        %536 = vmatmul.mubr.f32.gmra.mxu0 %v276
        %v537 = vpop.f32.mrf.mxu0
        %v538 = vadd.f32 %v266, %v537
        %v539 = vpop.f32.mrf.mxu0
        %540 = vmatprep.mubr.f32.mxu0 0.0
        %541 = vmatmul.mubr.f32.gmra.mxu0 %v279
        %v542 = vpop.f32.mrf.mxu0
        %v543 = vadd.f32 %v266, %v542
        %v544 = vpop.f32.mrf.mxu0
        %545 = vmatprep.mubr.f32.mxu0 0.0
        %546 = vmatmul.mubr.f32.gmra.mxu0 %v282
        %v547 = vpop.f32.mrf.mxu0
        %v548 = vadd.f32 %v266, %v547
        %v549 = vpop.f32.mrf.mxu0
        %550 = vmatprep.mubr.f32.mxu0 0.0
        %551 = vmatmul.mubr.f32.gmra.mxu0 %v285
        %v552 = vpop.f32.mrf.mxu0
        %v553 = vadd.f32 %v266, %v552
        %v554 = vpop.f32.mrf.mxu0
        %555 = vmatprep.mubr.f32.mxu0 0.0
        %556 = vmatmul.mubr.f32.gmra.mxu0 %v288
        %v557 = vpop.f32.mrf.mxu0
        %v558 = vadd.f32 %v266, %v557
        %v559 = vpop.f32.mrf.mxu0
        %560 = vmatprep.mubr.f32.mxu0 0.0
        %561 = vmatmul.mubr.f32.gmra.mxu0 %v291
        %v562 = vpop.f32.mrf.mxu0
        %v563 = vadd.f32 %v266, %v562
        %v564 = vpop.f32.mrf.mxu0
        %565 = vmatprep.mubr.f32.mxu0 0.0
        %566 = vmatmul.mubr.f32.gmra.mxu0 %v294
        %v567 = vpop.f32.mrf.mxu0
        %v568 = vadd.f32 %v266, %v567
        %v569 = vpop.f32.mrf.mxu0
        %570 = vmatprep.mubr.f32.mxu0 0.0
        %571 = vmatmul.mubr.f32.gmra.mxu0 %v297
        %v572 = vpop.f32.mrf.mxu0
        %v573 = vadd.f32 %v266, %v572
        %v574 = vpop.f32.mrf.mxu0
        %575 = vmatprep.mubr.f32.mxu0 0.0
        %576 = vmatmul.mubr.f32.gmra.mxu0 %v300
        %v577 = vpop.f32.mrf.mxu0
        %v578 = vadd.f32 %v266, %v577
        %v579 = vpop.f32.mrf.mxu0
        %580 = vmatprep.mubr.f32.mxu0 0.0
        %581 = vmatmul.mubr.f32.gmra.mxu0 %v303
        %v582 = vpop.f32.mrf.mxu0
        %v583 = vadd.f32 %v266, %v582
        %v584 = vpop.f32.mrf.mxu0
        %585 = vmatprep.mubr.f32.mxu0 0.0
        %586 = vmatmul.mubr.f32.gmra.mxu0 %v306
        %v587 = vpop.f32.mrf.mxu0
        %v588 = vadd.f32 %v266, %v587
        %v589 = vpop.f32.mrf.mxu0
        %590 = vmatprep.mubr.f32.mxu0 0.0
        %591 = vmatmul.mubr.f32.gmra.mxu0 %v309
        %v592 = vpop.f32.mrf.mxu0
        %v593 = vadd.f32 %v266, %v592
        %v594 = vpop.f32.mrf.mxu0
        %595 = vmatprep.mubr.f32.mxu0 0.0
        %596 = vmatmul.mubr.f32.gmra.mxu0 %v312
        %v597 = vpop.f32.mrf.mxu0
        %v598 = vadd.f32 %v266, %v597
        %v599 = vpop.f32.mrf.mxu0
        %600 = vmatprep.mubr.f32.mxu0 0.0
        %601 = vmatmul.mubr.f32.gmra.mxu0 %v315
        %v602 = vpop.f32.mrf.mxu0
        %v603 = vadd.f32 %v266, %v602
        %v604 = vpop.f32.mrf.mxu0
        %605 = vmatprep.mubr.f32.mxu0 0.0
        %606 = vmatmul.mubr.f32.gmra.mxu0 %v318
        %v607 = vpop.f32.mrf.mxu0
        %v608 = vadd.f32 %v266, %v607
        %v609 = vpop.f32.mrf.mxu0
        %610 = vmatprep.mubr.f32.mxu0 0.0
        %611 = vmatmul.mubr.f32.gmra.mxu0 %v321
        %v612 = vpop.f32.mrf.mxu0
        %v613 = vadd.f32 %v266, %v612
        %v614 = vpop.f32.mrf.mxu0
        %615 = vmatprep.mubr.f32.mxu0 0.0
        %616 = vmatmul.mubr.f32.gmra.mxu0 %v324
        %v617 = vpop.f32.mrf.mxu0
        %v618 = vadd.f32 %v266, %v617
        %v619 = vpop.f32.mrf.mxu0
        %620 = vmatprep.mubr.f32.mxu0 0.0
        %621 = vmatmul.mubr.f32.gmra.mxu0 %v327
        %v622 = vpop.f32.mrf.mxu0
        %v623 = vadd.f32 %v266, %v622
        %v624 = vpop.f32.mrf.mxu0
        %625 = vmatprep.mubr.f32.mxu0 0.0
        %626 = vmatmul.mubr.f32.gmra.mxu0 %v330
        %v627 = vpop.f32.mrf.mxu0
        %v628 = vadd.f32 %v266, %v627
        %v629 = vpop.f32.mrf.mxu0
        %630 = vmatprep.mubr.f32.mxu0 0.0
        %631 = vmatmul.mubr.f32.gmra.mxu0 %v333
        %v632 = vpop.f32.mrf.mxu0
        %v633 = vadd.f32 %v266, %v632
        %v634 = vpop.f32.mrf.mxu0
        %635 = vmatprep.mubr.f32.mxu0 0.0
        %636 = vmatmul.mubr.f32.gmra.mxu0 %v336
        %v637 = vpop.f32.mrf.mxu0
        %v638 = vadd.f32 %v266, %v637
        %v639 = vpop.f32.mrf.mxu0
        %640 = vmatprep.mubr.f32.mxu0 0.0
        %641 = vmatmul.mubr.f32.gmra.mxu0 %v339
        %v642 = vpop.f32.mrf.mxu0
        %v643 = vadd.f32 %v266, %v642
        %v644 = vpop.f32.mrf.mxu0
        %645 = vmatprep.mubr.f32.mxu0 0.0
        %646 = vmatmul.mubr.f32.gmra.mxu0 %v342
        %v647 = vpop.f32.mrf.mxu0
        %v648 = vadd.f32 %v266, %v647
        %v649 = vpop.f32.mrf.mxu0
        %650 = vmatprep.mubr.f32.mxu0 0.0
        %651 = vmatmul.mubr.f32.gmra.mxu0 %v345
        %v652 = vpop.f32.mrf.mxu0
        %v653 = vadd.f32 %v266, %v652
        %v654 = vpop.f32.mrf.mxu0
        %655 = vmatprep.mubr.f32.mxu0 0.0
        %656 = vmatmul.mubr.f32.gmra.mxu0 %v348
        %v657 = vpop.f32.mrf.mxu0
        %v658 = vadd.f32 %v266, %v657
        %v659 = vpop.f32.mrf.mxu0
        %660 = vmatprep.mubr.f32.mxu0 0.0
        %661 = vmatmul.mubr.f32.gmra.mxu0 %v351
        %v662 = vpop.f32.mrf.mxu0
        %v663 = vadd.f32 %v266, %v662
        %v664 = vpop.f32.mrf.mxu0
        %665 = vmatprep.mubr.f32.mxu0 0.0
        %666 = vmatmul.mubr.f32.gmra.mxu0 %v354
        %v667 = vpop.f32.mrf.mxu0
        %v668 = vadd.f32 %v266, %v667
        %v669 = vpop.f32.mrf.mxu0
        %670 = vmatprep.mubr.f32.mxu0 0.0
        %671 = vmatmul.mubr.f32.gmra.mxu0 %v357
        %v672 = vpop.f32.mrf.mxu0
        %v673 = vadd.f32 %v266, %v672
        %v674 = vpop.f32.mrf.mxu0
        %675 = vmatprep.mubr.f32.mxu0 0.0
        %676 = vmatmul.mubr.f32.gmra.mxu0 %v360
        %v677 = vpop.f32.mrf.mxu0
        %v678 = vadd.f32 %v266, %v677
        %v679 = vpop.f32.mrf.mxu0
        %680 = vmatprep.mubr.f32.mxu0 0.0
        %681 = vmatmul.mubr.f32.gmra.mxu0 %v363
        %v682 = vpop.f32.mrf.mxu0
        %v683 = vadd.f32 %v266, %v682
        %v684 = vpop.f32.mrf.mxu0
        %685 = vmatprep.mubr.f32.mxu0 0.0
        %686 = vmatmul.mubr.f32.gmra.mxu0 %v366
        %v687 = vpop.f32.mrf.mxu0
        %v688 = vadd.f32 %v266, %v687
        %v689 = vpop.f32.mrf.mxu0
        %690 = vmatprep.mubr.f32.mxu0 0.0
        %691 = vmatmul.mubr.f32.gmra.mxu0 %v369
        %v692 = vpop.f32.mrf.mxu0
        %v693 = vadd.f32 %v266, %v692
        %v694 = vpop.f32.mrf.mxu0
        %695 = vmatprep.mubr.f32.mxu0 0.0
        %696 = vmatmul.mubr.f32.gmra.mxu0 %v372
        %v697 = vpop.f32.mrf.mxu0
        %v698 = vadd.f32 %v266, %v697
        %v699 = vpop.f32.mrf.mxu0
        %700 = vmatprep.mubr.f32.mxu0 0.0
        %701 = vmatmul.mubr.f32.gmra.mxu0 %v375
        %v702 = vpop.f32.mrf.mxu0
        %v703 = vadd.f32 %v266, %v702
        %v704 = vpop.f32.mrf.mxu0
        %705 = vmatprep.mubr.f32.mxu0 0.0
        %706 = vmatmul.mubr.f32.gmra.mxu0 %v378
        %v707 = vpop.f32.mrf.mxu0
        %v708 = vadd.f32 %v266, %v707
        %v709 = vpop.f32.mrf.mxu0
        %710 = vmatprep.mubr.f32.mxu0 0.0
        %711 = vmatmul.mubr.f32.gmra.mxu0 %v381
        %v712 = vpop.f32.mrf.mxu0
        %v713 = vadd.f32 %v266, %v712
        %v714 = vpop.f32.mrf.mxu0
        %715 = vmatprep.mubr.f32.mxu0 0.0
        %716 = vmatmul.mubr.f32.gmra.mxu0 %v384
        %v717 = vpop.f32.mrf.mxu0
        %v718 = vadd.f32 %v266, %v717
        %v719 = vpop.f32.mrf.mxu0
        %720 = vmatprep.mubr.f32.mxu0 0.0
        %721 = vmatmul.mubr.f32.gmra.mxu0 %v387
        %v722 = vpop.f32.mrf.mxu0
        %v723 = vadd.f32 %v266, %v722
        %v724 = vpop.f32.mrf.mxu0
        %725 = vmatprep.mubr.f32.mxu0 0.0
        %726 = vmatmul.mubr.f32.gmra.mxu0 %v390
        %v727 = vpop.f32.mrf.mxu0
        %v728 = vadd.f32 %v266, %v727
        %v729 = vpop.f32.mrf.mxu0
        %730 = vmatprep.mubr.f32.mxu0 0.0
        %731 = vmatmul.mubr.f32.gmra.mxu0 %v393
        %v732 = vpop.f32.mrf.mxu0
        %v733 = vadd.f32 %v266, %v732
        %v734 = vpop.f32.mrf.mxu0
        %735 = vmatprep.mubr.f32.mxu0 0.0
        %736 = vmatmul.mubr.f32.gmra.mxu0 %v396
        %v737 = vpop.f32.mrf.mxu0
        %v738 = vadd.f32 %v266, %v737
        %v739 = vpop.f32.mrf.mxu0
        %740 = vmatprep.mubr.f32.mxu0 0.0
        %741 = vmatmul.mubr.f32.gmra.mxu0 %v399
        %v742 = vpop.f32.mrf.mxu0
        %v743 = vadd.f32 %v266, %v742
        %v744 = vpop.f32.mrf.mxu0
        %745 = vmatprep.mubr.f32.mxu0 0.0
        %746 = vmatmul.mubr.f32.gmra.mxu0 %v402
        %v747 = vpop.f32.mrf.mxu0
        %v748 = vadd.f32 %v266, %v747
        %v749 = vpop.f32.mrf.mxu0
        %750 = vmatprep.mubr.f32.mxu0 0.0
        %751 = vmatmul.mubr.f32.gmra.mxu0 %v405
        %v752 = vpop.f32.mrf.mxu0
        %v753 = vadd.f32 %v266, %v752
        %v754 = vpop.f32.mrf.mxu0
        %755 = vmatprep.mubr.f32.mxu0 0.0
        %756 = vmatmul.mubr.f32.gmra.mxu0 %v408
        %v757 = vpop.f32.mrf.mxu0
        %v758 = vadd.f32 %v266, %v757
        %v759 = vpop.f32.mrf.mxu0
        %760 = vmatprep.mubr.f32.mxu0 0.0
        %761 = vmatmul.mubr.f32.gmra.mxu0 %v411
        %v762 = vpop.f32.mrf.mxu0
        %v763 = vadd.f32 %v266, %v762
        %v764 = vpop.f32.mrf.mxu0
        %765 = vmatprep.mubr.f32.mxu0 0.0
        %766 = vmatmul.mubr.f32.gmra.mxu0 %v414
        %v767 = vpop.f32.mrf.mxu0
        %v768 = vadd.f32 %v266, %v767
        %v769 = vpop.f32.mrf.mxu0
        %770 = vmatprep.mubr.f32.mxu0 0.0
        %771 = vmatmul.mubr.f32.gmra.mxu0 %v417
        %v772 = vpop.f32.mrf.mxu0
        %v773 = vadd.f32 %v266, %v772
        %v774 = vpop.f32.mrf.mxu0
        %775 = vmatprep.mubr.f32.mxu0 0.0
        %776 = vmatmul.mubr.f32.gmra.mxu0 %v420
        %v777 = vpop.f32.mrf.mxu0
        %v778 = vadd.f32 %v266, %v777
        %v779 = vpop.f32.mrf.mxu0
        %780 = vmatprep.mubr.f32.mxu0 0.0
        %781 = vmatmul.mubr.f32.gmra.mxu0 %v423
        %v782 = vpop.f32.mrf.mxu0
        %v783 = vadd.f32 %v266, %v782
        %v784 = vpop.f32.mrf.mxu0
        %785 = vmatprep.mubr.f32.mxu0 0.0
        %786 = vmatmul.mubr.f32.gmra.mxu0 %v426
        %v787 = vpop.f32.mrf.mxu0
        %v788 = vadd.f32 %v266, %v787
        %v789 = vpop.f32.mrf.mxu0
        %790 = vmatprep.mubr.f32.mxu0 0.0
        %791 = vmatmul.mubr.f32.gmra.mxu0 %v429
        %v792 = vpop.f32.mrf.mxu0
        %v793 = vadd.f32 %v266, %v792
        %v794 = vpop.f32.mrf.mxu0
        %795 = vmatprep.mubr.f32.mxu0 0.0
        %796 = vmatmul.mubr.f32.gmra.mxu0 %v432
        %v797 = vpop.f32.mrf.mxu0
        %v798 = vadd.f32 %v266, %v797
        %v799 = vpop.f32.mrf.mxu0
        %800 = vmatprep.mubr.f32.mxu0 0.0
        %801 = vmatmul.mubr.f32.gmra.mxu0 %v435
        %v802 = vpop.f32.mrf.mxu0
        %v803 = vadd.f32 %v266, %v802
        %v804 = vpop.f32.mrf.mxu0
        %805 = vmatprep.mubr.f32.mxu0 0.0
        %806 = vmatmul.mubr.f32.gmra.mxu0 %v438
        %v807 = vpop.f32.mrf.mxu0
        %v808 = vadd.f32 %v266, %v807
        %v809 = vpop.f32.mrf.mxu0
        %810 = vmatprep.mubr.f32.mxu0 0.0
        %811 = vmatmul.mubr.f32.gmra.mxu0 %v441
        %v812 = vpop.f32.mrf.mxu0
        %v813 = vadd.f32 %v266, %v812
        %v814 = vpop.f32.mrf.mxu0
        %815 = vmatprep.mubr.f32.mxu0 0.0
        %816 = vmatmul.mubr.f32.gmra.mxu0 %v444
        %v817 = vpop.f32.mrf.mxu0
        %v818 = vadd.f32 %v266, %v817
        %v819 = vpop.f32.mrf.mxu0
        %820 = vmatprep.mubr.f32.mxu0 0.0
        %821 = vmatmul.mubr.f32.gmra.mxu0 %v447
        %v822 = vpop.f32.mrf.mxu0
        %v823 = vadd.f32 %v266, %v822
        %v824 = vpop.f32.mrf.mxu0
        %825 = vmatprep.mubr.f32.mxu0 0.0
        %826 = vmatmul.mubr.f32.gmra.mxu0 %v450
        %v827 = vpop.f32.mrf.mxu0
        %v828 = vadd.f32 %v266, %v827
        %v829 = vpop.f32.mrf.mxu0
        %830 = vmatprep.mubr.f32.mxu0 0.0
        %831 = vmatmul.mubr.f32.gmra.mxu0 %v453
        %v832 = vpop.f32.mrf.mxu0
        %v833 = vadd.f32 %v266, %v832
        %v834 = vpop.f32.mrf.mxu0
        %835 = vmatprep.mubr.f32.mxu0 0.0
        %836 = vmatmul.mubr.f32.gmra.mxu0 %v456
        %v837 = vpop.f32.mrf.mxu0
        %v838 = vadd.f32 %v266, %v837
        %v839 = vpop.f32.mrf.mxu0
        %840 = vmatprep.mubr.f32.mxu0 0.0
        %841 = vmatmul.mubr.f32.gmra.mxu0 %v459
        %v842 = vpop.f32.mrf.mxu0
        %v843 = vadd.f32 %v266, %v842
        %v844 = vpop.f32.mrf.mxu0
        %845 = vdwg.mxu0
        %v846 = vmax.f32 %v528, 0.0
        %v847 = vmax.f32 %v533, 0.0
        %v848 = vmax.f32 %v538, 0.0
        %v849 = vmax.f32 %v543, 0.0
        %v850 = vmax.f32 %v548, 0.0
        %v851 = vmax.f32 %v553, 0.0
        %v852 = vmax.f32 %v558, 0.0
        %v853 = vmax.f32 %v563, 0.0
        %v854 = vmax.f32 %v568, 0.0
        %v855 = vmax.f32 %v573, 0.0
        %v856 = vmax.f32 %v578, 0.0
        %v857 = vmax.f32 %v583, 0.0
        %v858 = vmax.f32 %v588, 0.0
        %v859 = vmax.f32 %v593, 0.0
        %v860 = vmax.f32 %v598, 0.0
        %v861 = vmax.f32 %v603, 0.0
        %v862 = vmax.f32 %v608, 0.0
        %v863 = vmax.f32 %v613, 0.0
        %v864 = vmax.f32 %v618, 0.0
        %v865 = vmax.f32 %v623, 0.0
        %v866 = vmax.f32 %v628, 0.0
        %v867 = vmax.f32 %v633, 0.0
        %v868 = vmax.f32 %v638, 0.0
        %v869 = vmax.f32 %v643, 0.0
        %v870 = vmax.f32 %v648, 0.0
        %v871 = vmax.f32 %v653, 0.0
        %v872 = vmax.f32 %v658, 0.0
        %v873 = vmax.f32 %v663, 0.0
        %v874 = vmax.f32 %v668, 0.0
        %v875 = vmax.f32 %v673, 0.0
        %v876 = vmax.f32 %v678, 0.0
        %v877 = vmax.f32 %v683, 0.0
        %v878 = vmax.f32 %v688, 0.0
        %v879 = vmax.f32 %v693, 0.0
        %v880 = vmax.f32 %v698, 0.0
        %v881 = vmax.f32 %v703, 0.0
        %v882 = vmax.f32 %v708, 0.0
        %v883 = vmax.f32 %v713, 0.0
        %v884 = vmax.f32 %v718, 0.0
        %v885 = vmax.f32 %v723, 0.0
        %v886 = vmax.f32 %v728, 0.0
        %v887 = vmax.f32 %v733, 0.0
        %v888 = vmax.f32 %v738, 0.0
        %v889 = vmax.f32 %v743, 0.0
        %v890 = vmax.f32 %v748, 0.0
        %v891 = vmax.f32 %v753, 0.0
        %v892 = vmax.f32 %v758, 0.0
        %v893 = vmax.f32 %v763, 0.0
        %v894 = vmax.f32 %v768, 0.0
        %v895 = vmax.f32 %v773, 0.0
        %v896 = vmax.f32 %v778, 0.0
        %v897 = vmax.f32 %v783, 0.0
        %v898 = vmax.f32 %v788, 0.0
        %v899 = vmax.f32 %v793, 0.0
        %v900 = vmax.f32 %v798, 0.0
        %v901 = vmax.f32 %v803, 0.0
        %v902 = vmax.f32 %v808, 0.0
        %v903 = vmax.f32 %v813, 0.0
        %v904 = vmax.f32 %v818, 0.0
        %v905 = vmax.f32 %v823, 0.0
        %v906 = vmax.f32 %v828, 0.0
        %v907 = vmax.f32 %v833, 0.0
        %v908 = vmax.f32 %v838, 0.0
        %v909 = vmax.f32 %v843, 0.0
        %vm910 = vcmask 64512
        %911 = vst.msk [vmem:[%s191] sm:$0xff] %vm910, %v846
        %912 = vst.msk [vmem:[%s191 + $0x8] sm:$0xff] %vm910, %v847
        %913 = vst.msk [vmem:[%s191 + $0x10] sm:$0xff] %vm910, %v848
        %914 = vst.msk [vmem:[%s191 + $0x18] sm:$0xff] %vm910, %v849
        %915 = vst.msk [vmem:[%s191 + $0x20] sm:$0xff] %vm910, %v850
        %916 = vst.msk [vmem:[%s191 + $0x28] sm:$0xff] %vm910, %v851
        %917 = vst.msk [vmem:[%s191 + $0x30] sm:$0xff] %vm910, %v852
        %918 = vst.msk [vmem:[%s191 + $0x38] sm:$0xff] %vm910, %v853
        %919 = vst.msk [vmem:[%s191 + $0x40] sm:$0xff] %vm910, %v854
        %920 = vst.msk [vmem:[%s191 + $0x48] sm:$0xff] %vm910, %v855
        %921 = vst.msk [vmem:[%s191 + $0x50] sm:$0xff] %vm910, %v856
        %922 = vst.msk [vmem:[%s191 + $0x58] sm:$0xff] %vm910, %v857
        %923 = vst.msk [vmem:[%s191 + $0x60] sm:$0xff] %vm910, %v858
        %924 = vst.msk [vmem:[%s191 + $0x68] sm:$0xff] %vm910, %v859
        %925 = vst.msk [vmem:[%s191 + $0x70] sm:$0xff] %vm910, %v860
        %926 = vst.msk [vmem:[%s191 + $0x78] sm:$0xff] %vm910, %v861
        %927 = vst.msk [vmem:[%s191 + $0x80] sm:$0xff] %vm910, %v862
        %928 = vst.msk [vmem:[%s191 + $0x88] sm:$0xff] %vm910, %v863
        %929 = vst.msk [vmem:[%s191 + $0x90] sm:$0xff] %vm910, %v864
        %930 = vst.msk [vmem:[%s191 + $0x98] sm:$0xff] %vm910, %v865
        %931 = vst.msk [vmem:[%s191 + $0xa0] sm:$0xff] %vm910, %v866
        %932 = vst.msk [vmem:[%s191 + $0xa8] sm:$0xff] %vm910, %v867
        %933 = vst.msk [vmem:[%s191 + $0xb0] sm:$0xff] %vm910, %v868
        %934 = vst.msk [vmem:[%s191 + $0xb8] sm:$0xff] %vm910, %v869
        %935 = vst.msk [vmem:[%s191 + $0xc0] sm:$0xff] %vm910, %v870
        %936 = vst.msk [vmem:[%s191 + $0xc8] sm:$0xff] %vm910, %v871
        %937 = vst.msk [vmem:[%s191 + $0xd0] sm:$0xff] %vm910, %v872
        %938 = vst.msk [vmem:[%s191 + $0xd8] sm:$0xff] %vm910, %v873
        %939 = vst.msk [vmem:[%s191 + $0xe0] sm:$0xff] %vm910, %v874
        %940 = vst.msk [vmem:[%s191 + $0xe8] sm:$0xff] %vm910, %v875
        %941 = vst.msk [vmem:[%s191 + $0xf0] sm:$0xff] %vm910, %v876
        %942 = vst.msk [vmem:[%s191 + $0xf8] sm:$0xff] %vm910, %v877
        %943 = vst.msk [vmem:[%s191 + $0x100] sm:$0xff] %vm910, %v878
        %944 = vst.msk [vmem:[%s191 + $0x108] sm:$0xff] %vm910, %v879
        %945 = vst.msk [vmem:[%s191 + $0x110] sm:$0xff] %vm910, %v880
        %946 = vst.msk [vmem:[%s191 + $0x118] sm:$0xff] %vm910, %v881
        %947 = vst.msk [vmem:[%s191 + $0x120] sm:$0xff] %vm910, %v882
        %948 = vst.msk [vmem:[%s191 + $0x128] sm:$0xff] %vm910, %v883
        %949 = vst.msk [vmem:[%s191 + $0x130] sm:$0xff] %vm910, %v884
        %950 = vst.msk [vmem:[%s191 + $0x138] sm:$0xff] %vm910, %v885
        %951 = vst.msk [vmem:[%s191 + $0x140] sm:$0xff] %vm910, %v886
        %952 = vst.msk [vmem:[%s191 + $0x148] sm:$0xff] %vm910, %v887
        %953 = vst.msk [vmem:[%s191 + $0x150] sm:$0xff] %vm910, %v888
        %954 = vst.msk [vmem:[%s191 + $0x158] sm:$0xff] %vm910, %v889
        %955 = vst.msk [vmem:[%s191 + $0x160] sm:$0xff] %vm910, %v890
        %956 = vst.msk [vmem:[%s191 + $0x168] sm:$0xff] %vm910, %v891
        %957 = vst.msk [vmem:[%s191 + $0x170] sm:$0xff] %vm910, %v892
        %958 = vst.msk [vmem:[%s191 + $0x178] sm:$0xff] %vm910, %v893
        %959 = vst.msk [vmem:[%s191 + $0x180] sm:$0xff] %vm910, %v894
        %960 = vst.msk [vmem:[%s191 + $0x188] sm:$0xff] %vm910, %v895
        %961 = vst.msk [vmem:[%s191 + $0x190] sm:$0xff] %vm910, %v896
        %962 = vst.msk [vmem:[%s191 + $0x198] sm:$0xff] %vm910, %v897
        %963 = vst.msk [vmem:[%s191 + $0x1a0] sm:$0xff] %vm910, %v898
        %964 = vst.msk [vmem:[%s191 + $0x1a8] sm:$0xff] %vm910, %v899
        %965 = vst.msk [vmem:[%s191 + $0x1b0] sm:$0xff] %vm910, %v900
        %966 = vst.msk [vmem:[%s191 + $0x1b8] sm:$0xff] %vm910, %v901
        %967 = vst.msk [vmem:[%s191 + $0x1c0] sm:$0xff] %vm910, %v902
        %968 = vst.msk [vmem:[%s191 + $0x1c8] sm:$0xff] %vm910, %v903
        %969 = vst.msk [vmem:[%s191 + $0x1d0] sm:$0xff] %vm910, %v904
        %970 = vst.msk [vmem:[%s191 + $0x1d8] sm:$0xff] %vm910, %v905
        %971 = vst.msk [vmem:[%s191 + $0x1e0] sm:$0xff] %vm910, %v906
        %972 = vst.msk [vmem:[%s191 + $0x1e8] sm:$0xff] %vm910, %v907
        %973 = vst.msk [vmem:[%s191 + $0x1f0] sm:$0xff] %vm910, %v908
        %974 = vst.msk [vmem:[%s191 + $0x1f8] sm:$0xff] %vm910, %v909
        %s975 = smul.u32 64, %s17
        %p976 = scmp.lt.s32.totalorder %s975, 127
        %s977 = scalar_select %p976, %s975, 127
        %s978 = smul.addr %s977, 8
        %s979 = scalar_lea.vmem %s3, %s978
        // Predicated region
        $region37: #{bottleneck_forward.2} parent=31 // pred_check
          %p980 = pneg %p103
        $region38: #{bottleneck_forward.2} parent=31 // pred_check_branch
          %982 = sbr.rel (%p980) target = $region40
        $region39: #{bottleneck_forward.2} parent=31 // pred_region
          %s983 = smul.u32 64, %s17
        $region40: #{bottleneck_forward.2} parent=31 // pred_fallthru
          _
      $region32: #{bottleneck_forward.2} parent=5 // pred_fallthru
        _
      %p984 = scmp.le.s32.totalorder 2, %s12
      // Predicated region
      $region41: #{bottleneck_forward.2} parent=5 // pred_check
        %p985 = pneg %p984
      $region42: #{bottleneck_forward.2} parent=5 // pred_check_branch
        %987 = sbr.rel (%p985) target = $region44
      $region43: #{bottleneck_forward.2} parent=5 // pred_region
        %s988 = ssub.s32 %s12, 2
        // Predicated region
        $region45: #{bottleneck_forward.2} parent=43 // pred_check
          %p989 = pneg %p109
        $region46: #{bottleneck_forward.2} parent=43 // pred_check_branch
          %991 = sbr.rel (%p989) target = $region48
        $region47: #{bottleneck_forward.2} parent=43 // pred_region
          %s992 = smul.u32 64, %s18
          %p993 = scmp.lt.s32.totalorder %s992, 127
          %s994 = scalar_select %p993, %s992, 127
          %s995 = smul.addr %s994, 8
          %s996 = scalar_lea.vmem %s3, %s995
        $region48: #{bottleneck_forward.2} parent=43 // pred_fallthru
          _
      $region44: #{bottleneck_forward.2} parent=5 // pred_fallthru
        _
    $region6: #{bottleneck_forward.2} parent=1 // loop_footer
      %s16 = sadd.s32 1, %s12
    $region7: #{bottleneck_forward.2} parent=1 // loop_footer_branch
      %11 = sbr.rel target = $region3
    $region8: #{bottleneck_forward.2} parent=1 // loop_exit
      _
    %997 = vsyncpa [#allocation3], 1
    %s998 = scalar_lea.sflag [#allocation3], 1
    %999 = vsyncpa %s998, 1

// kernel: bottleneck_forward.3
$region0: #{bottleneck_forward.3}
  #allocation0 [shape = 'u32[]', space=smem, size = 0x4, offset = 0x4, fixed_abs, tag = 'smem constant byte address 0x4 - core index']
  #allocation1 [shape = 'u32[144,128]{1,0:T(1,128)}', space=vmem, size = 0x12000, scoped, tag = 'internal scratch']
  %s0 = inlined_call_operand.vmem [shape: f32[2,10,10,10,8], index: 0, kind: input, shape index: {}, may-alias: {0,1,2}]
  %s1 = inlined_call_operand.vmem [shape: f32[2,10,10,10,8], index: 1, kind: input, shape index: {}, may-alias: {0,1,2}]
  %s2 = inlined_call_operand.vmem [shape: f32[2,10,10,10,8], index: 2, kind: input, shape index: {}, may-alias: {0,1,2}]
  %s3 = inlined_call_operand.vmem [shape: f32[3,3,3,8,8], index: 3, kind: input, shape index: {}]
  %s4 = inlined_call_operand.vmem [shape: f32[1,8], index: 4, kind: input, shape index: {}]
  %s5 = inlined_call_operand.vmem [shape: f32[8,32], index: 5, kind: input, shape index: {}]
  %s6 = inlined_call_operand.vmem [shape: f32[1,32], index: 6, kind: input, shape index: {}]
  %s7 = inlined_call_operand.vmem [shape: f32[2,8,64,32], index: 7, kind: input, shape index: {}]
  %s8 = inlined_call_operand.hbm [shape: f32[2,8,64,32], index: 8, kind: output, shape index: {}]
  %s9 = sld [smem:[#allocation0]]
  $region65: #{bottleneck_forward.3} parent=0
    _
  %s11 = ssub.s32 1, %s9
  %s12 = scalar_select 0, %s11, %s9
  $region1: #{bottleneck_forward.3} parent=0
    #allocation2 [shape = 'u8[65536]{0}', space=vmem, size = 0x10000, scoped, tag = 'output window, operand 0']
    #allocation3 [shape = 's32[2]{0}', space=sflag, size = 0x8, scoped, tag = 'scoped memory for bottleneck_forward.3']
    %13 = vsyncpa [#allocation3], 0
    %s14 = scalar_lea.sflag [#allocation3], 1
    %15 = vsyncpa %s14, 0
    loop: start=0, step=1, limit=18
    $region2: #{bottleneck_forward.3} parent=1 // loop_pre_header
      _
    $region3: #{bottleneck_forward.3} parent=1 // loop_header
      %s17 = sphi 0, %s21
      %p18 = scmp.ge.s32.totalorder %s17, 18
      %s24 = sphi 0, %s36
      %s25 = sphi 0, %s32
      %s26 = sphi 0, %s24
      %s27 = sphi 0, %s25
      %s28 = sphi 0, %s26
      %s29 = sphi 0, %s27
      %s41 = sphi 0, %s43
      %s44 = sphi 0, %s41
      %s45 = sphi 0, %s44
      %s61 = sphi 0, %s45
      %s71 = sphi 0, %s73
      %s74 = sphi 0, %s71
      %s75 = sphi 0, %s74
      %s91 = sphi 0, %s75
      %s101 = sphi 0, %s103
      %s104 = sphi 0, %s101
      %s105 = sphi 0, %s104
      %s121 = sphi 0, %s105
      %s125 = sphi 0, %s125
      %s127 = sphi 0, %s125
      %s128 = sphi 0, %s127
      %s142 = sphi 0, %s128
      %s146 = sphi 0, %s146
      %s148 = sphi 0, %s146
      %s149 = sphi 0, %s148
      %s163 = sphi 0, %s149
      %s167 = sphi 0, %s167
      %s169 = sphi 0, %s167
      %s170 = sphi 0, %s169
      %s184 = sphi 0, %s170
      %s188 = sphi 0, %s188
      %s190 = sphi 0, %s188
      %s191 = sphi 0, %s190
      %s205 = sphi 0, %s191
      %s213 = sphi 0, %s215
      %s216 = sphi 0, %s213
      %s217 = sphi 0, %s216
      %s233 = sphi 0, %s217
      %s241 = sphi 0, %s243
      %s244 = sphi 0, %s241
      %s245 = sphi 0, %s244
      %s261 = sphi 0, %s245
    $region4: #{bottleneck_forward.3} parent=1 // loop_header_branch
      %20 = sbr.rel (%p18) target = $region8
    $region5: #{bottleneck_forward.3} parent=1 // loop_body
      %s22 = ssub.s32 %s17, 1
      %s23 = ssub.s32 %s17, 2
      %s30 = sadd.s32 1, %s25
      %p31 = scmp.ge.s32.totalorder %s30, 8
      %s32 = scalar_select %p31, 0, %s30
      %s33 = sadd.s32 1, %s24
      %s34 = scalar_select %p31, %s33, %s24
      %p35 = scmp.ge.s32.totalorder %s34, 2
      %s36 = scalar_select %p35, 0, %s34
      %s37 = ssub.s32 %s24, %s36
      %s38 = ssub.s32 %s25, %s32
      %s39 = sor.u32 %s37, %s38
      %p40 = scmp.eq.s32.totalorder %s39, 0
      %s42 = sadd.s32 %s41, 1
      %s43 = scalar_select %p40, %s41, %s42
      %p46 = pneg %p40
      %p47 = scmp.eq.s32.totalorder %s17, 15
      %p48 = por %p46, %p47
      %p49 = scmp.ne.s32.totalorder %s41, %s44
      %p50 = scmp.eq.s32.totalorder %s17, 0
      %p51 = por %p49, %p50
      %p52 = scmp.ne.s32.totalorder %s41, %s44
      %p53 = scmp.eq.s32.totalorder %s22, 15
      %p54 = por %p52, %p53
      %p55 = scmp.ne.s32.totalorder %s44, %s45
      %p56 = scmp.eq.s32.totalorder %s22, 0
      %p57 = por %p55, %p56
      %p58 = scmp.ne.s32.totalorder %s44, %s45
      %p59 = scmp.eq.s32.totalorder %s23, 15
      %p60 = por %p58, %p59
      %p62 = scmp.ne.s32.totalorder %s45, %s61
      %p63 = scmp.eq.s32.totalorder %s23, 0
      %p64 = por %p62, %p63
      %s65 = sadd.s32 %s25, 1
      %s66 = sadd.s32 %s32, 1
      %s67 = ssub.s32 %s24, %s36
      %s68 = ssub.s32 %s65, %s66
      %s69 = sor.u32 %s67, %s68
      %p70 = scmp.eq.s32.totalorder %s69, 0
      %s72 = sadd.s32 %s71, 1
      %s73 = scalar_select %p70, %s71, %s72
      %p76 = pneg %p70
      %p77 = scmp.eq.s32.totalorder %s17, 15
      %p78 = por %p76, %p77
      %p79 = scmp.ne.s32.totalorder %s71, %s74
      %p80 = scmp.eq.s32.totalorder %s17, 0
      %p81 = por %p79, %p80
      %p82 = scmp.ne.s32.totalorder %s71, %s74
      %p83 = scmp.eq.s32.totalorder %s22, 15
      %p84 = por %p82, %p83
      %p85 = scmp.ne.s32.totalorder %s74, %s75
      %p86 = scmp.eq.s32.totalorder %s22, 0
      %p87 = por %p85, %p86
      %p88 = scmp.ne.s32.totalorder %s74, %s75
      %p89 = scmp.eq.s32.totalorder %s23, 15
      %p90 = por %p88, %p89
      %p92 = scmp.ne.s32.totalorder %s75, %s91
      %p93 = scmp.eq.s32.totalorder %s23, 0
      %p94 = por %p92, %p93
      %s95 = sadd.s32 %s25, 2
      %s96 = sadd.s32 %s32, 2
      %s97 = ssub.s32 %s24, %s36
      %s98 = ssub.s32 %s95, %s96
      %s99 = sor.u32 %s97, %s98
      %p100 = scmp.eq.s32.totalorder %s99, 0
      %s102 = sadd.s32 %s101, 1
      %s103 = scalar_select %p100, %s101, %s102
      %p106 = pneg %p100
      %p107 = scmp.eq.s32.totalorder %s17, 15
      %p108 = por %p106, %p107
      %p109 = scmp.ne.s32.totalorder %s101, %s104
      %p110 = scmp.eq.s32.totalorder %s17, 0
      %p111 = por %p109, %p110
      %p112 = scmp.ne.s32.totalorder %s101, %s104
      %p113 = scmp.eq.s32.totalorder %s22, 15
      %p114 = por %p112, %p113
      %p115 = scmp.ne.s32.totalorder %s104, %s105
      %p116 = scmp.eq.s32.totalorder %s22, 0
      %p117 = por %p115, %p116
      %p118 = scmp.ne.s32.totalorder %s104, %s105
      %p119 = scmp.eq.s32.totalorder %s23, 15
      %p120 = por %p118, %p119
      %p122 = scmp.ne.s32.totalorder %s105, %s121
      %p123 = scmp.eq.s32.totalorder %s23, 0
      %p124 = por %p122, %p123
      %s126 = sadd.s32 %s125, 1
      %p129 = scmp.eq.s32.totalorder %s17, 15
      %p130 = scmp.ne.s32.totalorder %s125, %s127
      %p131 = scmp.eq.s32.totalorder %s17, 0
      %p132 = por %p130, %p131
      %p133 = scmp.ne.s32.totalorder %s125, %s127
      %p134 = scmp.eq.s32.totalorder %s22, 15
      %p135 = por %p133, %p134
      %p136 = scmp.ne.s32.totalorder %s127, %s128
      %p137 = scmp.eq.s32.totalorder %s22, 0
      %p138 = por %p136, %p137
      %p139 = scmp.ne.s32.totalorder %s127, %s128
      %p140 = scmp.eq.s32.totalorder %s23, 15
      %p141 = por %p139, %p140
      %p143 = scmp.ne.s32.totalorder %s128, %s142
      %p144 = scmp.eq.s32.totalorder %s23, 0
      %p145 = por %p143, %p144
      %s147 = sadd.s32 %s146, 1
      %p150 = scmp.eq.s32.totalorder %s17, 15
      %p151 = scmp.ne.s32.totalorder %s146, %s148
      %p152 = scmp.eq.s32.totalorder %s17, 0
      %p153 = por %p151, %p152
      %p154 = scmp.ne.s32.totalorder %s146, %s148
      %p155 = scmp.eq.s32.totalorder %s22, 15
      %p156 = por %p154, %p155
      %p157 = scmp.ne.s32.totalorder %s148, %s149
      %p158 = scmp.eq.s32.totalorder %s22, 0
      %p159 = por %p157, %p158
      %p160 = scmp.ne.s32.totalorder %s148, %s149
      %p161 = scmp.eq.s32.totalorder %s23, 15
      %p162 = por %p160, %p161
      %p164 = scmp.ne.s32.totalorder %s149, %s163
      %p165 = scmp.eq.s32.totalorder %s23, 0
      %p166 = por %p164, %p165
      %s168 = sadd.s32 %s167, 1
      %p171 = scmp.eq.s32.totalorder %s17, 15
      %p172 = scmp.ne.s32.totalorder %s167, %s169
      %p173 = scmp.eq.s32.totalorder %s17, 0
      %p174 = por %p172, %p173
      %p175 = scmp.ne.s32.totalorder %s167, %s169
      %p176 = scmp.eq.s32.totalorder %s22, 15
      %p177 = por %p175, %p176
      %p178 = scmp.ne.s32.totalorder %s169, %s170
      %p179 = scmp.eq.s32.totalorder %s22, 0
      %p180 = por %p178, %p179
      %p181 = scmp.ne.s32.totalorder %s169, %s170
      %p182 = scmp.eq.s32.totalorder %s23, 15
      %p183 = por %p181, %p182
      %p185 = scmp.ne.s32.totalorder %s170, %s184
      %p186 = scmp.eq.s32.totalorder %s23, 0
      %p187 = por %p185, %p186
      %s189 = sadd.s32 %s188, 1
      %p192 = scmp.eq.s32.totalorder %s17, 15
      %p193 = scmp.ne.s32.totalorder %s188, %s190
      %p194 = scmp.eq.s32.totalorder %s17, 0
      %p195 = por %p193, %p194
      %p196 = scmp.ne.s32.totalorder %s188, %s190
      %p197 = scmp.eq.s32.totalorder %s22, 15
      %p198 = por %p196, %p197
      %p199 = scmp.ne.s32.totalorder %s190, %s191
      %p200 = scmp.eq.s32.totalorder %s22, 0
      %p201 = por %p199, %p200
      %p202 = scmp.ne.s32.totalorder %s190, %s191
      %p203 = scmp.eq.s32.totalorder %s23, 15
      %p204 = por %p202, %p203
      %p206 = scmp.ne.s32.totalorder %s191, %s205
      %p207 = scmp.eq.s32.totalorder %s23, 0
      %p208 = por %p206, %p207
      %s209 = ssub.s32 %s24, %s36
      %s210 = ssub.s32 %s25, %s32
      %s211 = sor.u32 %s209, %s210
      %p212 = scmp.eq.s32.totalorder %s211, 0
      %s214 = sadd.s32 %s213, 1
      %s215 = scalar_select %p212, %s213, %s214
      %p218 = pneg %p212
      %p219 = scmp.eq.s32.totalorder %s17, 15
      %p220 = por %p218, %p219
      %p221 = scmp.ne.s32.totalorder %s213, %s216
      %p222 = scmp.eq.s32.totalorder %s17, 0
      %p223 = por %p221, %p222
      %p224 = scmp.ne.s32.totalorder %s213, %s216
      %p225 = scmp.eq.s32.totalorder %s22, 15
      %p226 = por %p224, %p225
      %p227 = scmp.ne.s32.totalorder %s216, %s217
      %p228 = scmp.eq.s32.totalorder %s22, 0
      %p229 = por %p227, %p228
      %p230 = scmp.ne.s32.totalorder %s216, %s217
      %p231 = scmp.eq.s32.totalorder %s23, 15
      %p232 = por %p230, %p231
      %p234 = scmp.ne.s32.totalorder %s217, %s233
      %p235 = scmp.eq.s32.totalorder %s23, 0
      %p236 = por %p234, %p235
      %s237 = ssub.s32 %s24, %s36
      %s238 = ssub.s32 %s25, %s32
      %s239 = sor.u32 %s237, %s238
      %p240 = scmp.eq.s32.totalorder %s239, 0
      %s242 = sadd.s32 %s241, 1
      %s243 = scalar_select %p240, %s241, %s242
      %p246 = pneg %p240
      %p247 = scmp.eq.s32.totalorder %s17, 15
      %p248 = por %p246, %p247
      %p249 = scmp.ne.s32.totalorder %s241, %s244
      %p250 = scmp.eq.s32.totalorder %s17, 0
      %p251 = por %p249, %p250
      %p252 = scmp.ne.s32.totalorder %s241, %s244
      %p253 = scmp.eq.s32.totalorder %s22, 15
      %p254 = por %p252, %p253
      %p255 = scmp.ne.s32.totalorder %s244, %s245
      %p256 = scmp.eq.s32.totalorder %s22, 0
      %p257 = por %p255, %p256
      %p258 = scmp.ne.s32.totalorder %s244, %s245
      %p259 = scmp.eq.s32.totalorder %s23, 15
      %p260 = por %p258, %p259
      %p262 = scmp.ne.s32.totalorder %s245, %s261
      %p263 = scmp.eq.s32.totalorder %s23, 0
      %p264 = por %p262, %p263
      %p265 = scmp.le.s32.totalorder 1, %s17
      %p266 = scmp.lt.s32.totalorder %s17, 17
      %p267 = pnand %p265, %p266
      %p268 = pneg %p267
      // Predicated region
      $region9: #{bottleneck_forward.3} parent=5 // pred_check
        _
      $region10: #{bottleneck_forward.3} parent=5 // pred_check_branch
        %270 = sbr.rel (%p267) target = $region12
      $region11: #{bottleneck_forward.3} parent=5 // pred_region
        %s271 = ssub.s32 %s17, 1
        // Predicated region
        $region13: #{bottleneck_forward.3} parent=11 // pred_check
          %p272 = pneg %p138
        $region14: #{bottleneck_forward.3} parent=11 // pred_check_branch
          %274 = sbr.rel (%p272) target = $region16
        $region15: #{bottleneck_forward.3} parent=11 // pred_region
          _
        $region16: #{bottleneck_forward.3} parent=11 // pred_fallthru
          _
        // Predicated region
        $region17: #{bottleneck_forward.3} parent=11 // pred_check
          %p275 = pneg %p159
        $region18: #{bottleneck_forward.3} parent=11 // pred_check_branch
          %277 = sbr.rel (%p275) target = $region20
        $region19: #{bottleneck_forward.3} parent=11 // pred_region
          _
        $region20: #{bottleneck_forward.3} parent=11 // pred_fallthru
          _
        // Predicated region
        $region21: #{bottleneck_forward.3} parent=11 // pred_check
          %p278 = pneg %p180
        $region22: #{bottleneck_forward.3} parent=11 // pred_check_branch
          %280 = sbr.rel (%p278) target = $region24
        $region23: #{bottleneck_forward.3} parent=11 // pred_region
          _
        $region24: #{bottleneck_forward.3} parent=11 // pred_fallthru
          _
        // Predicated region
        $region25: #{bottleneck_forward.3} parent=11 // pred_check
          %p281 = pneg %p201
        $region26: #{bottleneck_forward.3} parent=11 // pred_check_branch
          %283 = sbr.rel (%p281) target = $region28
        $region27: #{bottleneck_forward.3} parent=11 // pred_region
          _
        $region28: #{bottleneck_forward.3} parent=11 // pred_fallthru
          _
      $region12: #{bottleneck_forward.3} parent=5 // pred_fallthru
        _
      %p284 = scmp.lt.s32.totalorder %s17, 16
      // Predicated region
      $region29: #{bottleneck_forward.3} parent=5 // pred_check
        %p285 = pneg %p284
      $region30: #{bottleneck_forward.3} parent=5 // pred_check_branch
        %287 = sbr.rel (%p285) target = $region32
      $region31: #{bottleneck_forward.3} parent=5 // pred_region
        // Predicated region
        $region33: #{bottleneck_forward.3} parent=31 // pred_check
          %p288 = pneg %p51
        $region34: #{bottleneck_forward.3} parent=31 // pred_check_branch
          %290 = sbr.rel (%p288) target = $region36
        $region35: #{bottleneck_forward.3} parent=31 // pred_region
          %p291 = scmp.lt.s32.totalorder %s24, 1
          %s292 = scalar_select %p291, %s24, 1
          %p293 = scmp.lt.s32.totalorder %s25, 9
          %s294 = scalar_select %p293, %s25, 9
          %s295 = smul.addr %s294, 20
          %s296 = smul.addr %s292, 200
          %s297 = sadd.s32 %s295, %s296
          %s298 = smul.addr %s297, 8
          %s299 = scalar_lea.vmem %s0, %s298
        $region36: #{bottleneck_forward.3} parent=31 // pred_fallthru
          _
        // Predicated region
        $region37: #{bottleneck_forward.3} parent=31 // pred_check
          %p300 = pneg %p81
        $region38: #{bottleneck_forward.3} parent=31 // pred_check_branch
          %302 = sbr.rel (%p300) target = $region40
        $region39: #{bottleneck_forward.3} parent=31 // pred_region
          %s303 = sadd.s32 %s25, 1
          %p304 = scmp.lt.s32.totalorder %s24, 1
          %s305 = scalar_select %p304, %s24, 1
          %p306 = scmp.lt.s32.totalorder %s303, 9
          %s307 = scalar_select %p306, %s303, 9
          %s308 = smul.addr %s307, 20
          %s309 = smul.addr %s305, 200
          %s310 = sadd.s32 %s308, %s309
          %s311 = smul.addr %s310, 8
          %s312 = scalar_lea.vmem %s1, %s311
          %s313 = sadd.s32 %s25, 1
        $region40: #{bottleneck_forward.3} parent=31 // pred_fallthru
          _
        // Predicated region
        $region41: #{bottleneck_forward.3} parent=31 // pred_check
          %p314 = pneg %p111
        $region42: #{bottleneck_forward.3} parent=31 // pred_check_branch
          %316 = sbr.rel (%p314) target = $region44
        $region43: #{bottleneck_forward.3} parent=31 // pred_region
          %s317 = sadd.s32 %s25, 2
          %p318 = scmp.lt.s32.totalorder %s24, 1
          %s319 = scalar_select %p318, %s24, 1
          %p320 = scmp.lt.s32.totalorder %s317, 9
          %s321 = scalar_select %p320, %s317, 9
          %s322 = smul.addr %s321, 20
          %s323 = smul.addr %s319, 200
          %s324 = sadd.s32 %s322, %s323
          %s325 = smul.addr %s324, 8
          %s326 = scalar_lea.vmem %s2, %s325
          %s327 = sadd.s32 %s25, 2
        $region44: #{bottleneck_forward.3} parent=31 // pred_fallthru
          _
        // Predicated region
        $region45: #{bottleneck_forward.3} parent=31 // pred_check
          %p328 = pneg %p223
        $region46: #{bottleneck_forward.3} parent=31 // pred_check_branch
          %330 = sbr.rel (%p328) target = $region48
        $region47: #{bottleneck_forward.3} parent=31 // pred_region
          %p331 = scmp.lt.s32.totalorder %s24, 1
          %s332 = scalar_select %p331, %s24, 1
          %p333 = scmp.lt.s32.totalorder %s25, 7
          %s334 = scalar_select %p333, %s25, 7
          %s335 = smul.addr %s334, 8
          %s336 = smul.addr %s332, 64
          %s337 = sadd.s32 %s335, %s336
          %s338 = smul.addr %s337, 8
          %s339 = scalar_lea.vmem %s7, %s338
        $region48: #{bottleneck_forward.3} parent=31 // pred_fallthru
          _
      $region32: #{bottleneck_forward.3} parent=5 // pred_fallthru
        _
      %p340 = scmp.le.s32.totalorder 1, %s17
      %p341 = scmp.lt.s32.totalorder %s17, 17
      %p342 = pnand %p340, %p341
      %p343 = pneg %p342
      // Predicated region
      $region49: #{bottleneck_forward.3} parent=5 // pred_check
        _
      $region50: #{bottleneck_forward.3} parent=5 // pred_check_branch
        %345 = sbr.rel (%p342) target = $region52
      $region51: #{bottleneck_forward.3} parent=5 // pred_region
        %s346 = ssub.s32 %s17, 1
        %p347 = scmp.lt.s32.totalorder %s26, 1
        %s348 = scalar_select %p347, %s26, 1
        %p349 = scmp.lt.s32.totalorder %s27, 9
        %s350 = scalar_select %p349, %s27, 9
        %s351 = smul.addr %s350, 20
        %s352 = smul.addr %s348, 200
        %s353 = sadd.s32 %s351, %s352
        %s354 = smul.addr %s353, 8
        %s355 = scalar_lea.vmem %s0, %s354
        %p356 = pneg %p57
        %p357 = pneg %p54
        %s358 = sadd.s32 %s27, 1
        %p359 = scmp.lt.s32.totalorder %s26, 1
        %s360 = scalar_select %p359, %s26, 1
        %p361 = scmp.lt.s32.totalorder %s358, 9
        %s362 = scalar_select %p361, %s358, 9
        %s363 = smul.addr %s362, 20
        %s364 = smul.addr %s360, 200
        %s365 = sadd.s32 %s363, %s364
        %s366 = smul.addr %s365, 8
        %s367 = scalar_lea.vmem %s1, %s366
        %p368 = pneg %p87
        %p369 = pneg %p84
        %s370 = sadd.s32 %s27, 2
        %p371 = scmp.lt.s32.totalorder %s26, 1
        %s372 = scalar_select %p371, %s26, 1
        %p373 = scmp.lt.s32.totalorder %s370, 9
        %s374 = scalar_select %p373, %s370, 9
        %s375 = smul.addr %s374, 20
        %s376 = smul.addr %s372, 200
        %s377 = sadd.s32 %s375, %s376
        %s378 = smul.addr %s377, 8
        %s379 = scalar_lea.vmem %s2, %s378
        %p380 = pneg %p117
        %p381 = pneg %p114
        %p382 = pneg %p138
        %p383 = pneg %p135
        %p384 = pneg %p159
        %p385 = pneg %p156
        %p386 = pneg %p180
        %p387 = pneg %p177
        %p388 = pneg %p201
        %p389 = pneg %p198
        %p390 = scmp.lt.s32.totalorder %s26, 1
        %s391 = scalar_select %p390, %s26, 1
        %p392 = scmp.lt.s32.totalorder %s27, 7
        %s393 = scalar_select %p392, %s27, 7
        %s394 = smul.addr %s393, 8
        %s395 = smul.addr %s391, 64
        %s396 = sadd.s32 %s394, %s395
        %s397 = smul.addr %s396, 8
        %s398 = scalar_lea.vmem %s7, %s397
        %p399 = pneg %p229
        %p400 = pneg %p226
        %p401 = pneg %p257
        %p402 = pneg %p254
        %s403 = sand.u32 %s244, 1
        %s404 = scalar_lea.sflag [#allocation3], %s403
        %s405 = sand.u32 %s244, 1
        %s406 = smul.addr %s405, 64
        %s407 = scalar_lea.vmem [#allocation2], %s406
        %p408 = scmp.lt.s32.totalorder %s26, 1
        %s409 = scalar_select %p408, %s26, 1
        %p410 = scmp.lt.s32.totalorder %s27, 9
        %s411 = scalar_select %p410, %s27, 9
        %s412 = smul.addr %s411, 20
        %s413 = smul.addr %s409, 200
        %s414 = sadd.s32 %s412, %s413
        %s415 = smul.addr %s414, 8
        %s416 = scalar_lea.vmem %s0, %s415
        %s417 = sadd.s32 %s27, 1
        %p418 = scmp.lt.s32.totalorder %s26, 1
        %s419 = scalar_select %p418, %s26, 1
        %p420 = scmp.lt.s32.totalorder %s417, 9
        %s421 = scalar_select %p420, %s417, 9
        %s422 = smul.addr %s421, 20
        %s423 = smul.addr %s419, 200
        %s424 = sadd.s32 %s422, %s423
        %s425 = smul.addr %s424, 8
        %s426 = scalar_lea.vmem %s1, %s425
        %s427 = sadd.s32 %s27, 1
        %s428 = sadd.s32 %s27, 2
        %p429 = scmp.lt.s32.totalorder %s26, 1
        %s430 = scalar_select %p429, %s26, 1
        %p431 = scmp.lt.s32.totalorder %s428, 9
        %s432 = scalar_select %p431, %s428, 9
        %s433 = smul.addr %s432, 20
        %s434 = smul.addr %s430, 200
        %s435 = sadd.s32 %s433, %s434
        %s436 = smul.addr %s435, 8
        %s437 = scalar_lea.vmem %s2, %s436
        %s438 = sadd.s32 %s27, 2
        %p439 = scmp.lt.s32.totalorder %s26, 1
        %s440 = scalar_select %p439, %s26, 1
        %p441 = scmp.lt.s32.totalorder %s27, 7
        %s442 = scalar_select %p441, %s27, 7
        %s443 = smul.addr %s442, 8
        %s444 = smul.addr %s440, 64
        %s445 = sadd.s32 %s443, %s444
        %s446 = smul.addr %s445, 8
        %s447 = scalar_lea.vmem %s7, %s446
        %v448 = vld [vmem:[%s416] sm:$0xff]
        %v449 = vld [vmem:[%s416 + $0x10] sm:$0xff]
        %v450 = vld [vmem:[%s416 + $0x20] sm:$0xff]
        %v451 = vld [vmem:[%s416 + $0x30] sm:$0xff]
        %v452 = vld [vmem:[%s416 + $0x40] sm:$0xff]
        %v453 = vld [vmem:[%s416 + $0x50] sm:$0xff]
        %v454 = vld [vmem:[%s416 + $0x60] sm:$0xff]
        %v455 = vld [vmem:[%s416 + $0x70] sm:$0xff]
        %v456 = vld [vmem:[%s3] sm:$0xff]
        %v457 = vld [vmem:[%s416 + $0x1] sm:$0xff]
        %v458 = vld [vmem:[%s416 + $0x11] sm:$0xff]
        %v459 = vld [vmem:[%s416 + $0x21] sm:$0xff]
        %v460 = vld [vmem:[%s416 + $0x31] sm:$0xff]
        %v461 = vld [vmem:[%s416 + $0x41] sm:$0xff]
        %v462 = vld [vmem:[%s416 + $0x51] sm:$0xff]
        %v463 = vld [vmem:[%s416 + $0x61] sm:$0xff]
        %v464 = vld [vmem:[%s416 + $0x71] sm:$0xff]
        %s465 = scalar_lea.vmem %s3, 8
        %v466 = vld [vmem:[%s465] sm:$0xff]
        %vm467 = vcmask 64512
        %v469 = vsel %vm467, %v457, 0
        %v472 = vsel %vm467, %v458, 0
        %v475 = vsel %vm467, %v459, 0
        %v478 = vsel %vm467, %v460, 0
        %v481 = vsel %vm467, %v461, 0
        %v484 = vsel %vm467, %v462, 0
        %v487 = vsel %vm467, %v463, 0
        %v490 = vsel %vm467, %v464, 0
        %492 = vmatprep.subr.mxu0 0.0
        %493 = vmatpush1.msra.mxu0 0.0
        %494 = vmatprep.subr.mxu0 0.0
        %495 = vmatpush1.msra.mxu0 0.0
        %496 = vmatprep.subr.mxu0 0.0
        %497 = vmatpush1.msra.mxu0 0.0
        %498 = vmatprep.subr.mxu0 0.0
        %499 = vmatpush1.msra.mxu0 0.0
        %500 = vmatprep.subr.mxu0 0.0
        %501 = vmatpush1.msra.mxu0 0.0
        %502 = vmatprep.subr.mxu0 0.0
        %503 = vmatpush1.msra.mxu0 0.0
        %504 = vmatprep.subr.mxu0 0.0
        %505 = vmatpush1.msra.mxu0 0.0
        %506 = vmatprep.subr.mxu0 0.0
        %507 = vmatpush1.msra.mxu0 0.0
        %508 = vmatprep.subr.mxu0 0.0
        %509 = vmatpush1.msra.mxu0 0.0
        %510 = vmatprep.subr.mxu0 0.0
        %511 = vmatpush1.msra.mxu0 0.0
        %512 = vmatprep.subr.mxu0 0.0
        %513 = vmatpush1.msra.mxu0 0.0
        %514 = vmatprep.subr.mxu0 0.0
        %515 = vmatpush1.msra.mxu0 0.0
        %516 = vmatprep.subr.mxu0 0.0
        %517 = vmatpush1.msra.mxu0 0.0
        %518 = vmatprep.subr.mxu0 0.0
        %519 = vmatpush1.msra.mxu0 0.0
        %520 = vmatprep.subr.mxu0 0.0
        %521 = vmatpush1.msra.mxu0 0.0
        %522 = vmatprep.subr.mxu0 0.0
        %523 = vmatpush1.msra.mxu0 %v466
        %524 = vmatprep.subr.mxu0 0.0
        %525 = vmatpush2.msra.mxu0 0.0
        %526 = vmatprep.subr.mxu0 0.0
        %527 = vmatpush2.msra.mxu0 0.0
        %528 = vmatprep.subr.mxu0 0.0
        %529 = vmatpush2.msra.mxu0 0.0
        %530 = vmatprep.subr.mxu0 0.0
        %531 = vmatpush2.msra.mxu0 0.0
        %532 = vmatprep.subr.mxu0 0.0
        %533 = vmatpush2.msra.mxu0 0.0
        %534 = vmatprep.subr.mxu0 0.0
        %535 = vmatpush2.msra.mxu0 0.0
        %536 = vmatprep.subr.mxu0 0.0
        %537 = vmatpush2.msra.mxu0 0.0
        %538 = vmatprep.subr.mxu0 0.0
        %539 = vmatpush2.msra.mxu0 0.0
        %540 = vmatprep.subr.mxu0 0.0
        %541 = vmatpush2.msra.mxu0 0.0
        %542 = vmatprep.subr.mxu0 0.0
        %543 = vmatpush2.msra.mxu0 0.0
        %544 = vmatprep.subr.mxu0 0.0
        %545 = vmatpush2.msra.mxu0 0.0
        %546 = vmatprep.subr.mxu0 0.0
        %547 = vmatpush2.msra.mxu0 0.0
        %548 = vmatprep.subr.mxu0 0.0
        %549 = vmatpush2.msra.mxu0 0.0
        %550 = vmatprep.subr.mxu0 0.0
        %551 = vmatpush2.msra.mxu0 0.0
        %552 = vmatprep.subr.mxu0 0.0
        %553 = vmatpush2.msra.mxu0 0.0
        %554 = vmatprep.subr.mxu0 0.0
        %555 = vmatpush2.msra.mxu0 0.0
        %556 = vmatprep.mubr.f32.mxu0 0.0
        %557 = vmatmul.mubr.f32.gmra.mxu0 %v469
        %v558 = vpop.f32.mrf.mxu0
        %v559 = vadd.f32 0.0, %v558
        %v560 = vpop.f32.mrf.mxu0
        %561 = vmatprep.mubr.f32.mxu0 0.0
        %562 = vmatmul.mubr.f32.gmra.mxu0 %v472
        %v563 = vpop.f32.mrf.mxu0
        %v564 = vadd.f32 0.0, %v563
        %v565 = vpop.f32.mrf.mxu0
        %566 = vmatprep.mubr.f32.mxu0 0.0
        %567 = vmatmul.mubr.f32.gmra.mxu0 %v475
        %v568 = vpop.f32.mrf.mxu0
        %v569 = vadd.f32 0.0, %v568
        %v570 = vpop.f32.mrf.mxu0
        %571 = vmatprep.mubr.f32.mxu0 0.0
        %572 = vmatmul.mubr.f32.gmra.mxu0 %v478
        %v573 = vpop.f32.mrf.mxu0
        %v574 = vadd.f32 0.0, %v573
        %v575 = vpop.f32.mrf.mxu0
        %576 = vmatprep.mubr.f32.mxu0 0.0
        %577 = vmatmul.mubr.f32.gmra.mxu0 %v481
        %v578 = vpop.f32.mrf.mxu0
        %v579 = vadd.f32 0.0, %v578
        %v580 = vpop.f32.mrf.mxu0
        %581 = vmatprep.mubr.f32.mxu0 0.0
        %582 = vmatmul.mubr.f32.gmra.mxu0 %v484
        %v583 = vpop.f32.mrf.mxu0
        %v584 = vadd.f32 0.0, %v583
        %v585 = vpop.f32.mrf.mxu0
        %586 = vmatprep.mubr.f32.mxu0 0.0
        %587 = vmatmul.mubr.f32.gmra.mxu0 %v487
        %v588 = vpop.f32.mrf.mxu0
        %v589 = vadd.f32 0.0, %v588
        %v590 = vpop.f32.mrf.mxu0
        %591 = vmatprep.mubr.f32.mxu0 0.0
        %592 = vmatmul.mubr.f32.gmra.mxu0 %v490
        %v593 = vpop.f32.mrf.mxu0
        %v594 = vadd.f32 0.0, %v593
        %v595 = vpop.f32.mrf.mxu0
        %596 = vdwg.mxu0
        %v598 = vsel %vm467, %v448, 0
        %v601 = vsel %vm467, %v449, 0
        %v604 = vsel %vm467, %v450, 0
        %v607 = vsel %vm467, %v451, 0
        %v610 = vsel %vm467, %v452, 0
        %v613 = vsel %vm467, %v453, 0
        %v616 = vsel %vm467, %v454, 0
        %v619 = vsel %vm467, %v455, 0
        %621 = vmatprep.subr.mxu0 0.0
        %622 = vmatpush1.msra.mxu0 0.0
        %623 = vmatprep.subr.mxu0 0.0
        %624 = vmatpush1.msra.mxu0 0.0
        %625 = vmatprep.subr.mxu0 0.0
        %626 = vmatpush1.msra.mxu0 0.0
        %627 = vmatprep.subr.mxu0 0.0
        %628 = vmatpush1.msra.mxu0 0.0
        %629 = vmatprep.subr.mxu0 0.0
        %630 = vmatpush1.msra.mxu0 0.0
        %631 = vmatprep.subr.mxu0 0.0
        %632 = vmatpush1.msra.mxu0 0.0
        %633 = vmatprep.subr.mxu0 0.0
        %634 = vmatpush1.msra.mxu0 0.0
        %635 = vmatprep.subr.mxu0 0.0
        %636 = vmatpush1.msra.mxu0 0.0
        %637 = vmatprep.subr.mxu0 0.0
        %638 = vmatpush1.msra.mxu0 0.0
        %639 = vmatprep.subr.mxu0 0.0
        %640 = vmatpush1.msra.mxu0 0.0
        %641 = vmatprep.subr.mxu0 0.0
        %642 = vmatpush1.msra.mxu0 0.0
        %643 = vmatprep.subr.mxu0 0.0
        %644 = vmatpush1.msra.mxu0 0.0
        %645 = vmatprep.subr.mxu0 0.0
        %646 = vmatpush1.msra.mxu0 0.0
        %647 = vmatprep.subr.mxu0 0.0
        %648 = vmatpush1.msra.mxu0 0.0
        %649 = vmatprep.subr.mxu0 0.0
        %650 = vmatpush1.msra.mxu0 0.0
        %651 = vmatprep.subr.mxu0 0.0
        %652 = vmatpush1.msra.mxu0 %v456
        %653 = vmatprep.subr.mxu0 0.0
        %654 = vmatpush2.msra.mxu0 0.0
        %655 = vmatprep.subr.mxu0 0.0
        %656 = vmatpush2.msra.mxu0 0.0
        %657 = vmatprep.subr.mxu0 0.0
        %658 = vmatpush2.msra.mxu0 0.0
        %659 = vmatprep.subr.mxu0 0.0
        %660 = vmatpush2.msra.mxu0 0.0
        %661 = vmatprep.subr.mxu0 0.0
        %662 = vmatpush2.msra.mxu0 0.0
        %663 = vmatprep.subr.mxu0 0.0
        %664 = vmatpush2.msra.mxu0 0.0
        %665 = vmatprep.subr.mxu0 0.0
        %666 = vmatpush2.msra.mxu0 0.0
        %667 = vmatprep.subr.mxu0 0.0
        %668 = vmatpush2.msra.mxu0 0.0
        %669 = vmatprep.subr.mxu0 0.0
        %670 = vmatpush2.msra.mxu0 0.0
        %671 = vmatprep.subr.mxu0 0.0
        %672 = vmatpush2.msra.mxu0 0.0
        %673 = vmatprep.subr.mxu0 0.0
        %674 = vmatpush2.msra.mxu0 0.0
        %675 = vmatprep.subr.mxu0 0.0
        %676 = vmatpush2.msra.mxu0 0.0
        %677 = vmatprep.subr.mxu0 0.0
        %678 = vmatpush2.msra.mxu0 0.0
        %679 = vmatprep.subr.mxu0 0.0
        %680 = vmatpush2.msra.mxu0 0.0
        %681 = vmatprep.subr.mxu0 0.0
        %682 = vmatpush2.msra.mxu0 0.0
        %683 = vmatprep.subr.mxu0 0.0
        %684 = vmatpush2.msra.mxu0 0.0
        %685 = vmatprep.mubr.f32.mxu0 0.0
        %686 = vmatmul.mubr.f32.gmra.mxu0 %v598
        %v687 = vpop.f32.mrf.mxu0
        %v688 = vadd.f32 %v559, %v687
        %v689 = vpop.f32.mrf.mxu0
        %690 = vmatprep.mubr.f32.mxu0 0.0
        %691 = vmatmul.mubr.f32.gmra.mxu0 %v601
        %v692 = vpop.f32.mrf.mxu0
        %v693 = vadd.f32 %v564, %v692
        %v694 = vpop.f32.mrf.mxu0
        %695 = vmatprep.mubr.f32.mxu0 0.0
        %696 = vmatmul.mubr.f32.gmra.mxu0 %v604
        %v697 = vpop.f32.mrf.mxu0
        %v698 = vadd.f32 %v569, %v697
        %v699 = vpop.f32.mrf.mxu0
        %700 = vmatprep.mubr.f32.mxu0 0.0
        %701 = vmatmul.mubr.f32.gmra.mxu0 %v607
        %v702 = vpop.f32.mrf.mxu0
        %v703 = vadd.f32 %v574, %v702
        %v704 = vpop.f32.mrf.mxu0
        %705 = vmatprep.mubr.f32.mxu0 0.0
        %706 = vmatmul.mubr.f32.gmra.mxu0 %v610
        %v707 = vpop.f32.mrf.mxu0
        %v708 = vadd.f32 %v579, %v707
        %v709 = vpop.f32.mrf.mxu0
        %710 = vmatprep.mubr.f32.mxu0 0.0
        %711 = vmatmul.mubr.f32.gmra.mxu0 %v613
        %v712 = vpop.f32.mrf.mxu0
        %v713 = vadd.f32 %v584, %v712
        %v714 = vpop.f32.mrf.mxu0
        %715 = vmatprep.mubr.f32.mxu0 0.0
        %716 = vmatmul.mubr.f32.gmra.mxu0 %v616
        %v717 = vpop.f32.mrf.mxu0
        %v718 = vadd.f32 %v589, %v717
        %v719 = vpop.f32.mrf.mxu0
        %720 = vmatprep.mubr.f32.mxu0 0.0
        %721 = vmatmul.mubr.f32.gmra.mxu0 %v619
        %v722 = vpop.f32.mrf.mxu0
        %v723 = vadd.f32 %v594, %v722
        %v724 = vpop.f32.mrf.mxu0
        %725 = vdwg.mxu0
        %v726 = vld [vmem:[%s416 + $0x2] sm:$0xff]
        %v727 = vld [vmem:[%s416 + $0x12] sm:$0xff]
        %v728 = vld [vmem:[%s416 + $0x22] sm:$0xff]
        %v729 = vld [vmem:[%s416 + $0x32] sm:$0xff]
        %v730 = vld [vmem:[%s416 + $0x42] sm:$0xff]
        %v731 = vld [vmem:[%s416 + $0x52] sm:$0xff]
        %v732 = vld [vmem:[%s416 + $0x62] sm:$0xff]
        %v733 = vld [vmem:[%s416 + $0x72] sm:$0xff]
        %s734 = scalar_lea.vmem %s3, 16
        %v735 = vld [vmem:[%s734] sm:$0xff]
        %v737 = vsel %vm467, %v726, 0
        %v740 = vsel %vm467, %v727, 0
        %v743 = vsel %vm467, %v728, 0
        %v746 = vsel %vm467, %v729, 0
        %v749 = vsel %vm467, %v730, 0
        %v752 = vsel %vm467, %v731, 0
        %v755 = vsel %vm467, %v732, 0
        %v758 = vsel %vm467, %v733, 0
        %760 = vmatprep.subr.mxu0 0.0
        %761 = vmatpush1.msra.mxu0 0.0
        %762 = vmatprep.subr.mxu0 0.0
        %763 = vmatpush1.msra.mxu0 0.0
        %764 = vmatprep.subr.mxu0 0.0
        %765 = vmatpush1.msra.mxu0 0.0
        %766 = vmatprep.subr.mxu0 0.0
        %767 = vmatpush1.msra.mxu0 0.0
        %768 = vmatprep.subr.mxu0 0.0
        %769 = vmatpush1.msra.mxu0 0.0
        %770 = vmatprep.subr.mxu0 0.0
        %771 = vmatpush1.msra.mxu0 0.0
        %772 = vmatprep.subr.mxu0 0.0
        %773 = vmatpush1.msra.mxu0 0.0
        %774 = vmatprep.subr.mxu0 0.0
        %775 = vmatpush1.msra.mxu0 0.0
        %776 = vmatprep.subr.mxu0 0.0
        %777 = vmatpush1.msra.mxu0 0.0
        %778 = vmatprep.subr.mxu0 0.0
        %779 = vmatpush1.msra.mxu0 0.0
        %780 = vmatprep.subr.mxu0 0.0
        %781 = vmatpush1.msra.mxu0 0.0
        %782 = vmatprep.subr.mxu0 0.0
        %783 = vmatpush1.msra.mxu0 0.0
        %784 = vmatprep.subr.mxu0 0.0
        %785 = vmatpush1.msra.mxu0 0.0
        %786 = vmatprep.subr.mxu0 0.0
        %787 = vmatpush1.msra.mxu0 0.0
        %788 = vmatprep.subr.mxu0 0.0
        %789 = vmatpush1.msra.mxu0 0.0
        %790 = vmatprep.subr.mxu0 0.0
        %791 = vmatpush1.msra.mxu0 %v735
        %792 = vmatprep.subr.mxu0 0.0
        %793 = vmatpush2.msra.mxu0 0.0
        %794 = vmatprep.subr.mxu0 0.0
        %795 = vmatpush2.msra.mxu0 0.0
        %796 = vmatprep.subr.mxu0 0.0
        %797 = vmatpush2.msra.mxu0 0.0
        %798 = vmatprep.subr.mxu0 0.0
        %799 = vmatpush2.msra.mxu0 0.0
        %800 = vmatprep.subr.mxu0 0.0
        %801 = vmatpush2.msra.mxu0 0.0
        %802 = vmatprep.subr.mxu0 0.0
        %803 = vmatpush2.msra.mxu0 0.0
        %804 = vmatprep.subr.mxu0 0.0
        %805 = vmatpush2.msra.mxu0 0.0
        %806 = vmatprep.subr.mxu0 0.0
        %807 = vmatpush2.msra.mxu0 0.0
        %808 = vmatprep.subr.mxu0 0.0
        %809 = vmatpush2.msra.mxu0 0.0
        %810 = vmatprep.subr.mxu0 0.0
        %811 = vmatpush2.msra.mxu0 0.0
        %812 = vmatprep.subr.mxu0 0.0
        %813 = vmatpush2.msra.mxu0 0.0
        %814 = vmatprep.subr.mxu0 0.0
        %815 = vmatpush2.msra.mxu0 0.0
        %816 = vmatprep.subr.mxu0 0.0
        %817 = vmatpush2.msra.mxu0 0.0
        %818 = vmatprep.subr.mxu0 0.0
        %819 = vmatpush2.msra.mxu0 0.0
        %820 = vmatprep.subr.mxu0 0.0
        %821 = vmatpush2.msra.mxu0 0.0
        %822 = vmatprep.subr.mxu0 0.0
        %823 = vmatpush2.msra.mxu0 0.0
        %824 = vmatprep.mubr.f32.mxu0 0.0
        %825 = vmatmul.mubr.f32.gmra.mxu0 %v737
        %v826 = vpop.f32.mrf.mxu0
        %v827 = vadd.f32 0.0, %v826
        %v828 = vpop.f32.mrf.mxu0
        %829 = vmatprep.mubr.f32.mxu0 0.0
        %830 = vmatmul.mubr.f32.gmra.mxu0 %v740
        %v831 = vpop.f32.mrf.mxu0
        %v832 = vadd.f32 0.0, %v831
        %v833 = vpop.f32.mrf.mxu0
        %834 = vmatprep.mubr.f32.mxu0 0.0
        %835 = vmatmul.mubr.f32.gmra.mxu0 %v743
        %v836 = vpop.f32.mrf.mxu0
        %v837 = vadd.f32 0.0, %v836
        %v838 = vpop.f32.mrf.mxu0
        %839 = vmatprep.mubr.f32.mxu0 0.0
        %840 = vmatmul.mubr.f32.gmra.mxu0 %v746
        %v841 = vpop.f32.mrf.mxu0
        %v842 = vadd.f32 0.0, %v841
        %v843 = vpop.f32.mrf.mxu0
        %844 = vmatprep.mubr.f32.mxu0 0.0
        %845 = vmatmul.mubr.f32.gmra.mxu0 %v749
        %v846 = vpop.f32.mrf.mxu0
        %v847 = vadd.f32 0.0, %v846
        %v848 = vpop.f32.mrf.mxu0
        %849 = vmatprep.mubr.f32.mxu0 0.0
        %850 = vmatmul.mubr.f32.gmra.mxu0 %v752
        %v851 = vpop.f32.mrf.mxu0
        %v852 = vadd.f32 0.0, %v851
        %v853 = vpop.f32.mrf.mxu0
        %854 = vmatprep.mubr.f32.mxu0 0.0
        %855 = vmatmul.mubr.f32.gmra.mxu0 %v755
        %v856 = vpop.f32.mrf.mxu0
        %v857 = vadd.f32 0.0, %v856
        %v858 = vpop.f32.mrf.mxu0
        %859 = vmatprep.mubr.f32.mxu0 0.0
        %860 = vmatmul.mubr.f32.gmra.mxu0 %v758
        %v861 = vpop.f32.mrf.mxu0
        %v862 = vadd.f32 0.0, %v861
        %v863 = vpop.f32.mrf.mxu0
        %864 = vdwg.mxu0
        %v865 = vadd.f32 %v688, %v827
        %v866 = vadd.f32 %v693, %v832
        %v867 = vadd.f32 %v698, %v837
        %v868 = vadd.f32 %v703, %v842
        %v869 = vadd.f32 %v708, %v847
        %v870 = vadd.f32 %v713, %v852
        %v871 = vadd.f32 %v718, %v857
        %v872 = vadd.f32 %v723, %v862
        %s873 = scalar_lea.vmem %s416, 16
        %v874 = vld [vmem:[%s873] sm:$0xff]
        %v875 = vld [vmem:[%s873 + $0x10] sm:$0xff]
        %v876 = vld [vmem:[%s873 + $0x20] sm:$0xff]
        %v877 = vld [vmem:[%s873 + $0x30] sm:$0xff]
        %v878 = vld [vmem:[%s873 + $0x40] sm:$0xff]
        %v879 = vld [vmem:[%s873 + $0x50] sm:$0xff]
        %v880 = vld [vmem:[%s873 + $0x60] sm:$0xff]
        %v881 = vld [vmem:[%s873 + $0x70] sm:$0xff]
        %s882 = scalar_lea.vmem %s3, 24
        %v883 = vld [vmem:[%s882] sm:$0xff]
        %v885 = vsel %vm467, %v874, 0
        %v888 = vsel %vm467, %v875, 0
        %v891 = vsel %vm467, %v876, 0
        %v894 = vsel %vm467, %v877, 0
        %v897 = vsel %vm467, %v878, 0
        %v900 = vsel %vm467, %v879, 0
        %v903 = vsel %vm467, %v880, 0
        %v906 = vsel %vm467, %v881, 0
        %908 = vmatprep.subr.mxu0 0.0
        %909 = vmatpush1.msra.mxu0 0.0
        %910 = vmatprep.subr.mxu0 0.0
        %911 = vmatpush1.msra.mxu0 0.0
        %912 = vmatprep.subr.mxu0 0.0
        %913 = vmatpush1.msra.mxu0 0.0
        %914 = vmatprep.subr.mxu0 0.0
        %915 = vmatpush1.msra.mxu0 0.0
        %916 = vmatprep.subr.mxu0 0.0
        %917 = vmatpush1.msra.mxu0 0.0
        %918 = vmatprep.subr.mxu0 0.0
        %919 = vmatpush1.msra.mxu0 0.0
        %920 = vmatprep.subr.mxu0 0.0
        %921 = vmatpush1.msra.mxu0 0.0
        %922 = vmatprep.subr.mxu0 0.0
        %923 = vmatpush1.msra.mxu0 0.0
        %924 = vmatprep.subr.mxu0 0.0
        %925 = vmatpush1.msra.mxu0 0.0
        %926 = vmatprep.subr.mxu0 0.0
        %927 = vmatpush1.msra.mxu0 0.0
        %928 = vmatprep.subr.mxu0 0.0
        %929 = vmatpush1.msra.mxu0 0.0
        %930 = vmatprep.subr.mxu0 0.0
        %931 = vmatpush1.msra.mxu0 0.0
        %932 = vmatprep.subr.mxu0 0.0
        %933 = vmatpush1.msra.mxu0 0.0
        %934 = vmatprep.subr.mxu0 0.0
        %935 = vmatpush1.msra.mxu0 0.0
        %936 = vmatprep.subr.mxu0 0.0
        %937 = vmatpush1.msra.mxu0 0.0
        %938 = vmatprep.subr.mxu0 0.0
        %939 = vmatpush1.msra.mxu0 %v883
        %940 = vmatprep.subr.mxu0 0.0
        %941 = vmatpush2.msra.mxu0 0.0
        %942 = vmatprep.subr.mxu0 0.0
        %943 = vmatpush2.msra.mxu0 0.0
        %944 = vmatprep.subr.mxu0 0.0
        %945 = vmatpush2.msra.mxu0 0.0
        %946 = vmatprep.subr.mxu0 0.0
        %947 = vmatpush2.msra.mxu0 0.0
        %948 = vmatprep.subr.mxu0 0.0
        %949 = vmatpush2.msra.mxu0 0.0
        %950 = vmatprep.subr.mxu0 0.0
        %951 = vmatpush2.msra.mxu0 0.0
        %952 = vmatprep.subr.mxu0 0.0
        %953 = vmatpush2.msra.mxu0 0.0
        %954 = vmatprep.subr.mxu0 0.0
        %955 = vmatpush2.msra.mxu0 0.0
        %956 = vmatprep.subr.mxu0 0.0
        %957 = vmatpush2.msra.mxu0 0.0
        %958 = vmatprep.subr.mxu0 0.0
        %959 = vmatpush2.msra.mxu0 0.0
        %960 = vmatprep.subr.mxu0 0.0
        %961 = vmatpush2.msra.mxu0 0.0
        %962 = vmatprep.subr.mxu0 0.0
        %963 = vmatpush2.msra.mxu0 0.0
        %964 = vmatprep.subr.mxu0 0.0
        %965 = vmatpush2.msra.mxu0 0.0
        %966 = vmatprep.subr.mxu0 0.0
        %967 = vmatpush2.msra.mxu0 0.0
        %968 = vmatprep.subr.mxu0 0.0
        %969 = vmatpush2.msra.mxu0 0.0
        %970 = vmatprep.subr.mxu0 0.0
        %971 = vmatpush2.msra.mxu0 0.0
        %972 = vmatprep.mubr.f32.mxu0 0.0
        %973 = vmatmul.mubr.f32.gmra.mxu0 %v885
        %v974 = vpop.f32.mrf.mxu0
        %v975 = vadd.f32 0.0, %v974
        %v976 = vpop.f32.mrf.mxu0
        %977 = vmatprep.mubr.f32.mxu0 0.0
        %978 = vmatmul.mubr.f32.gmra.mxu0 %v888
        %v979 = vpop.f32.mrf.mxu0
        %v980 = vadd.f32 0.0, %v979
        %v981 = vpop.f32.mrf.mxu0
        %982 = vmatprep.mubr.f32.mxu0 0.0
        %983 = vmatmul.mubr.f32.gmra.mxu0 %v891
        %v984 = vpop.f32.mrf.mxu0
        %v985 = vadd.f32 0.0, %v984
        %v986 = vpop.f32.mrf.mxu0
        %987 = vmatprep.mubr.f32.mxu0 0.0
        %988 = vmatmul.mubr.f32.gmra.mxu0 %v894
        %v989 = vpop.f32.mrf.mxu0
        %v990 = vadd.f32 0.0, %v989
        %v991 = vpop.f32.mrf.mxu0
        %992 = vmatprep.mubr.f32.mxu0 0.0
        %993 = vmatmul.mubr.f32.gmra.mxu0 %v897
        %v994 = vpop.f32.mrf.mxu0
        %v995 = vadd.f32 0.0, %v994
        %v996 = vpop.f32.mrf.mxu0
        %997 = vmatprep.mubr.f32.mxu0 0.0
        %998 = vmatmul.mubr.f32.gmra.mxu0 %v900
        %v999 = vpop.f32.mrf.mxu0
        %v1000 = vadd.f32 0.0, %v999
        %v1001 = vpop.f32.mrf.mxu0
        %1002 = vmatprep.mubr.f32.mxu0 0.0
        %1003 = vmatmul.mubr.f32.gmra.mxu0 %v903
        %v1004 = vpop.f32.mrf.mxu0
        %v1005 = vadd.f32 0.0, %v1004
        %v1006 = vpop.f32.mrf.mxu0
        %1007 = vmatprep.mubr.f32.mxu0 0.0
        %1008 = vmatmul.mubr.f32.gmra.mxu0 %v906
        %v1009 = vpop.f32.mrf.mxu0
        %v1010 = vadd.f32 0.0, %v1009
        %v1011 = vpop.f32.mrf.mxu0
        %1012 = vdwg.mxu0
        %v1013 = vadd.f32 %v865, %v975
        %v1014 = vadd.f32 %v866, %v980
        %v1015 = vadd.f32 %v867, %v985
        %v1016 = vadd.f32 %v868, %v990
        %v1017 = vadd.f32 %v869, %v995
        %v1018 = vadd.f32 %v870, %v1000
        %v1019 = vadd.f32 %v871, %v1005
        %v1020 = vadd.f32 %v872, %v1010
        %v1021 = vld [vmem:[%s873 + $0x1] sm:$0xff]
        %v1022 = vld [vmem:[%s873 + $0x11] sm:$0xff]
        %v1023 = vld [vmem:[%s873 + $0x21] sm:$0xff]
        %v1024 = vld [vmem:[%s873 + $0x31] sm:$0xff]
        %v1025 = vld [vmem:[%s873 + $0x41] sm:$0xff]
        %v1026 = vld [vmem:[%s873 + $0x51] sm:$0xff]
        %v1027 = vld [vmem:[%s873 + $0x61] sm:$0xff]
        %v1028 = vld [vmem:[%s873 + $0x71] sm:$0xff]
        %s1029 = scalar_lea.vmem %s3, 32
        %v1030 = vld [vmem:[%s1029] sm:$0xff]
        %v1032 = vsel %vm467, %v1021, 0
        %v1035 = vsel %vm467, %v1022, 0
        %v1038 = vsel %vm467, %v1023, 0
        %v1041 = vsel %vm467, %v1024, 0
        %v1044 = vsel %vm467, %v1025, 0
        %v1047 = vsel %vm467, %v1026, 0
        %v1050 = vsel %vm467, %v1027, 0
        %v1053 = vsel %vm467, %v1028, 0
        %1055 = vmatprep.subr.mxu0 0.0
        %1056 = vmatpush1.msra.mxu0 0.0
        %1057 = vmatprep.subr.mxu0 0.0
        %1058 = vmatpush1.msra.mxu0 0.0
        %1059 = vmatprep.subr.mxu0 0.0
        %1060 = vmatpush1.msra.mxu0 0.0
        %1061 = vmatprep.subr.mxu0 0.0
        %1062 = vmatpush1.msra.mxu0 0.0
        %1063 = vmatprep.subr.mxu0 0.0
        %1064 = vmatpush1.msra.mxu0 0.0
        %1065 = vmatprep.subr.mxu0 0.0
        %1066 = vmatpush1.msra.mxu0 0.0
        %1067 = vmatprep.subr.mxu0 0.0
        %1068 = vmatpush1.msra.mxu0 0.0
        %1069 = vmatprep.subr.mxu0 0.0
        %1070 = vmatpush1.msra.mxu0 0.0
        %1071 = vmatprep.subr.mxu0 0.0
        %1072 = vmatpush1.msra.mxu0 0.0
        %1073 = vmatprep.subr.mxu0 0.0
        %1074 = vmatpush1.msra.mxu0 0.0
        %1075 = vmatprep.subr.mxu0 0.0
        %1076 = vmatpush1.msra.mxu0 0.0
        %1077 = vmatprep.subr.mxu0 0.0
        %1078 = vmatpush1.msra.mxu0 0.0
        %1079 = vmatprep.subr.mxu0 0.0
        %1080 = vmatpush1.msra.mxu0 0.0
        %1081 = vmatprep.subr.mxu0 0.0
        %1082 = vmatpush1.msra.mxu0 0.0
        %1083 = vmatprep.subr.mxu0 0.0
        %1084 = vmatpush1.msra.mxu0 0.0
        %1085 = vmatprep.subr.mxu0 0.0
        %1086 = vmatpush1.msra.mxu0 %v1030
        %1087 = vmatprep.subr.mxu0 0.0
        %1088 = vmatpush2.msra.mxu0 0.0
        %1089 = vmatprep.subr.mxu0 0.0
        %1090 = vmatpush2.msra.mxu0 0.0
        %1091 = vmatprep.subr.mxu0 0.0
        %1092 = vmatpush2.msra.mxu0 0.0
        %1093 = vmatprep.subr.mxu0 0.0
        %1094 = vmatpush2.msra.mxu0 0.0
        %1095 = vmatprep.subr.mxu0 0.0
        %1096 = vmatpush2.msra.mxu0 0.0
        %1097 = vmatprep.subr.mxu0 0.0
        %1098 = vmatpush2.msra.mxu0 0.0
        %1099 = vmatprep.subr.mxu0 0.0
        %1100 = vmatpush2.msra.mxu0 0.0
        %1101 = vmatprep.subr.mxu0 0.0
        %1102 = vmatpush2.msra.mxu0 0.0
        %1103 = vmatprep.subr.mxu0 0.0
        %1104 = vmatpush2.msra.mxu0 0.0
        %1105 = vmatprep.subr.mxu0 0.0
        %1106 = vmatpush2.msra.mxu0 0.0
        %1107 = vmatprep.subr.mxu0 0.0
        %1108 = vmatpush2.msra.mxu0 0.0
        %1109 = vmatprep.subr.mxu0 0.0
        %1110 = vmatpush2.msra.mxu0 0.0
        %1111 = vmatprep.subr.mxu0 0.0
        %1112 = vmatpush2.msra.mxu0 0.0
        %1113 = vmatprep.subr.mxu0 0.0
        %1114 = vmatpush2.msra.mxu0 0.0
        %1115 = vmatprep.subr.mxu0 0.0
        %1116 = vmatpush2.msra.mxu0 0.0
        %1117 = vmatprep.subr.mxu0 0.0
        %1118 = vmatpush2.msra.mxu0 0.0
        %1119 = vmatprep.mubr.f32.mxu0 0.0
        %1120 = vmatmul.mubr.f32.gmra.mxu0 %v1032
        %v1121 = vpop.f32.mrf.mxu0
        %v1122 = vadd.f32 0.0, %v1121
        %v1123 = vpop.f32.mrf.mxu0
        %1124 = vmatprep.mubr.f32.mxu0 0.0
        %1125 = vmatmul.mubr.f32.gmra.mxu0 %v1035
        %v1126 = vpop.f32.mrf.mxu0
        %v1127 = vadd.f32 0.0, %v1126
        %v1128 = vpop.f32.mrf.mxu0
        %1129 = vmatprep.mubr.f32.mxu0 0.0
        %1130 = vmatmul.mubr.f32.gmra.mxu0 %v1038
        %v1131 = vpop.f32.mrf.mxu0
        %v1132 = vadd.f32 0.0, %v1131
        %v1133 = vpop.f32.mrf.mxu0
        %1134 = vmatprep.mubr.f32.mxu0 0.0
        %1135 = vmatmul.mubr.f32.gmra.mxu0 %v1041
        %v1136 = vpop.f32.mrf.mxu0
        %v1137 = vadd.f32 0.0, %v1136
        %v1138 = vpop.f32.mrf.mxu0
        %1139 = vmatprep.mubr.f32.mxu0 0.0
        %1140 = vmatmul.mubr.f32.gmra.mxu0 %v1044
        %v1141 = vpop.f32.mrf.mxu0
        %v1142 = vadd.f32 0.0, %v1141
        %v1143 = vpop.f32.mrf.mxu0
        %1144 = vmatprep.mubr.f32.mxu0 0.0
        %1145 = vmatmul.mubr.f32.gmra.mxu0 %v1047
        %v1146 = vpop.f32.mrf.mxu0
        %v1147 = vadd.f32 0.0, %v1146
        %v1148 = vpop.f32.mrf.mxu0
        %1149 = vmatprep.mubr.f32.mxu0 0.0
        %1150 = vmatmul.mubr.f32.gmra.mxu0 %v1050
        %v1151 = vpop.f32.mrf.mxu0
        %v1152 = vadd.f32 0.0, %v1151
        %v1153 = vpop.f32.mrf.mxu0
        %1154 = vmatprep.mubr.f32.mxu0 0.0
        %1155 = vmatmul.mubr.f32.gmra.mxu0 %v1053
        %v1156 = vpop.f32.mrf.mxu0
        %v1157 = vadd.f32 0.0, %v1156
        %v1158 = vpop.f32.mrf.mxu0
        %1159 = vdwg.mxu0
        %v1160 = vadd.f32 %v1013, %v1122
        %v1161 = vadd.f32 %v1014, %v1127
        %v1162 = vadd.f32 %v1015, %v1132
        %v1163 = vadd.f32 %v1016, %v1137
        %v1164 = vadd.f32 %v1017, %v1142
        %v1165 = vadd.f32 %v1018, %v1147
        %v1166 = vadd.f32 %v1019, %v1152
        %v1167 = vadd.f32 %v1020, %v1157
        %v1168 = vld [vmem:[%s873 + $0x2] sm:$0xff]
        %v1169 = vld [vmem:[%s873 + $0x12] sm:$0xff]
        %v1170 = vld [vmem:[%s873 + $0x22] sm:$0xff]
        %v1171 = vld [vmem:[%s873 + $0x32] sm:$0xff]
        %v1172 = vld [vmem:[%s873 + $0x42] sm:$0xff]
        %v1173 = vld [vmem:[%s873 + $0x52] sm:$0xff]
        %v1174 = vld [vmem:[%s873 + $0x62] sm:$0xff]
        %v1175 = vld [vmem:[%s873 + $0x72] sm:$0xff]
        %s1176 = scalar_lea.vmem %s3, 40
        %v1177 = vld [vmem:[%s1176] sm:$0xff]
        %v1179 = vsel %vm467, %v1168, 0
        %v1182 = vsel %vm467, %v1169, 0
        %v1185 = vsel %vm467, %v1170, 0
        %v1188 = vsel %vm467, %v1171, 0
        %v1191 = vsel %vm467, %v1172, 0
        %v1194 = vsel %vm467, %v1173, 0
        %v1197 = vsel %vm467, %v1174, 0
        %v1200 = vsel %vm467, %v1175, 0
        %1202 = vmatprep.subr.mxu0 0.0
        %1203 = vmatpush1.msra.mxu0 0.0
        %1204 = vmatprep.subr.mxu0 0.0
        %1205 = vmatpush1.msra.mxu0 0.0
        %1206 = vmatprep.subr.mxu0 0.0
        %1207 = vmatpush1.msra.mxu0 0.0
        %1208 = vmatprep.subr.mxu0 0.0
        %1209 = vmatpush1.msra.mxu0 0.0
        %1210 = vmatprep.subr.mxu0 0.0
        %1211 = vmatpush1.msra.mxu0 0.0
        %1212 = vmatprep.subr.mxu0 0.0
        %1213 = vmatpush1.msra.mxu0 0.0
        %1214 = vmatprep.subr.mxu0 0.0
        %1215 = vmatpush1.msra.mxu0 0.0
        %1216 = vmatprep.subr.mxu0 0.0
        %1217 = vmatpush1.msra.mxu0 0.0
        %1218 = vmatprep.subr.mxu0 0.0
        %1219 = vmatpush1.msra.mxu0 0.0
        %1220 = vmatprep.subr.mxu0 0.0
        %1221 = vmatpush1.msra.mxu0 0.0
        %1222 = vmatprep.subr.mxu0 0.0
        %1223 = vmatpush1.msra.mxu0 0.0
        %1224 = vmatprep.subr.mxu0 0.0
        %1225 = vmatpush1.msra.mxu0 0.0
        %1226 = vmatprep.subr.mxu0 0.0
        %1227 = vmatpush1.msra.mxu0 0.0
        %1228 = vmatprep.subr.mxu0 0.0
        %1229 = vmatpush1.msra.mxu0 0.0
        %1230 = vmatprep.subr.mxu0 0.0
        %1231 = vmatpush1.msra.mxu0 0.0
        %1232 = vmatprep.subr.mxu0 0.0
        %1233 = vmatpush1.msra.mxu0 %v1177
        %1234 = vmatprep.subr.mxu0 0.0
        %1235 = vmatpush2.msra.mxu0 0.0
        %1236 = vmatprep.subr.mxu0 0.0
        %1237 = vmatpush2.msra.mxu0 0.0
        %1238 = vmatprep.subr.mxu0 0.0
        %1239 = vmatpush2.msra.mxu0 0.0
        %1240 = vmatprep.subr.mxu0 0.0
        %1241 = vmatpush2.msra.mxu0 0.0
        %1242 = vmatprep.subr.mxu0 0.0
        %1243 = vmatpush2.msra.mxu0 0.0
        %1244 = vmatprep.subr.mxu0 0.0
        %1245 = vmatpush2.msra.mxu0 0.0
        %1246 = vmatprep.subr.mxu0 0.0
        %1247 = vmatpush2.msra.mxu0 0.0
        %1248 = vmatprep.subr.mxu0 0.0
        %1249 = vmatpush2.msra.mxu0 0.0
        %1250 = vmatprep.subr.mxu0 0.0
        %1251 = vmatpush2.msra.mxu0 0.0
        %1252 = vmatprep.subr.mxu0 0.0
        %1253 = vmatpush2.msra.mxu0 0.0
        %1254 = vmatprep.subr.mxu0 0.0
        %1255 = vmatpush2.msra.mxu0 0.0
        %1256 = vmatprep.subr.mxu0 0.0
        %1257 = vmatpush2.msra.mxu0 0.0
        %1258 = vmatprep.subr.mxu0 0.0
        %1259 = vmatpush2.msra.mxu0 0.0
        %1260 = vmatprep.subr.mxu0 0.0
        %1261 = vmatpush2.msra.mxu0 0.0
        %1262 = vmatprep.subr.mxu0 0.0
        %1263 = vmatpush2.msra.mxu0 0.0
        %1264 = vmatprep.subr.mxu0 0.0
        %1265 = vmatpush2.msra.mxu0 0.0
        %1266 = vmatprep.mubr.f32.mxu0 0.0
        %1267 = vmatmul.mubr.f32.gmra.mxu0 %v1179
        %v1268 = vpop.f32.mrf.mxu0
        %v1269 = vadd.f32 0.0, %v1268
        %v1270 = vpop.f32.mrf.mxu0
        %1271 = vmatprep.mubr.f32.mxu0 0.0
        %1272 = vmatmul.mubr.f32.gmra.mxu0 %v1182
        %v1273 = vpop.f32.mrf.mxu0
        %v1274 = vadd.f32 0.0, %v1273
        %v1275 = vpop.f32.mrf.mxu0
        %1276 = vmatprep.mubr.f32.mxu0 0.0
        %1277 = vmatmul.mubr.f32.gmra.mxu0 %v1185
        %v1278 = vpop.f32.mrf.mxu0
        %v1279 = vadd.f32 0.0, %v1278
        %v1280 = vpop.f32.mrf.mxu0
        %1281 = vmatprep.mubr.f32.mxu0 0.0
        %1282 = vmatmul.mubr.f32.gmra.mxu0 %v1188
        %v1283 = vpop.f32.mrf.mxu0
        %v1284 = vadd.f32 0.0, %v1283
        %v1285 = vpop.f32.mrf.mxu0
        %1286 = vmatprep.mubr.f32.mxu0 0.0
        %1287 = vmatmul.mubr.f32.gmra.mxu0 %v1191
        %v1288 = vpop.f32.mrf.mxu0
        %v1289 = vadd.f32 0.0, %v1288
        %v1290 = vpop.f32.mrf.mxu0
        %1291 = vmatprep.mubr.f32.mxu0 0.0
        %1292 = vmatmul.mubr.f32.gmra.mxu0 %v1194
        %v1293 = vpop.f32.mrf.mxu0
        %v1294 = vadd.f32 0.0, %v1293
        %v1295 = vpop.f32.mrf.mxu0
        %1296 = vmatprep.mubr.f32.mxu0 0.0
        %1297 = vmatmul.mubr.f32.gmra.mxu0 %v1197
        %v1298 = vpop.f32.mrf.mxu0
        %v1299 = vadd.f32 0.0, %v1298
        %v1300 = vpop.f32.mrf.mxu0
        %1301 = vmatprep.mubr.f32.mxu0 0.0
        %1302 = vmatmul.mubr.f32.gmra.mxu0 %v1200
        %v1303 = vpop.f32.mrf.mxu0
        %v1304 = vadd.f32 0.0, %v1303
        %v1305 = vpop.f32.mrf.mxu0
        %1306 = vdwg.mxu0
        %v1307 = vadd.f32 %v1160, %v1269
        %v1308 = vadd.f32 %v1161, %v1274
        %v1309 = vadd.f32 %v1162, %v1279
        %v1310 = vadd.f32 %v1163, %v1284
        %v1311 = vadd.f32 %v1164, %v1289
        %v1312 = vadd.f32 %v1165, %v1294
        %v1313 = vadd.f32 %v1166, %v1299
        %v1314 = vadd.f32 %v1167, %v1304
        %s1315 = scalar_lea.vmem %s416, 32
        %v1316 = vld [vmem:[%s1315] sm:$0xff]
        %v1317 = vld [vmem:[%s1315 + $0x10] sm:$0xff]
        %v1318 = vld [vmem:[%s1315 + $0x20] sm:$0xff]
        %v1319 = vld [vmem:[%s1315 + $0x30] sm:$0xff]
        %v1320 = vld [vmem:[%s1315 + $0x40] sm:$0xff]
        %v1321 = vld [vmem:[%s1315 + $0x50] sm:$0xff]
        %v1322 = vld [vmem:[%s1315 + $0x60] sm:$0xff]
        %v1323 = vld [vmem:[%s1315 + $0x70] sm:$0xff]
        %s1324 = scalar_lea.vmem %s3, 48
        %v1325 = vld [vmem:[%s1324] sm:$0xff]
        %v1327 = vsel %vm467, %v1316, 0
        %v1330 = vsel %vm467, %v1317, 0
        %v1333 = vsel %vm467, %v1318, 0
        %v1336 = vsel %vm467, %v1319, 0
        %v1339 = vsel %vm467, %v1320, 0
        %v1342 = vsel %vm467, %v1321, 0
        %v1345 = vsel %vm467, %v1322, 0
        %v1348 = vsel %vm467, %v1323, 0
        %1350 = vmatprep.subr.mxu0 0.0
        %1351 = vmatpush1.msra.mxu0 0.0
        %1352 = vmatprep.subr.mxu0 0.0
        %1353 = vmatpush1.msra.mxu0 0.0
        %1354 = vmatprep.subr.mxu0 0.0
        %1355 = vmatpush1.msra.mxu0 0.0
        %1356 = vmatprep.subr.mxu0 0.0
        %1357 = vmatpush1.msra.mxu0 0.0
        %1358 = vmatprep.subr.mxu0 0.0
        %1359 = vmatpush1.msra.mxu0 0.0
        %1360 = vmatprep.subr.mxu0 0.0
        %1361 = vmatpush1.msra.mxu0 0.0
        %1362 = vmatprep.subr.mxu0 0.0
        %1363 = vmatpush1.msra.mxu0 0.0
        %1364 = vmatprep.subr.mxu0 0.0
        %1365 = vmatpush1.msra.mxu0 0.0
        %1366 = vmatprep.subr.mxu0 0.0
        %1367 = vmatpush1.msra.mxu0 0.0
        %1368 = vmatprep.subr.mxu0 0.0
        %1369 = vmatpush1.msra.mxu0 0.0
        %1370 = vmatprep.subr.mxu0 0.0
        %1371 = vmatpush1.msra.mxu0 0.0
        %1372 = vmatprep.subr.mxu0 0.0
        %1373 = vmatpush1.msra.mxu0 0.0
        %1374 = vmatprep.subr.mxu0 0.0
        %1375 = vmatpush1.msra.mxu0 0.0
        %1376 = vmatprep.subr.mxu0 0.0
        %1377 = vmatpush1.msra.mxu0 0.0
        %1378 = vmatprep.subr.mxu0 0.0
        %1379 = vmatpush1.msra.mxu0 0.0
        %1380 = vmatprep.subr.mxu0 0.0
        %1381 = vmatpush1.msra.mxu0 %v1325
        %1382 = vmatprep.subr.mxu0 0.0
        %1383 = vmatpush2.msra.mxu0 0.0
        %1384 = vmatprep.subr.mxu0 0.0
        %1385 = vmatpush2.msra.mxu0 0.0
        %1386 = vmatprep.subr.mxu0 0.0
        %1387 = vmatpush2.msra.mxu0 0.0
        %1388 = vmatprep.subr.mxu0 0.0
        %1389 = vmatpush2.msra.mxu0 0.0
        %1390 = vmatprep.subr.mxu0 0.0
        %1391 = vmatpush2.msra.mxu0 0.0
        %1392 = vmatprep.subr.mxu0 0.0
        %1393 = vmatpush2.msra.mxu0 0.0
        %1394 = vmatprep.subr.mxu0 0.0
        %1395 = vmatpush2.msra.mxu0 0.0
        %1396 = vmatprep.subr.mxu0 0.0
        %1397 = vmatpush2.msra.mxu0 0.0
        %1398 = vmatprep.subr.mxu0 0.0
        %1399 = vmatpush2.msra.mxu0 0.0
        %1400 = vmatprep.subr.mxu0 0.0
        %1401 = vmatpush2.msra.mxu0 0.0
        %1402 = vmatprep.subr.mxu0 0.0
        %1403 = vmatpush2.msra.mxu0 0.0
        %1404 = vmatprep.subr.mxu0 0.0
        %1405 = vmatpush2.msra.mxu0 0.0
        %1406 = vmatprep.subr.mxu0 0.0
        %1407 = vmatpush2.msra.mxu0 0.0
        %1408 = vmatprep.subr.mxu0 0.0
        %1409 = vmatpush2.msra.mxu0 0.0
        %1410 = vmatprep.subr.mxu0 0.0
        %1411 = vmatpush2.msra.mxu0 0.0
        %1412 = vmatprep.subr.mxu0 0.0
        %1413 = vmatpush2.msra.mxu0 0.0
        %1414 = vmatprep.mubr.f32.mxu0 0.0
        %1415 = vmatmul.mubr.f32.gmra.mxu0 %v1327
        %v1416 = vpop.f32.mrf.mxu0
        %v1417 = vadd.f32 0.0, %v1416
        %v1418 = vpop.f32.mrf.mxu0
        %1419 = vmatprep.mubr.f32.mxu0 0.0
        %1420 = vmatmul.mubr.f32.gmra.mxu0 %v1330
        %v1421 = vpop.f32.mrf.mxu0
        %v1422 = vadd.f32 0.0, %v1421
        %v1423 = vpop.f32.mrf.mxu0
        %1424 = vmatprep.mubr.f32.mxu0 0.0
        %1425 = vmatmul.mubr.f32.gmra.mxu0 %v1333
        %v1426 = vpop.f32.mrf.mxu0
        %v1427 = vadd.f32 0.0, %v1426
        %v1428 = vpop.f32.mrf.mxu0
        %1429 = vmatprep.mubr.f32.mxu0 0.0
        %1430 = vmatmul.mubr.f32.gmra.mxu0 %v1336
        %v1431 = vpop.f32.mrf.mxu0
        %v1432 = vadd.f32 0.0, %v1431
        %v1433 = vpop.f32.mrf.mxu0
        %1434 = vmatprep.mubr.f32.mxu0 0.0
        %1435 = vmatmul.mubr.f32.gmra.mxu0 %v1339
        %v1436 = vpop.f32.mrf.mxu0
        %v1437 = vadd.f32 0.0, %v1436
        %v1438 = vpop.f32.mrf.mxu0
        %1439 = vmatprep.mubr.f32.mxu0 0.0
        %1440 = vmatmul.mubr.f32.gmra.mxu0 %v1342
        %v1441 = vpop.f32.mrf.mxu0
        %v1442 = vadd.f32 0.0, %v1441
        %v1443 = vpop.f32.mrf.mxu0
        %1444 = vmatprep.mubr.f32.mxu0 0.0
        %1445 = vmatmul.mubr.f32.gmra.mxu0 %v1345
        %v1446 = vpop.f32.mrf.mxu0
        %v1447 = vadd.f32 0.0, %v1446
        %v1448 = vpop.f32.mrf.mxu0
        %1449 = vmatprep.mubr.f32.mxu0 0.0
        %1450 = vmatmul.mubr.f32.gmra.mxu0 %v1348
        %v1451 = vpop.f32.mrf.mxu0
        %v1452 = vadd.f32 0.0, %v1451
        %v1453 = vpop.f32.mrf.mxu0
        %1454 = vdwg.mxu0
        %v1455 = vadd.f32 %v1307, %v1417
        %v1456 = vadd.f32 %v1308, %v1422
        %v1457 = vadd.f32 %v1309, %v1427
        %v1458 = vadd.f32 %v1310, %v1432
        %v1459 = vadd.f32 %v1311, %v1437
        %v1460 = vadd.f32 %v1312, %v1442
        %v1461 = vadd.f32 %v1313, %v1447
        %v1462 = vadd.f32 %v1314, %v1452
        %v1463 = vld [vmem:[%s1315 + $0x1] sm:$0xff]
        %v1464 = vld [vmem:[%s1315 + $0x11] sm:$0xff]
        %v1465 = vld [vmem:[%s1315 + $0x21] sm:$0xff]
        %v1466 = vld [vmem:[%s1315 + $0x31] sm:$0xff]
        %v1467 = vld [vmem:[%s1315 + $0x41] sm:$0xff]
        %v1468 = vld [vmem:[%s1315 + $0x51] sm:$0xff]
        %v1469 = vld [vmem:[%s1315 + $0x61] sm:$0xff]
        %v1470 = vld [vmem:[%s1315 + $0x71] sm:$0xff]
        %s1471 = scalar_lea.vmem %s3, 56
        %v1472 = vld [vmem:[%s1471] sm:$0xff]
        %v1474 = vsel %vm467, %v1463, 0
        %v1477 = vsel %vm467, %v1464, 0
        %v1480 = vsel %vm467, %v1465, 0
        %v1483 = vsel %vm467, %v1466, 0
        %v1486 = vsel %vm467, %v1467, 0
        %v1489 = vsel %vm467, %v1468, 0
        %v1492 = vsel %vm467, %v1469, 0
        %v1495 = vsel %vm467, %v1470, 0
        %1497 = vmatprep.subr.mxu0 0.0
        %1498 = vmatpush1.msra.mxu0 0.0
        %1499 = vmatprep.subr.mxu0 0.0
        %1500 = vmatpush1.msra.mxu0 0.0
        %1501 = vmatprep.subr.mxu0 0.0
        %1502 = vmatpush1.msra.mxu0 0.0
        %1503 = vmatprep.subr.mxu0 0.0
        %1504 = vmatpush1.msra.mxu0 0.0
        %1505 = vmatprep.subr.mxu0 0.0
        %1506 = vmatpush1.msra.mxu0 0.0
        %1507 = vmatprep.subr.mxu0 0.0
        %1508 = vmatpush1.msra.mxu0 0.0
        %1509 = vmatprep.subr.mxu0 0.0
        %1510 = vmatpush1.msra.mxu0 0.0
        %1511 = vmatprep.subr.mxu0 0.0
        %1512 = vmatpush1.msra.mxu0 0.0
        %1513 = vmatprep.subr.mxu0 0.0
        %1514 = vmatpush1.msra.mxu0 0.0
        %1515 = vmatprep.subr.mxu0 0.0
        %1516 = vmatpush1.msra.mxu0 0.0
        %1517 = vmatprep.subr.mxu0 0.0
        %1518 = vmatpush1.msra.mxu0 0.0
        %1519 = vmatprep.subr.mxu0 0.0
        %1520 = vmatpush1.msra.mxu0 0.0
        %1521 = vmatprep.subr.mxu0 0.0
        %1522 = vmatpush1.msra.mxu0 0.0
        %1523 = vmatprep.subr.mxu0 0.0
        %1524 = vmatpush1.msra.mxu0 0.0
        %1525 = vmatprep.subr.mxu0 0.0
        %1526 = vmatpush1.msra.mxu0 0.0
        %1527 = vmatprep.subr.mxu0 0.0
        %1528 = vmatpush1.msra.mxu0 %v1472
        %1529 = vmatprep.subr.mxu0 0.0
        %1530 = vmatpush2.msra.mxu0 0.0
        %1531 = vmatprep.subr.mxu0 0.0
        %1532 = vmatpush2.msra.mxu0 0.0
        %1533 = vmatprep.subr.mxu0 0.0
        %1534 = vmatpush2.msra.mxu0 0.0
        %1535 = vmatprep.subr.mxu0 0.0
        %1536 = vmatpush2.msra.mxu0 0.0
        %1537 = vmatprep.subr.mxu0 0.0
        %1538 = vmatpush2.msra.mxu0 0.0
        %1539 = vmatprep.subr.mxu0 0.0
        %1540 = vmatpush2.msra.mxu0 0.0
        %1541 = vmatprep.subr.mxu0 0.0
        %1542 = vmatpush2.msra.mxu0 0.0
        %1543 = vmatprep.subr.mxu0 0.0
        %1544 = vmatpush2.msra.mxu0 0.0
        %1545 = vmatprep.subr.mxu0 0.0
        %1546 = vmatpush2.msra.mxu0 0.0
        %1547 = vmatprep.subr.mxu0 0.0
        %1548 = vmatpush2.msra.mxu0 0.0
        %1549 = vmatprep.subr.mxu0 0.0
        %1550 = vmatpush2.msra.mxu0 0.0
        %1551 = vmatprep.subr.mxu0 0.0
        %1552 = vmatpush2.msra.mxu0 0.0
        %1553 = vmatprep.subr.mxu0 0.0
        %1554 = vmatpush2.msra.mxu0 0.0
        %1555 = vmatprep.subr.mxu0 0.0
        %1556 = vmatpush2.msra.mxu0 0.0
        %1557 = vmatprep.subr.mxu0 0.0
        %1558 = vmatpush2.msra.mxu0 0.0
        %1559 = vmatprep.subr.mxu0 0.0
        %1560 = vmatpush2.msra.mxu0 0.0
        %1561 = vmatprep.mubr.f32.mxu0 0.0
        %1562 = vmatmul.mubr.f32.gmra.mxu0 %v1474
        %v1563 = vpop.f32.mrf.mxu0
        %v1564 = vadd.f32 0.0, %v1563
        %v1565 = vpop.f32.mrf.mxu0
        %1566 = vmatprep.mubr.f32.mxu0 0.0
        %1567 = vmatmul.mubr.f32.gmra.mxu0 %v1477
        %v1568 = vpop.f32.mrf.mxu0
        %v1569 = vadd.f32 0.0, %v1568
        %v1570 = vpop.f32.mrf.mxu0
        %1571 = vmatprep.mubr.f32.mxu0 0.0
        %1572 = vmatmul.mubr.f32.gmra.mxu0 %v1480
        %v1573 = vpop.f32.mrf.mxu0
        %v1574 = vadd.f32 0.0, %v1573
        %v1575 = vpop.f32.mrf.mxu0
        %1576 = vmatprep.mubr.f32.mxu0 0.0
        %1577 = vmatmul.mubr.f32.gmra.mxu0 %v1483
        %v1578 = vpop.f32.mrf.mxu0
        %v1579 = vadd.f32 0.0, %v1578
        %v1580 = vpop.f32.mrf.mxu0
        %1581 = vmatprep.mubr.f32.mxu0 0.0
        %1582 = vmatmul.mubr.f32.gmra.mxu0 %v1486
        %v1583 = vpop.f32.mrf.mxu0
        %v1584 = vadd.f32 0.0, %v1583
        %v1585 = vpop.f32.mrf.mxu0
        %1586 = vmatprep.mubr.f32.mxu0 0.0
        %1587 = vmatmul.mubr.f32.gmra.mxu0 %v1489
        %v1588 = vpop.f32.mrf.mxu0
        %v1589 = vadd.f32 0.0, %v1588
        %v1590 = vpop.f32.mrf.mxu0
        %1591 = vmatprep.mubr.f32.mxu0 0.0
        %1592 = vmatmul.mubr.f32.gmra.mxu0 %v1492
        %v1593 = vpop.f32.mrf.mxu0
        %v1594 = vadd.f32 0.0, %v1593
        %v1595 = vpop.f32.mrf.mxu0
        %1596 = vmatprep.mubr.f32.mxu0 0.0
        %1597 = vmatmul.mubr.f32.gmra.mxu0 %v1495
        %v1598 = vpop.f32.mrf.mxu0
        %v1599 = vadd.f32 0.0, %v1598
        %v1600 = vpop.f32.mrf.mxu0
        %1601 = vdwg.mxu0
        %v1602 = vadd.f32 %v1455, %v1564
        %v1603 = vadd.f32 %v1456, %v1569
        %v1604 = vadd.f32 %v1457, %v1574
        %v1605 = vadd.f32 %v1458, %v1579
        %v1606 = vadd.f32 %v1459, %v1584
        %v1607 = vadd.f32 %v1460, %v1589
        %v1608 = vadd.f32 %v1461, %v1594
        %v1609 = vadd.f32 %v1462, %v1599
        %v1610 = vld [vmem:[%s1315 + $0x2] sm:$0xff]
        %v1611 = vld [vmem:[%s1315 + $0x12] sm:$0xff]
        %v1612 = vld [vmem:[%s1315 + $0x22] sm:$0xff]
        %v1613 = vld [vmem:[%s1315 + $0x32] sm:$0xff]
        %v1614 = vld [vmem:[%s1315 + $0x42] sm:$0xff]
        %v1615 = vld [vmem:[%s1315 + $0x52] sm:$0xff]
        %v1616 = vld [vmem:[%s1315 + $0x62] sm:$0xff]
        %v1617 = vld [vmem:[%s1315 + $0x72] sm:$0xff]
        %s1618 = scalar_lea.vmem %s3, 64
        %v1619 = vld [vmem:[%s1618] sm:$0xff]
        %v1621 = vsel %vm467, %v1610, 0
        %v1624 = vsel %vm467, %v1611, 0
        %v1627 = vsel %vm467, %v1612, 0
        %v1630 = vsel %vm467, %v1613, 0
        %v1633 = vsel %vm467, %v1614, 0
        %v1636 = vsel %vm467, %v1615, 0
        %v1639 = vsel %vm467, %v1616, 0
        %v1642 = vsel %vm467, %v1617, 0
        %1644 = vmatprep.subr.mxu0 0.0
        %1645 = vmatpush1.msra.mxu0 0.0
        %1646 = vmatprep.subr.mxu0 0.0
        %1647 = vmatpush1.msra.mxu0 0.0
        %1648 = vmatprep.subr.mxu0 0.0
        %1649 = vmatpush1.msra.mxu0 0.0
        %1650 = vmatprep.subr.mxu0 0.0
        %1651 = vmatpush1.msra.mxu0 0.0
        %1652 = vmatprep.subr.mxu0 0.0
        %1653 = vmatpush1.msra.mxu0 0.0
        %1654 = vmatprep.subr.mxu0 0.0
        %1655 = vmatpush1.msra.mxu0 0.0
        %1656 = vmatprep.subr.mxu0 0.0
        %1657 = vmatpush1.msra.mxu0 0.0
        %1658 = vmatprep.subr.mxu0 0.0
        %1659 = vmatpush1.msra.mxu0 0.0
        %1660 = vmatprep.subr.mxu0 0.0
        %1661 = vmatpush1.msra.mxu0 0.0
        %1662 = vmatprep.subr.mxu0 0.0
        %1663 = vmatpush1.msra.mxu0 0.0
        %1664 = vmatprep.subr.mxu0 0.0
        %1665 = vmatpush1.msra.mxu0 0.0
        %1666 = vmatprep.subr.mxu0 0.0
        %1667 = vmatpush1.msra.mxu0 0.0
        %1668 = vmatprep.subr.mxu0 0.0
        %1669 = vmatpush1.msra.mxu0 0.0
        %1670 = vmatprep.subr.mxu0 0.0
        %1671 = vmatpush1.msra.mxu0 0.0
        %1672 = vmatprep.subr.mxu0 0.0
        %1673 = vmatpush1.msra.mxu0 0.0
        %1674 = vmatprep.subr.mxu0 0.0
        %1675 = vmatpush1.msra.mxu0 %v1619
        %1676 = vmatprep.subr.mxu0 0.0
        %1677 = vmatpush2.msra.mxu0 0.0
        %1678 = vmatprep.subr.mxu0 0.0
        %1679 = vmatpush2.msra.mxu0 0.0
        %1680 = vmatprep.subr.mxu0 0.0
        %1681 = vmatpush2.msra.mxu0 0.0
        %1682 = vmatprep.subr.mxu0 0.0
        %1683 = vmatpush2.msra.mxu0 0.0
        %1684 = vmatprep.subr.mxu0 0.0
        %1685 = vmatpush2.msra.mxu0 0.0
        %1686 = vmatprep.subr.mxu0 0.0
        %1687 = vmatpush2.msra.mxu0 0.0
        %1688 = vmatprep.subr.mxu0 0.0
        %1689 = vmatpush2.msra.mxu0 0.0
        %1690 = vmatprep.subr.mxu0 0.0
        %1691 = vmatpush2.msra.mxu0 0.0
        %1692 = vmatprep.subr.mxu0 0.0
        %1693 = vmatpush2.msra.mxu0 0.0
        %1694 = vmatprep.subr.mxu0 0.0
        %1695 = vmatpush2.msra.mxu0 0.0
        %1696 = vmatprep.subr.mxu0 0.0
        %1697 = vmatpush2.msra.mxu0 0.0
        %1698 = vmatprep.subr.mxu0 0.0
        %1699 = vmatpush2.msra.mxu0 0.0
        %1700 = vmatprep.subr.mxu0 0.0
        %1701 = vmatpush2.msra.mxu0 0.0
        %1702 = vmatprep.subr.mxu0 0.0
        %1703 = vmatpush2.msra.mxu0 0.0
        %1704 = vmatprep.subr.mxu0 0.0
        %1705 = vmatpush2.msra.mxu0 0.0
        %1706 = vmatprep.subr.mxu0 0.0
        %1707 = vmatpush2.msra.mxu0 0.0
        %1708 = vmatprep.mubr.f32.mxu0 0.0
        %1709 = vmatmul.mubr.f32.gmra.mxu0 %v1621
        %v1710 = vpop.f32.mrf.mxu0
        %v1711 = vadd.f32 0.0, %v1710
        %v1712 = vpop.f32.mrf.mxu0
        %1713 = vmatprep.mubr.f32.mxu0 0.0
        %1714 = vmatmul.mubr.f32.gmra.mxu0 %v1624
        %v1715 = vpop.f32.mrf.mxu0
        %v1716 = vadd.f32 0.0, %v1715
        %v1717 = vpop.f32.mrf.mxu0
        %1718 = vmatprep.mubr.f32.mxu0 0.0
        %1719 = vmatmul.mubr.f32.gmra.mxu0 %v1627
        %v1720 = vpop.f32.mrf.mxu0
        %v1721 = vadd.f32 0.0, %v1720
        %v1722 = vpop.f32.mrf.mxu0
        %1723 = vmatprep.mubr.f32.mxu0 0.0
        %1724 = vmatmul.mubr.f32.gmra.mxu0 %v1630
        %v1725 = vpop.f32.mrf.mxu0
        %v1726 = vadd.f32 0.0, %v1725
        %v1727 = vpop.f32.mrf.mxu0
        %1728 = vmatprep.mubr.f32.mxu0 0.0
        %1729 = vmatmul.mubr.f32.gmra.mxu0 %v1633
        %v1730 = vpop.f32.mrf.mxu0
        %v1731 = vadd.f32 0.0, %v1730
        %v1732 = vpop.f32.mrf.mxu0
        %1733 = vmatprep.mubr.f32.mxu0 0.0
        %1734 = vmatmul.mubr.f32.gmra.mxu0 %v1636
        %v1735 = vpop.f32.mrf.mxu0
        %v1736 = vadd.f32 0.0, %v1735
        %v1737 = vpop.f32.mrf.mxu0
        %1738 = vmatprep.mubr.f32.mxu0 0.0
        %1739 = vmatmul.mubr.f32.gmra.mxu0 %v1639
        %v1740 = vpop.f32.mrf.mxu0
        %v1741 = vadd.f32 0.0, %v1740
        %v1742 = vpop.f32.mrf.mxu0
        %1743 = vmatprep.mubr.f32.mxu0 0.0
        %1744 = vmatmul.mubr.f32.gmra.mxu0 %v1642
        %v1745 = vpop.f32.mrf.mxu0
        %v1746 = vadd.f32 0.0, %v1745
        %v1747 = vpop.f32.mrf.mxu0
        %1748 = vdwg.mxu0
        %v1749 = vadd.f32 %v1602, %v1711
        %v1750 = vadd.f32 %v1603, %v1716
        %v1751 = vadd.f32 %v1604, %v1721
        %v1752 = vadd.f32 %v1605, %v1726
        %v1753 = vadd.f32 %v1606, %v1731
        %v1754 = vadd.f32 %v1607, %v1736
        %v1755 = vadd.f32 %v1608, %v1741
        %v1756 = vadd.f32 %v1609, %v1746
        %v1757 = vld [vmem:[%s426] sm:$0xff]
        %v1758 = vld [vmem:[%s426 + $0x10] sm:$0xff]
        %v1759 = vld [vmem:[%s426 + $0x20] sm:$0xff]
        %v1760 = vld [vmem:[%s426 + $0x30] sm:$0xff]
        %v1761 = vld [vmem:[%s426 + $0x40] sm:$0xff]
        %v1762 = vld [vmem:[%s426 + $0x50] sm:$0xff]
        %v1763 = vld [vmem:[%s426 + $0x60] sm:$0xff]
        %v1764 = vld [vmem:[%s426 + $0x70] sm:$0xff]
        %s1765 = scalar_lea.vmem %s3, 72
        %v1766 = vld [vmem:[%s1765] sm:$0xff]
        %v1768 = vsel %vm467, %v1757, 0
        %v1771 = vsel %vm467, %v1758, 0
        %v1774 = vsel %vm467, %v1759, 0
        %v1777 = vsel %vm467, %v1760, 0
        %v1780 = vsel %vm467, %v1761, 0
        %v1783 = vsel %vm467, %v1762, 0
        %v1786 = vsel %vm467, %v1763, 0
        %v1789 = vsel %vm467, %v1764, 0
        %1791 = vmatprep.subr.mxu0 0.0
        %1792 = vmatpush1.msra.mxu0 0.0
        %1793 = vmatprep.subr.mxu0 0.0
        %1794 = vmatpush1.msra.mxu0 0.0
        %1795 = vmatprep.subr.mxu0 0.0
        %1796 = vmatpush1.msra.mxu0 0.0
        %1797 = vmatprep.subr.mxu0 0.0
        %1798 = vmatpush1.msra.mxu0 0.0
        %1799 = vmatprep.subr.mxu0 0.0
        %1800 = vmatpush1.msra.mxu0 0.0
        %1801 = vmatprep.subr.mxu0 0.0
        %1802 = vmatpush1.msra.mxu0 0.0
        %1803 = vmatprep.subr.mxu0 0.0
        %1804 = vmatpush1.msra.mxu0 0.0
        %1805 = vmatprep.subr.mxu0 0.0
        %1806 = vmatpush1.msra.mxu0 0.0
        %1807 = vmatprep.subr.mxu0 0.0
        %1808 = vmatpush1.msra.mxu0 0.0
        %1809 = vmatprep.subr.mxu0 0.0
        %1810 = vmatpush1.msra.mxu0 0.0
        %1811 = vmatprep.subr.mxu0 0.0
        %1812 = vmatpush1.msra.mxu0 0.0
        %1813 = vmatprep.subr.mxu0 0.0
        %1814 = vmatpush1.msra.mxu0 0.0
        %1815 = vmatprep.subr.mxu0 0.0
        %1816 = vmatpush1.msra.mxu0 0.0
        %1817 = vmatprep.subr.mxu0 0.0
        %1818 = vmatpush1.msra.mxu0 0.0
        %1819 = vmatprep.subr.mxu0 0.0
        %1820 = vmatpush1.msra.mxu0 0.0
        %1821 = vmatprep.subr.mxu0 0.0
        %1822 = vmatpush1.msra.mxu0 %v1766
        %1823 = vmatprep.subr.mxu0 0.0
        %1824 = vmatpush2.msra.mxu0 0.0
        %1825 = vmatprep.subr.mxu0 0.0
        %1826 = vmatpush2.msra.mxu0 0.0
        %1827 = vmatprep.subr.mxu0 0.0
        %1828 = vmatpush2.msra.mxu0 0.0
        %1829 = vmatprep.subr.mxu0 0.0
        %1830 = vmatpush2.msra.mxu0 0.0
        %1831 = vmatprep.subr.mxu0 0.0
        %1832 = vmatpush2.msra.mxu0 0.0
        %1833 = vmatprep.subr.mxu0 0.0
        %1834 = vmatpush2.msra.mxu0 0.0
        %1835 = vmatprep.subr.mxu0 0.0
        %1836 = vmatpush2.msra.mxu0 0.0
        %1837 = vmatprep.subr.mxu0 0.0
        %1838 = vmatpush2.msra.mxu0 0.0
        %1839 = vmatprep.subr.mxu0 0.0
        %1840 = vmatpush2.msra.mxu0 0.0
        %1841 = vmatprep.subr.mxu0 0.0
        %1842 = vmatpush2.msra.mxu0 0.0
        %1843 = vmatprep.subr.mxu0 0.0
        %1844 = vmatpush2.msra.mxu0 0.0
        %1845 = vmatprep.subr.mxu0 0.0
        %1846 = vmatpush2.msra.mxu0 0.0
        %1847 = vmatprep.subr.mxu0 0.0
        %1848 = vmatpush2.msra.mxu0 0.0
        %1849 = vmatprep.subr.mxu0 0.0
        %1850 = vmatpush2.msra.mxu0 0.0
        %1851 = vmatprep.subr.mxu0 0.0
        %1852 = vmatpush2.msra.mxu0 0.0
        %1853 = vmatprep.subr.mxu0 0.0
        %1854 = vmatpush2.msra.mxu0 0.0
        %1855 = vmatprep.mubr.f32.mxu0 0.0
        %1856 = vmatmul.mubr.f32.gmra.mxu0 %v1768
        %v1857 = vpop.f32.mrf.mxu0
        %v1858 = vadd.f32 0.0, %v1857
        %v1859 = vpop.f32.mrf.mxu0
        %1860 = vmatprep.mubr.f32.mxu0 0.0
        %1861 = vmatmul.mubr.f32.gmra.mxu0 %v1771
        %v1862 = vpop.f32.mrf.mxu0
        %v1863 = vadd.f32 0.0, %v1862
        %v1864 = vpop.f32.mrf.mxu0
        %1865 = vmatprep.mubr.f32.mxu0 0.0
        %1866 = vmatmul.mubr.f32.gmra.mxu0 %v1774
        %v1867 = vpop.f32.mrf.mxu0
        %v1868 = vadd.f32 0.0, %v1867
        %v1869 = vpop.f32.mrf.mxu0
        %1870 = vmatprep.mubr.f32.mxu0 0.0
        %1871 = vmatmul.mubr.f32.gmra.mxu0 %v1777
        %v1872 = vpop.f32.mrf.mxu0
        %v1873 = vadd.f32 0.0, %v1872
        %v1874 = vpop.f32.mrf.mxu0
        %1875 = vmatprep.mubr.f32.mxu0 0.0
        %1876 = vmatmul.mubr.f32.gmra.mxu0 %v1780
        %v1877 = vpop.f32.mrf.mxu0
        %v1878 = vadd.f32 0.0, %v1877
        %v1879 = vpop.f32.mrf.mxu0
        %1880 = vmatprep.mubr.f32.mxu0 0.0
        %1881 = vmatmul.mubr.f32.gmra.mxu0 %v1783
        %v1882 = vpop.f32.mrf.mxu0
        %v1883 = vadd.f32 0.0, %v1882
        %v1884 = vpop.f32.mrf.mxu0
        %1885 = vmatprep.mubr.f32.mxu0 0.0
        %1886 = vmatmul.mubr.f32.gmra.mxu0 %v1786
        %v1887 = vpop.f32.mrf.mxu0
        %v1888 = vadd.f32 0.0, %v1887
        %v1889 = vpop.f32.mrf.mxu0
        %1890 = vmatprep.mubr.f32.mxu0 0.0
        %1891 = vmatmul.mubr.f32.gmra.mxu0 %v1789
        %v1892 = vpop.f32.mrf.mxu0
        %v1893 = vadd.f32 0.0, %v1892
        %v1894 = vpop.f32.mrf.mxu0
        %1895 = vdwg.mxu0
        %v1896 = vadd.f32 %v1749, %v1858
        %v1897 = vadd.f32 %v1750, %v1863
        %v1898 = vadd.f32 %v1751, %v1868
        %v1899 = vadd.f32 %v1752, %v1873
        %v1900 = vadd.f32 %v1753, %v1878
        %v1901 = vadd.f32 %v1754, %v1883
        %v1902 = vadd.f32 %v1755, %v1888
        %v1903 = vadd.f32 %v1756, %v1893
        %v1904 = vld [vmem:[%s426 + $0x1] sm:$0xff]
        %v1905 = vld [vmem:[%s426 + $0x11] sm:$0xff]
        %v1906 = vld [vmem:[%s426 + $0x21] sm:$0xff]
        %v1907 = vld [vmem:[%s426 + $0x31] sm:$0xff]
        %v1908 = vld [vmem:[%s426 + $0x41] sm:$0xff]
        %v1909 = vld [vmem:[%s426 + $0x51] sm:$0xff]
        %v1910 = vld [vmem:[%s426 + $0x61] sm:$0xff]
        %v1911 = vld [vmem:[%s426 + $0x71] sm:$0xff]
        %s1912 = scalar_lea.vmem %s3, 80
        %v1913 = vld [vmem:[%s1912] sm:$0xff]
        %v1915 = vsel %vm467, %v1904, 0
        %v1918 = vsel %vm467, %v1905, 0
        %v1921 = vsel %vm467, %v1906, 0
        %v1924 = vsel %vm467, %v1907, 0
        %v1927 = vsel %vm467, %v1908, 0
        %v1930 = vsel %vm467, %v1909, 0
        %v1933 = vsel %vm467, %v1910, 0
        %v1936 = vsel %vm467, %v1911, 0
        %1938 = vmatprep.subr.mxu0 0.0
        %1939 = vmatpush1.msra.mxu0 0.0
        %1940 = vmatprep.subr.mxu0 0.0
        %1941 = vmatpush1.msra.mxu0 0.0
        %1942 = vmatprep.subr.mxu0 0.0
        %1943 = vmatpush1.msra.mxu0 0.0
        %1944 = vmatprep.subr.mxu0 0.0
        %1945 = vmatpush1.msra.mxu0 0.0
        %1946 = vmatprep.subr.mxu0 0.0
        %1947 = vmatpush1.msra.mxu0 0.0
        %1948 = vmatprep.subr.mxu0 0.0
        %1949 = vmatpush1.msra.mxu0 0.0
        %1950 = vmatprep.subr.mxu0 0.0
        %1951 = vmatpush1.msra.mxu0 0.0
        %1952 = vmatprep.subr.mxu0 0.0
        %1953 = vmatpush1.msra.mxu0 0.0
        %1954 = vmatprep.subr.mxu0 0.0
        %1955 = vmatpush1.msra.mxu0 0.0
        %1956 = vmatprep.subr.mxu0 0.0
        %1957 = vmatpush1.msra.mxu0 0.0
        %1958 = vmatprep.subr.mxu0 0.0
        %1959 = vmatpush1.msra.mxu0 0.0
        %1960 = vmatprep.subr.mxu0 0.0
        %1961 = vmatpush1.msra.mxu0 0.0
        %1962 = vmatprep.subr.mxu0 0.0
        %1963 = vmatpush1.msra.mxu0 0.0
        %1964 = vmatprep.subr.mxu0 0.0
        %1965 = vmatpush1.msra.mxu0 0.0
        %1966 = vmatprep.subr.mxu0 0.0
        %1967 = vmatpush1.msra.mxu0 0.0
        %1968 = vmatprep.subr.mxu0 0.0
        %1969 = vmatpush1.msra.mxu0 %v1913
        %1970 = vmatprep.subr.mxu0 0.0
        %1971 = vmatpush2.msra.mxu0 0.0
        %1972 = vmatprep.subr.mxu0 0.0
        %1973 = vmatpush2.msra.mxu0 0.0
        %1974 = vmatprep.subr.mxu0 0.0
        %1975 = vmatpush2.msra.mxu0 0.0
        %1976 = vmatprep.subr.mxu0 0.0
        %1977 = vmatpush2.msra.mxu0 0.0
        %1978 = vmatprep.subr.mxu0 0.0
        %1979 = vmatpush2.msra.mxu0 0.0
        %1980 = vmatprep.subr.mxu0 0.0
        %1981 = vmatpush2.msra.mxu0 0.0
        %1982 = vmatprep.subr.mxu0 0.0
        %1983 = vmatpush2.msra.mxu0 0.0
        %1984 = vmatprep.subr.mxu0 0.0
        %1985 = vmatpush2.msra.mxu0 0.0
        %1986 = vmatprep.subr.mxu0 0.0
        %1987 = vmatpush2.msra.mxu0 0.0
        %1988 = vmatprep.subr.mxu0 0.0
        %1989 = vmatpush2.msra.mxu0 0.0
        %1990 = vmatprep.subr.mxu0 0.0
        %1991 = vmatpush2.msra.mxu0 0.0
        %1992 = vmatprep.subr.mxu0 0.0
        %1993 = vmatpush2.msra.mxu0 0.0
        %1994 = vmatprep.subr.mxu0 0.0
        %1995 = vmatpush2.msra.mxu0 0.0
        %1996 = vmatprep.subr.mxu0 0.0
        %1997 = vmatpush2.msra.mxu0 0.0
        %1998 = vmatprep.subr.mxu0 0.0
        %1999 = vmatpush2.msra.mxu0 0.0
        %2000 = vmatprep.subr.mxu0 0.0
        %2001 = vmatpush2.msra.mxu0 0.0
        %2002 = vmatprep.mubr.f32.mxu0 0.0
        %2003 = vmatmul.mubr.f32.gmra.mxu0 %v1915
        %v2004 = vpop.f32.mrf.mxu0
        %v2005 = vadd.f32 0.0, %v2004
        %v2006 = vpop.f32.mrf.mxu0
        %2007 = vmatprep.mubr.f32.mxu0 0.0
        %2008 = vmatmul.mubr.f32.gmra.mxu0 %v1918
        %v2009 = vpop.f32.mrf.mxu0
        %v2010 = vadd.f32 0.0, %v2009
        %v2011 = vpop.f32.mrf.mxu0
        %2012 = vmatprep.mubr.f32.mxu0 0.0
        %2013 = vmatmul.mubr.f32.gmra.mxu0 %v1921
        %v2014 = vpop.f32.mrf.mxu0
        %v2015 = vadd.f32 0.0, %v2014
        %v2016 = vpop.f32.mrf.mxu0
        %2017 = vmatprep.mubr.f32.mxu0 0.0
        %2018 = vmatmul.mubr.f32.gmra.mxu0 %v1924
        %v2019 = vpop.f32.mrf.mxu0
        %v2020 = vadd.f32 0.0, %v2019
        %v2021 = vpop.f32.mrf.mxu0
        %2022 = vmatprep.mubr.f32.mxu0 0.0
        %2023 = vmatmul.mubr.f32.gmra.mxu0 %v1927
        %v2024 = vpop.f32.mrf.mxu0
        %v2025 = vadd.f32 0.0, %v2024
        %v2026 = vpop.f32.mrf.mxu0
        %2027 = vmatprep.mubr.f32.mxu0 0.0
        %2028 = vmatmul.mubr.f32.gmra.mxu0 %v1930
        %v2029 = vpop.f32.mrf.mxu0
        %v2030 = vadd.f32 0.0, %v2029
        %v2031 = vpop.f32.mrf.mxu0
        %2032 = vmatprep.mubr.f32.mxu0 0.0
        %2033 = vmatmul.mubr.f32.gmra.mxu0 %v1933
        %v2034 = vpop.f32.mrf.mxu0
        %v2035 = vadd.f32 0.0, %v2034
        %v2036 = vpop.f32.mrf.mxu0
        %2037 = vmatprep.mubr.f32.mxu0 0.0
        %2038 = vmatmul.mubr.f32.gmra.mxu0 %v1936
        %v2039 = vpop.f32.mrf.mxu0
        %v2040 = vadd.f32 0.0, %v2039
        %v2041 = vpop.f32.mrf.mxu0
        %2042 = vdwg.mxu0
        %v2043 = vadd.f32 %v1896, %v2005
        %v2044 = vadd.f32 %v1897, %v2010
        %v2045 = vadd.f32 %v1898, %v2015
        %v2046 = vadd.f32 %v1899, %v2020
        %v2047 = vadd.f32 %v1900, %v2025
        %v2048 = vadd.f32 %v1901, %v2030
        %v2049 = vadd.f32 %v1902, %v2035
        %v2050 = vadd.f32 %v1903, %v2040
        %v2051 = vld [vmem:[%s426 + $0x2] sm:$0xff]
        %v2052 = vld [vmem:[%s426 + $0x12] sm:$0xff]
        %v2053 = vld [vmem:[%s426 + $0x22] sm:$0xff]
        %v2054 = vld [vmem:[%s426 + $0x32] sm:$0xff]
        %v2055 = vld [vmem:[%s426 + $0x42] sm:$0xff]
        %v2056 = vld [vmem:[%s426 + $0x52] sm:$0xff]
        %v2057 = vld [vmem:[%s426 + $0x62] sm:$0xff]
        %v2058 = vld [vmem:[%s426 + $0x72] sm:$0xff]
        %s2059 = scalar_lea.vmem %s3, 88
        %v2060 = vld [vmem:[%s2059] sm:$0xff]
        %v2062 = vsel %vm467, %v2051, 0
        %v2065 = vsel %vm467, %v2052, 0
        %v2068 = vsel %vm467, %v2053, 0
        %v2071 = vsel %vm467, %v2054, 0
        %v2074 = vsel %vm467, %v2055, 0
        %v2077 = vsel %vm467, %v2056, 0
        %v2080 = vsel %vm467, %v2057, 0
        %v2083 = vsel %vm467, %v2058, 0
        %2085 = vmatprep.subr.mxu0 0.0
        %2086 = vmatpush1.msra.mxu0 0.0
        %2087 = vmatprep.subr.mxu0 0.0
        %2088 = vmatpush1.msra.mxu0 0.0
        %2089 = vmatprep.subr.mxu0 0.0
        %2090 = vmatpush1.msra.mxu0 0.0
        %2091 = vmatprep.subr.mxu0 0.0
        %2092 = vmatpush1.msra.mxu0 0.0
        %2093 = vmatprep.subr.mxu0 0.0
        %2094 = vmatpush1.msra.mxu0 0.0
        %2095 = vmatprep.subr.mxu0 0.0
        %2096 = vmatpush1.msra.mxu0 0.0
        %2097 = vmatprep.subr.mxu0 0.0
        %2098 = vmatpush1.msra.mxu0 0.0
        %2099 = vmatprep.subr.mxu0 0.0
        %2100 = vmatpush1.msra.mxu0 0.0
        %2101 = vmatprep.subr.mxu0 0.0
        %2102 = vmatpush1.msra.mxu0 0.0
        %2103 = vmatprep.subr.mxu0 0.0
        %2104 = vmatpush1.msra.mxu0 0.0
        %2105 = vmatprep.subr.mxu0 0.0
        %2106 = vmatpush1.msra.mxu0 0.0
        %2107 = vmatprep.subr.mxu0 0.0
        %2108 = vmatpush1.msra.mxu0 0.0
        %2109 = vmatprep.subr.mxu0 0.0
        %2110 = vmatpush1.msra.mxu0 0.0
        %2111 = vmatprep.subr.mxu0 0.0
        %2112 = vmatpush1.msra.mxu0 0.0
        %2113 = vmatprep.subr.mxu0 0.0
        %2114 = vmatpush1.msra.mxu0 0.0
        %2115 = vmatprep.subr.mxu0 0.0
        %2116 = vmatpush1.msra.mxu0 %v2060
        %2117 = vmatprep.subr.mxu0 0.0
        %2118 = vmatpush2.msra.mxu0 0.0
        %2119 = vmatprep.subr.mxu0 0.0
        %2120 = vmatpush2.msra.mxu0 0.0
        %2121 = vmatprep.subr.mxu0 0.0
        %2122 = vmatpush2.msra.mxu0 0.0
        %2123 = vmatprep.subr.mxu0 0.0
        %2124 = vmatpush2.msra.mxu0 0.0
        %2125 = vmatprep.subr.mxu0 0.0
        %2126 = vmatpush2.msra.mxu0 0.0
        %2127 = vmatprep.subr.mxu0 0.0
        %2128 = vmatpush2.msra.mxu0 0.0
        %2129 = vmatprep.subr.mxu0 0.0
        %2130 = vmatpush2.msra.mxu0 0.0
        %2131 = vmatprep.subr.mxu0 0.0
        %2132 = vmatpush2.msra.mxu0 0.0
        %2133 = vmatprep.subr.mxu0 0.0
        %2134 = vmatpush2.msra.mxu0 0.0
        %2135 = vmatprep.subr.mxu0 0.0
        %2136 = vmatpush2.msra.mxu0 0.0
        %2137 = vmatprep.subr.mxu0 0.0
        %2138 = vmatpush2.msra.mxu0 0.0
        %2139 = vmatprep.subr.mxu0 0.0
        %2140 = vmatpush2.msra.mxu0 0.0
        %2141 = vmatprep.subr.mxu0 0.0
        %2142 = vmatpush2.msra.mxu0 0.0
        %2143 = vmatprep.subr.mxu0 0.0
        %2144 = vmatpush2.msra.mxu0 0.0
        %2145 = vmatprep.subr.mxu0 0.0
        %2146 = vmatpush2.msra.mxu0 0.0
        %2147 = vmatprep.subr.mxu0 0.0
        %2148 = vmatpush2.msra.mxu0 0.0
        %2149 = vmatprep.mubr.f32.mxu0 0.0
        %2150 = vmatmul.mubr.f32.gmra.mxu0 %v2062
        %v2151 = vpop.f32.mrf.mxu0
        %v2152 = vadd.f32 0.0, %v2151
        %v2153 = vpop.f32.mrf.mxu0
        %2154 = vmatprep.mubr.f32.mxu0 0.0
        %2155 = vmatmul.mubr.f32.gmra.mxu0 %v2065
        %v2156 = vpop.f32.mrf.mxu0
        %v2157 = vadd.f32 0.0, %v2156
        %v2158 = vpop.f32.mrf.mxu0
        %2159 = vmatprep.mubr.f32.mxu0 0.0
        %2160 = vmatmul.mubr.f32.gmra.mxu0 %v2068
        %v2161 = vpop.f32.mrf.mxu0
        %v2162 = vadd.f32 0.0, %v2161
        %v2163 = vpop.f32.mrf.mxu0
        %2164 = vmatprep.mubr.f32.mxu0 0.0
        %2165 = vmatmul.mubr.f32.gmra.mxu0 %v2071
        %v2166 = vpop.f32.mrf.mxu0
        %v2167 = vadd.f32 0.0, %v2166
        %v2168 = vpop.f32.mrf.mxu0
        %2169 = vmatprep.mubr.f32.mxu0 0.0
        %2170 = vmatmul.mubr.f32.gmra.mxu0 %v2074
        %v2171 = vpop.f32.mrf.mxu0
        %v2172 = vadd.f32 0.0, %v2171
        %v2173 = vpop.f32.mrf.mxu0
        %2174 = vmatprep.mubr.f32.mxu0 0.0
        %2175 = vmatmul.mubr.f32.gmra.mxu0 %v2077
        %v2176 = vpop.f32.mrf.mxu0
        %v2177 = vadd.f32 0.0, %v2176
        %v2178 = vpop.f32.mrf.mxu0
        %2179 = vmatprep.mubr.f32.mxu0 0.0
        %2180 = vmatmul.mubr.f32.gmra.mxu0 %v2080
        %v2181 = vpop.f32.mrf.mxu0
        %v2182 = vadd.f32 0.0, %v2181
        %v2183 = vpop.f32.mrf.mxu0
        %2184 = vmatprep.mubr.f32.mxu0 0.0
        %2185 = vmatmul.mubr.f32.gmra.mxu0 %v2083
        %v2186 = vpop.f32.mrf.mxu0
        %v2187 = vadd.f32 0.0, %v2186
        %v2188 = vpop.f32.mrf.mxu0
        %2189 = vdwg.mxu0
        %v2190 = vadd.f32 %v2043, %v2152
        %v2191 = vadd.f32 %v2044, %v2157
        %v2192 = vadd.f32 %v2045, %v2162
        %v2193 = vadd.f32 %v2046, %v2167
        %v2194 = vadd.f32 %v2047, %v2172
        %v2195 = vadd.f32 %v2048, %v2177
        %v2196 = vadd.f32 %v2049, %v2182
        %v2197 = vadd.f32 %v2050, %v2187
        %s2198 = scalar_lea.vmem %s426, 16
        %v2199 = vld [vmem:[%s2198] sm:$0xff]
        %v2200 = vld [vmem:[%s2198 + $0x10] sm:$0xff]
        %v2201 = vld [vmem:[%s2198 + $0x20] sm:$0xff]
        %v2202 = vld [vmem:[%s2198 + $0x30] sm:$0xff]
        %v2203 = vld [vmem:[%s2198 + $0x40] sm:$0xff]
        %v2204 = vld [vmem:[%s2198 + $0x50] sm:$0xff]
        %v2205 = vld [vmem:[%s2198 + $0x60] sm:$0xff]
        %v2206 = vld [vmem:[%s2198 + $0x70] sm:$0xff]
        %s2207 = scalar_lea.vmem %s3, 96
        %v2208 = vld [vmem:[%s2207] sm:$0xff]
        %v2210 = vsel %vm467, %v2199, 0
        %v2213 = vsel %vm467, %v2200, 0
        %v2216 = vsel %vm467, %v2201, 0
        %v2219 = vsel %vm467, %v2202, 0
        %v2222 = vsel %vm467, %v2203, 0
        %v2225 = vsel %vm467, %v2204, 0
        %v2228 = vsel %vm467, %v2205, 0
        %v2231 = vsel %vm467, %v2206, 0
        %2233 = vmatprep.subr.mxu0 0.0
        %2234 = vmatpush1.msra.mxu0 0.0
        %2235 = vmatprep.subr.mxu0 0.0
        %2236 = vmatpush1.msra.mxu0 0.0
        %2237 = vmatprep.subr.mxu0 0.0
        %2238 = vmatpush1.msra.mxu0 0.0
        %2239 = vmatprep.subr.mxu0 0.0
        %2240 = vmatpush1.msra.mxu0 0.0
        %2241 = vmatprep.subr.mxu0 0.0
        %2242 = vmatpush1.msra.mxu0 0.0
        %2243 = vmatprep.subr.mxu0 0.0
        %2244 = vmatpush1.msra.mxu0 0.0
        %2245 = vmatprep.subr.mxu0 0.0
        %2246 = vmatpush1.msra.mxu0 0.0
        %2247 = vmatprep.subr.mxu0 0.0
        %2248 = vmatpush1.msra.mxu0 0.0
        %2249 = vmatprep.subr.mxu0 0.0
        %2250 = vmatpush1.msra.mxu0 0.0
        %2251 = vmatprep.subr.mxu0 0.0
        %2252 = vmatpush1.msra.mxu0 0.0
        %2253 = vmatprep.subr.mxu0 0.0
        %2254 = vmatpush1.msra.mxu0 0.0
        %2255 = vmatprep.subr.mxu0 0.0
        %2256 = vmatpush1.msra.mxu0 0.0
        %2257 = vmatprep.subr.mxu0 0.0
        %2258 = vmatpush1.msra.mxu0 0.0
        %2259 = vmatprep.subr.mxu0 0.0
        %2260 = vmatpush1.msra.mxu0 0.0
        %2261 = vmatprep.subr.mxu0 0.0
        %2262 = vmatpush1.msra.mxu0 0.0
        %2263 = vmatprep.subr.mxu0 0.0
        %2264 = vmatpush1.msra.mxu0 %v2208
        %2265 = vmatprep.subr.mxu0 0.0
        %2266 = vmatpush2.msra.mxu0 0.0
        %2267 = vmatprep.subr.mxu0 0.0
        %2268 = vmatpush2.msra.mxu0 0.0
        %2269 = vmatprep.subr.mxu0 0.0
        %2270 = vmatpush2.msra.mxu0 0.0
        %2271 = vmatprep.subr.mxu0 0.0
        %2272 = vmatpush2.msra.mxu0 0.0
        %2273 = vmatprep.subr.mxu0 0.0
        %2274 = vmatpush2.msra.mxu0 0.0
        %2275 = vmatprep.subr.mxu0 0.0
        %2276 = vmatpush2.msra.mxu0 0.0
        %2277 = vmatprep.subr.mxu0 0.0
        %2278 = vmatpush2.msra.mxu0 0.0
        %2279 = vmatprep.subr.mxu0 0.0
        %2280 = vmatpush2.msra.mxu0 0.0
        %2281 = vmatprep.subr.mxu0 0.0
        %2282 = vmatpush2.msra.mxu0 0.0
        %2283 = vmatprep.subr.mxu0 0.0
        %2284 = vmatpush2.msra.mxu0 0.0
        %2285 = vmatprep.subr.mxu0 0.0
        %2286 = vmatpush2.msra.mxu0 0.0
        %2287 = vmatprep.subr.mxu0 0.0
        %2288 = vmatpush2.msra.mxu0 0.0
        %2289 = vmatprep.subr.mxu0 0.0
        %2290 = vmatpush2.msra.mxu0 0.0
        %2291 = vmatprep.subr.mxu0 0.0
        %2292 = vmatpush2.msra.mxu0 0.0
        %2293 = vmatprep.subr.mxu0 0.0
        %2294 = vmatpush2.msra.mxu0 0.0
        %2295 = vmatprep.subr.mxu0 0.0
        %2296 = vmatpush2.msra.mxu0 0.0
        %2297 = vmatprep.mubr.f32.mxu0 0.0
        %2298 = vmatmul.mubr.f32.gmra.mxu0 %v2210
        %v2299 = vpop.f32.mrf.mxu0
        %v2300 = vadd.f32 0.0, %v2299
        %v2301 = vpop.f32.mrf.mxu0
        %2302 = vmatprep.mubr.f32.mxu0 0.0
        %2303 = vmatmul.mubr.f32.gmra.mxu0 %v2213
        %v2304 = vpop.f32.mrf.mxu0
        %v2305 = vadd.f32 0.0, %v2304
        %v2306 = vpop.f32.mrf.mxu0
        %2307 = vmatprep.mubr.f32.mxu0 0.0
        %2308 = vmatmul.mubr.f32.gmra.mxu0 %v2216
        %v2309 = vpop.f32.mrf.mxu0
        %v2310 = vadd.f32 0.0, %v2309
        %v2311 = vpop.f32.mrf.mxu0
        %2312 = vmatprep.mubr.f32.mxu0 0.0
        %2313 = vmatmul.mubr.f32.gmra.mxu0 %v2219
        %v2314 = vpop.f32.mrf.mxu0
        %v2315 = vadd.f32 0.0, %v2314
        %v2316 = vpop.f32.mrf.mxu0
        %2317 = vmatprep.mubr.f32.mxu0 0.0
        %2318 = vmatmul.mubr.f32.gmra.mxu0 %v2222
        %v2319 = vpop.f32.mrf.mxu0
        %v2320 = vadd.f32 0.0, %v2319
        %v2321 = vpop.f32.mrf.mxu0
        %2322 = vmatprep.mubr.f32.mxu0 0.0
        %2323 = vmatmul.mubr.f32.gmra.mxu0 %v2225
        %v2324 = vpop.f32.mrf.mxu0
        %v2325 = vadd.f32 0.0, %v2324
        %v2326 = vpop.f32.mrf.mxu0
        %2327 = vmatprep.mubr.f32.mxu0 0.0
        %2328 = vmatmul.mubr.f32.gmra.mxu0 %v2228
        %v2329 = vpop.f32.mrf.mxu0
        %v2330 = vadd.f32 0.0, %v2329
        %v2331 = vpop.f32.mrf.mxu0
        %2332 = vmatprep.mubr.f32.mxu0 0.0
        %2333 = vmatmul.mubr.f32.gmra.mxu0 %v2231
        %v2334 = vpop.f32.mrf.mxu0
        %v2335 = vadd.f32 0.0, %v2334
        %v2336 = vpop.f32.mrf.mxu0
        %2337 = vdwg.mxu0
        %v2338 = vadd.f32 %v2190, %v2300
        %v2339 = vadd.f32 %v2191, %v2305
        %v2340 = vadd.f32 %v2192, %v2310
        %v2341 = vadd.f32 %v2193, %v2315
        %v2342 = vadd.f32 %v2194, %v2320
        %v2343 = vadd.f32 %v2195, %v2325
        %v2344 = vadd.f32 %v2196, %v2330
        %v2345 = vadd.f32 %v2197, %v2335
        %v2346 = vld [vmem:[%s2198 + $0x1] sm:$0xff]
        %v2347 = vld [vmem:[%s2198 + $0x11] sm:$0xff]
        %v2348 = vld [vmem:[%s2198 + $0x21] sm:$0xff]
        %v2349 = vld [vmem:[%s2198 + $0x31] sm:$0xff]
        %v2350 = vld [vmem:[%s2198 + $0x41] sm:$0xff]
        %v2351 = vld [vmem:[%s2198 + $0x51] sm:$0xff]
        %v2352 = vld [vmem:[%s2198 + $0x61] sm:$0xff]
        %v2353 = vld [vmem:[%s2198 + $0x71] sm:$0xff]
        %s2354 = scalar_lea.vmem %s3, 104
        %v2355 = vld [vmem:[%s2354] sm:$0xff]
        %v2357 = vsel %vm467, %v2346, 0
        %v2360 = vsel %vm467, %v2347, 0
        %v2363 = vsel %vm467, %v2348, 0
        %v2366 = vsel %vm467, %v2349, 0
        %v2369 = vsel %vm467, %v2350, 0
        %v2372 = vsel %vm467, %v2351, 0
        %v2375 = vsel %vm467, %v2352, 0
        %v2378 = vsel %vm467, %v2353, 0
        %2380 = vmatprep.subr.mxu0 0.0
        %2381 = vmatpush1.msra.mxu0 0.0
        %2382 = vmatprep.subr.mxu0 0.0
        %2383 = vmatpush1.msra.mxu0 0.0
        %2384 = vmatprep.subr.mxu0 0.0
        %2385 = vmatpush1.msra.mxu0 0.0
        %2386 = vmatprep.subr.mxu0 0.0
        %2387 = vmatpush1.msra.mxu0 0.0
        %2388 = vmatprep.subr.mxu0 0.0
        %2389 = vmatpush1.msra.mxu0 0.0
        %2390 = vmatprep.subr.mxu0 0.0
        %2391 = vmatpush1.msra.mxu0 0.0
        %2392 = vmatprep.subr.mxu0 0.0
        %2393 = vmatpush1.msra.mxu0 0.0
        %2394 = vmatprep.subr.mxu0 0.0
        %2395 = vmatpush1.msra.mxu0 0.0
        %2396 = vmatprep.subr.mxu0 0.0
        %2397 = vmatpush1.msra.mxu0 0.0
        %2398 = vmatprep.subr.mxu0 0.0
        %2399 = vmatpush1.msra.mxu0 0.0
        %2400 = vmatprep.subr.mxu0 0.0
        %2401 = vmatpush1.msra.mxu0 0.0
        %2402 = vmatprep.subr.mxu0 0.0
        %2403 = vmatpush1.msra.mxu0 0.0
        %2404 = vmatprep.subr.mxu0 0.0
        %2405 = vmatpush1.msra.mxu0 0.0
        %2406 = vmatprep.subr.mxu0 0.0
        %2407 = vmatpush1.msra.mxu0 0.0
        %2408 = vmatprep.subr.mxu0 0.0
        %2409 = vmatpush1.msra.mxu0 0.0
        %2410 = vmatprep.subr.mxu0 0.0
        %2411 = vmatpush1.msra.mxu0 %v2355
        %2412 = vmatprep.subr.mxu0 0.0
        %2413 = vmatpush2.msra.mxu0 0.0
        %2414 = vmatprep.subr.mxu0 0.0
        %2415 = vmatpush2.msra.mxu0 0.0
        %2416 = vmatprep.subr.mxu0 0.0
        %2417 = vmatpush2.msra.mxu0 0.0
        %2418 = vmatprep.subr.mxu0 0.0
        %2419 = vmatpush2.msra.mxu0 0.0
        %2420 = vmatprep.subr.mxu0 0.0
        %2421 = vmatpush2.msra.mxu0 0.0
        %2422 = vmatprep.subr.mxu0 0.0
        %2423 = vmatpush2.msra.mxu0 0.0
        %2424 = vmatprep.subr.mxu0 0.0
        %2425 = vmatpush2.msra.mxu0 0.0
        %2426 = vmatprep.subr.mxu0 0.0
        %2427 = vmatpush2.msra.mxu0 0.0
        %2428 = vmatprep.subr.mxu0 0.0
        %2429 = vmatpush2.msra.mxu0 0.0
        %2430 = vmatprep.subr.mxu0 0.0
        %2431 = vmatpush2.msra.mxu0 0.0
        %2432 = vmatprep.subr.mxu0 0.0
        %2433 = vmatpush2.msra.mxu0 0.0
        %2434 = vmatprep.subr.mxu0 0.0
        %2435 = vmatpush2.msra.mxu0 0.0
        %2436 = vmatprep.subr.mxu0 0.0
        %2437 = vmatpush2.msra.mxu0 0.0
        %2438 = vmatprep.subr.mxu0 0.0
        %2439 = vmatpush2.msra.mxu0 0.0
        %2440 = vmatprep.subr.mxu0 0.0
        %2441 = vmatpush2.msra.mxu0 0.0
        %2442 = vmatprep.subr.mxu0 0.0
        %2443 = vmatpush2.msra.mxu0 0.0
        %2444 = vmatprep.mubr.f32.mxu0 0.0
        %2445 = vmatmul.mubr.f32.gmra.mxu0 %v2357
        %v2446 = vpop.f32.mrf.mxu0
        %v2447 = vadd.f32 0.0, %v2446
        %v2448 = vpop.f32.mrf.mxu0
        %2449 = vmatprep.mubr.f32.mxu0 0.0
        %2450 = vmatmul.mubr.f32.gmra.mxu0 %v2360
        %v2451 = vpop.f32.mrf.mxu0
        %v2452 = vadd.f32 0.0, %v2451
        %v2453 = vpop.f32.mrf.mxu0
        %2454 = vmatprep.mubr.f32.mxu0 0.0
        %2455 = vmatmul.mubr.f32.gmra.mxu0 %v2363
        %v2456 = vpop.f32.mrf.mxu0
        %v2457 = vadd.f32 0.0, %v2456
        %v2458 = vpop.f32.mrf.mxu0
        %2459 = vmatprep.mubr.f32.mxu0 0.0
        %2460 = vmatmul.mubr.f32.gmra.mxu0 %v2366
        %v2461 = vpop.f32.mrf.mxu0
        %v2462 = vadd.f32 0.0, %v2461
        %v2463 = vpop.f32.mrf.mxu0
        %2464 = vmatprep.mubr.f32.mxu0 0.0
        %2465 = vmatmul.mubr.f32.gmra.mxu0 %v2369
        %v2466 = vpop.f32.mrf.mxu0
        %v2467 = vadd.f32 0.0, %v2466
        %v2468 = vpop.f32.mrf.mxu0
        %2469 = vmatprep.mubr.f32.mxu0 0.0
        %2470 = vmatmul.mubr.f32.gmra.mxu0 %v2372
        %v2471 = vpop.f32.mrf.mxu0
        %v2472 = vadd.f32 0.0, %v2471
        %v2473 = vpop.f32.mrf.mxu0
        %2474 = vmatprep.mubr.f32.mxu0 0.0
        %2475 = vmatmul.mubr.f32.gmra.mxu0 %v2375
        %v2476 = vpop.f32.mrf.mxu0
        %v2477 = vadd.f32 0.0, %v2476
        %v2478 = vpop.f32.mrf.mxu0
        %2479 = vmatprep.mubr.f32.mxu0 0.0
        %2480 = vmatmul.mubr.f32.gmra.mxu0 %v2378
        %v2481 = vpop.f32.mrf.mxu0
        %v2482 = vadd.f32 0.0, %v2481
        %v2483 = vpop.f32.mrf.mxu0
        %2484 = vdwg.mxu0
        %v2485 = vadd.f32 %v2338, %v2447
        %v2486 = vadd.f32 %v2339, %v2452
        %v2487 = vadd.f32 %v2340, %v2457
        %v2488 = vadd.f32 %v2341, %v2462
        %v2489 = vadd.f32 %v2342, %v2467
        %v2490 = vadd.f32 %v2343, %v2472
        %v2491 = vadd.f32 %v2344, %v2477
        %v2492 = vadd.f32 %v2345, %v2482
        %v2493 = vld [vmem:[%s2198 + $0x2] sm:$0xff]
        %v2494 = vld [vmem:[%s2198 + $0x12] sm:$0xff]
        %v2495 = vld [vmem:[%s2198 + $0x22] sm:$0xff]
        %v2496 = vld [vmem:[%s2198 + $0x32] sm:$0xff]
        %v2497 = vld [vmem:[%s2198 + $0x42] sm:$0xff]
        %v2498 = vld [vmem:[%s2198 + $0x52] sm:$0xff]
        %v2499 = vld [vmem:[%s2198 + $0x62] sm:$0xff]
        %v2500 = vld [vmem:[%s2198 + $0x72] sm:$0xff]
        %s2501 = scalar_lea.vmem %s3, 112
        %v2502 = vld [vmem:[%s2501] sm:$0xff]
        %v2504 = vsel %vm467, %v2493, 0
        %v2507 = vsel %vm467, %v2494, 0
        %v2510 = vsel %vm467, %v2495, 0
        %v2513 = vsel %vm467, %v2496, 0
        %v2516 = vsel %vm467, %v2497, 0
        %v2519 = vsel %vm467, %v2498, 0
        %v2522 = vsel %vm467, %v2499, 0
        %v2525 = vsel %vm467, %v2500, 0
        %2527 = vmatprep.subr.mxu0 0.0
        %2528 = vmatpush1.msra.mxu0 0.0
        %2529 = vmatprep.subr.mxu0 0.0
        %2530 = vmatpush1.msra.mxu0 0.0
        %2531 = vmatprep.subr.mxu0 0.0
        %2532 = vmatpush1.msra.mxu0 0.0
        %2533 = vmatprep.subr.mxu0 0.0
        %2534 = vmatpush1.msra.mxu0 0.0
        %2535 = vmatprep.subr.mxu0 0.0
        %2536 = vmatpush1.msra.mxu0 0.0
        %2537 = vmatprep.subr.mxu0 0.0
        %2538 = vmatpush1.msra.mxu0 0.0
        %2539 = vmatprep.subr.mxu0 0.0
        %2540 = vmatpush1.msra.mxu0 0.0
        %2541 = vmatprep.subr.mxu0 0.0
        %2542 = vmatpush1.msra.mxu0 0.0
        %2543 = vmatprep.subr.mxu0 0.0
        %2544 = vmatpush1.msra.mxu0 0.0
        %2545 = vmatprep.subr.mxu0 0.0
        %2546 = vmatpush1.msra.mxu0 0.0
        %2547 = vmatprep.subr.mxu0 0.0
        %2548 = vmatpush1.msra.mxu0 0.0
        %2549 = vmatprep.subr.mxu0 0.0
        %2550 = vmatpush1.msra.mxu0 0.0
        %2551 = vmatprep.subr.mxu0 0.0
        %2552 = vmatpush1.msra.mxu0 0.0
        %2553 = vmatprep.subr.mxu0 0.0
        %2554 = vmatpush1.msra.mxu0 0.0
        %2555 = vmatprep.subr.mxu0 0.0
        %2556 = vmatpush1.msra.mxu0 0.0
        %2557 = vmatprep.subr.mxu0 0.0
        %2558 = vmatpush1.msra.mxu0 %v2502
        %2559 = vmatprep.subr.mxu0 0.0
        %2560 = vmatpush2.msra.mxu0 0.0
        %2561 = vmatprep.subr.mxu0 0.0
        %2562 = vmatpush2.msra.mxu0 0.0
        %2563 = vmatprep.subr.mxu0 0.0
        %2564 = vmatpush2.msra.mxu0 0.0
        %2565 = vmatprep.subr.mxu0 0.0
        %2566 = vmatpush2.msra.mxu0 0.0
        %2567 = vmatprep.subr.mxu0 0.0
        %2568 = vmatpush2.msra.mxu0 0.0
        %2569 = vmatprep.subr.mxu0 0.0
        %2570 = vmatpush2.msra.mxu0 0.0
        %2571 = vmatprep.subr.mxu0 0.0
        %2572 = vmatpush2.msra.mxu0 0.0
        %2573 = vmatprep.subr.mxu0 0.0
        %2574 = vmatpush2.msra.mxu0 0.0
        %2575 = vmatprep.subr.mxu0 0.0
        %2576 = vmatpush2.msra.mxu0 0.0
        %2577 = vmatprep.subr.mxu0 0.0
        %2578 = vmatpush2.msra.mxu0 0.0
        %2579 = vmatprep.subr.mxu0 0.0
        %2580 = vmatpush2.msra.mxu0 0.0
        %2581 = vmatprep.subr.mxu0 0.0
        %2582 = vmatpush2.msra.mxu0 0.0
        %2583 = vmatprep.subr.mxu0 0.0
        %2584 = vmatpush2.msra.mxu0 0.0
        %2585 = vmatprep.subr.mxu0 0.0
        %2586 = vmatpush2.msra.mxu0 0.0
        %2587 = vmatprep.subr.mxu0 0.0
        %2588 = vmatpush2.msra.mxu0 0.0
        %2589 = vmatprep.subr.mxu0 0.0
        %2590 = vmatpush2.msra.mxu0 0.0
        %2591 = vmatprep.mubr.f32.mxu0 0.0
        %2592 = vmatmul.mubr.f32.gmra.mxu0 %v2504
        %v2593 = vpop.f32.mrf.mxu0
        %v2594 = vadd.f32 0.0, %v2593
        %v2595 = vpop.f32.mrf.mxu0
        %2596 = vmatprep.mubr.f32.mxu0 0.0
        %2597 = vmatmul.mubr.f32.gmra.mxu0 %v2507
        %v2598 = vpop.f32.mrf.mxu0
        %v2599 = vadd.f32 0.0, %v2598
        %v2600 = vpop.f32.mrf.mxu0
        %2601 = vmatprep.mubr.f32.mxu0 0.0
        %2602 = vmatmul.mubr.f32.gmra.mxu0 %v2510
        %v2603 = vpop.f32.mrf.mxu0
        %v2604 = vadd.f32 0.0, %v2603
        %v2605 = vpop.f32.mrf.mxu0
        %2606 = vmatprep.mubr.f32.mxu0 0.0
        %2607 = vmatmul.mubr.f32.gmra.mxu0 %v2513
        %v2608 = vpop.f32.mrf.mxu0
        %v2609 = vadd.f32 0.0, %v2608
        %v2610 = vpop.f32.mrf.mxu0
        %2611 = vmatprep.mubr.f32.mxu0 0.0
        %2612 = vmatmul.mubr.f32.gmra.mxu0 %v2516
        %v2613 = vpop.f32.mrf.mxu0
        %v2614 = vadd.f32 0.0, %v2613
        %v2615 = vpop.f32.mrf.mxu0
        %2616 = vmatprep.mubr.f32.mxu0 0.0
        %2617 = vmatmul.mubr.f32.gmra.mxu0 %v2519
        %v2618 = vpop.f32.mrf.mxu0
        %v2619 = vadd.f32 0.0, %v2618
        %v2620 = vpop.f32.mrf.mxu0
        %2621 = vmatprep.mubr.f32.mxu0 0.0
        %2622 = vmatmul.mubr.f32.gmra.mxu0 %v2522
        %v2623 = vpop.f32.mrf.mxu0
        %v2624 = vadd.f32 0.0, %v2623
        %v2625 = vpop.f32.mrf.mxu0
        %2626 = vmatprep.mubr.f32.mxu0 0.0
        %2627 = vmatmul.mubr.f32.gmra.mxu0 %v2525
        %v2628 = vpop.f32.mrf.mxu0
        %v2629 = vadd.f32 0.0, %v2628
        %v2630 = vpop.f32.mrf.mxu0
        %2631 = vdwg.mxu0
        %v2632 = vadd.f32 %v2485, %v2594
        %v2633 = vadd.f32 %v2486, %v2599
        %v2634 = vadd.f32 %v2487, %v2604
        %v2635 = vadd.f32 %v2488, %v2609
        %v2636 = vadd.f32 %v2489, %v2614
        %v2637 = vadd.f32 %v2490, %v2619
        %v2638 = vadd.f32 %v2491, %v2624
        %v2639 = vadd.f32 %v2492, %v2629
        %s2640 = scalar_lea.vmem %s426, 32
        %v2641 = vld [vmem:[%s2640] sm:$0xff]
        %v2642 = vld [vmem:[%s2640 + $0x10] sm:$0xff]
        %v2643 = vld [vmem:[%s2640 + $0x20] sm:$0xff]
        %v2644 = vld [vmem:[%s2640 + $0x30] sm:$0xff]
        %v2645 = vld [vmem:[%s2640 + $0x40] sm:$0xff]
        %v2646 = vld [vmem:[%s2640 + $0x50] sm:$0xff]
        %v2647 = vld [vmem:[%s2640 + $0x60] sm:$0xff]
        %v2648 = vld [vmem:[%s2640 + $0x70] sm:$0xff]
        %s2649 = scalar_lea.vmem %s3, 120
        %v2650 = vld [vmem:[%s2649] sm:$0xff]
        %v2652 = vsel %vm467, %v2641, 0
        %v2655 = vsel %vm467, %v2642, 0
        %v2658 = vsel %vm467, %v2643, 0
        %v2661 = vsel %vm467, %v2644, 0
        %v2664 = vsel %vm467, %v2645, 0
        %v2667 = vsel %vm467, %v2646, 0
        %v2670 = vsel %vm467, %v2647, 0
        %v2673 = vsel %vm467, %v2648, 0
        %2675 = vmatprep.subr.mxu0 0.0
        %2676 = vmatpush1.msra.mxu0 0.0
        %2677 = vmatprep.subr.mxu0 0.0
        %2678 = vmatpush1.msra.mxu0 0.0
        %2679 = vmatprep.subr.mxu0 0.0
        %2680 = vmatpush1.msra.mxu0 0.0
        %2681 = vmatprep.subr.mxu0 0.0
        %2682 = vmatpush1.msra.mxu0 0.0
        %2683 = vmatprep.subr.mxu0 0.0
        %2684 = vmatpush1.msra.mxu0 0.0
        %2685 = vmatprep.subr.mxu0 0.0
        %2686 = vmatpush1.msra.mxu0 0.0
        %2687 = vmatprep.subr.mxu0 0.0
        %2688 = vmatpush1.msra.mxu0 0.0
        %2689 = vmatprep.subr.mxu0 0.0
        %2690 = vmatpush1.msra.mxu0 0.0
        %2691 = vmatprep.subr.mxu0 0.0
        %2692 = vmatpush1.msra.mxu0 0.0
        %2693 = vmatprep.subr.mxu0 0.0
        %2694 = vmatpush1.msra.mxu0 0.0
        %2695 = vmatprep.subr.mxu0 0.0
        %2696 = vmatpush1.msra.mxu0 0.0
        %2697 = vmatprep.subr.mxu0 0.0
        %2698 = vmatpush1.msra.mxu0 0.0
        %2699 = vmatprep.subr.mxu0 0.0
        %2700 = vmatpush1.msra.mxu0 0.0
        %2701 = vmatprep.subr.mxu0 0.0
        %2702 = vmatpush1.msra.mxu0 0.0
        %2703 = vmatprep.subr.mxu0 0.0
        %2704 = vmatpush1.msra.mxu0 0.0
        %2705 = vmatprep.subr.mxu0 0.0
        %2706 = vmatpush1.msra.mxu0 %v2650
        %2707 = vmatprep.subr.mxu0 0.0
        %2708 = vmatpush2.msra.mxu0 0.0
        %2709 = vmatprep.subr.mxu0 0.0
        %2710 = vmatpush2.msra.mxu0 0.0
        %2711 = vmatprep.subr.mxu0 0.0
        %2712 = vmatpush2.msra.mxu0 0.0
        %2713 = vmatprep.subr.mxu0 0.0
        %2714 = vmatpush2.msra.mxu0 0.0
        %2715 = vmatprep.subr.mxu0 0.0
        %2716 = vmatpush2.msra.mxu0 0.0
        %2717 = vmatprep.subr.mxu0 0.0
        %2718 = vmatpush2.msra.mxu0 0.0
        %2719 = vmatprep.subr.mxu0 0.0
        %2720 = vmatpush2.msra.mxu0 0.0
        %2721 = vmatprep.subr.mxu0 0.0
        %2722 = vmatpush2.msra.mxu0 0.0
        %2723 = vmatprep.subr.mxu0 0.0
        %2724 = vmatpush2.msra.mxu0 0.0
        %2725 = vmatprep.subr.mxu0 0.0
        %2726 = vmatpush2.msra.mxu0 0.0
        %2727 = vmatprep.subr.mxu0 0.0
        %2728 = vmatpush2.msra.mxu0 0.0
        %2729 = vmatprep.subr.mxu0 0.0
        %2730 = vmatpush2.msra.mxu0 0.0
        %2731 = vmatprep.subr.mxu0 0.0
        %2732 = vmatpush2.msra.mxu0 0.0
        %2733 = vmatprep.subr.mxu0 0.0
        %2734 = vmatpush2.msra.mxu0 0.0
        %2735 = vmatprep.subr.mxu0 0.0
        %2736 = vmatpush2.msra.mxu0 0.0
        %2737 = vmatprep.subr.mxu0 0.0
        %2738 = vmatpush2.msra.mxu0 0.0
        %2739 = vmatprep.mubr.f32.mxu0 0.0
        %2740 = vmatmul.mubr.f32.gmra.mxu0 %v2652
        %v2741 = vpop.f32.mrf.mxu0
        %v2742 = vadd.f32 0.0, %v2741
        %v2743 = vpop.f32.mrf.mxu0
        %2744 = vmatprep.mubr.f32.mxu0 0.0
        %2745 = vmatmul.mubr.f32.gmra.mxu0 %v2655
        %v2746 = vpop.f32.mrf.mxu0
        %v2747 = vadd.f32 0.0, %v2746
        %v2748 = vpop.f32.mrf.mxu0
        %2749 = vmatprep.mubr.f32.mxu0 0.0
        %2750 = vmatmul.mubr.f32.gmra.mxu0 %v2658
        %v2751 = vpop.f32.mrf.mxu0
        %v2752 = vadd.f32 0.0, %v2751
        %v2753 = vpop.f32.mrf.mxu0
        %2754 = vmatprep.mubr.f32.mxu0 0.0
        %2755 = vmatmul.mubr.f32.gmra.mxu0 %v2661
        %v2756 = vpop.f32.mrf.mxu0
        %v2757 = vadd.f32 0.0, %v2756
        %v2758 = vpop.f32.mrf.mxu0
        %2759 = vmatprep.mubr.f32.mxu0 0.0
        %2760 = vmatmul.mubr.f32.gmra.mxu0 %v2664
        %v2761 = vpop.f32.mrf.mxu0
        %v2762 = vadd.f32 0.0, %v2761
        %v2763 = vpop.f32.mrf.mxu0
        %2764 = vmatprep.mubr.f32.mxu0 0.0
        %2765 = vmatmul.mubr.f32.gmra.mxu0 %v2667
        %v2766 = vpop.f32.mrf.mxu0
        %v2767 = vadd.f32 0.0, %v2766
        %v2768 = vpop.f32.mrf.mxu0
        %2769 = vmatprep.mubr.f32.mxu0 0.0
        %2770 = vmatmul.mubr.f32.gmra.mxu0 %v2670
        %v2771 = vpop.f32.mrf.mxu0
        %v2772 = vadd.f32 0.0, %v2771
        %v2773 = vpop.f32.mrf.mxu0
        %2774 = vmatprep.mubr.f32.mxu0 0.0
        %2775 = vmatmul.mubr.f32.gmra.mxu0 %v2673
        %v2776 = vpop.f32.mrf.mxu0
        %v2777 = vadd.f32 0.0, %v2776
        %v2778 = vpop.f32.mrf.mxu0
        %2779 = vdwg.mxu0
        %v2780 = vadd.f32 %v2632, %v2742
        %v2781 = vadd.f32 %v2633, %v2747
        %v2782 = vadd.f32 %v2634, %v2752
        %v2783 = vadd.f32 %v2635, %v2757
        %v2784 = vadd.f32 %v2636, %v2762
        %v2785 = vadd.f32 %v2637, %v2767
        %v2786 = vadd.f32 %v2638, %v2772
        %v2787 = vadd.f32 %v2639, %v2777
        %v2788 = vld [vmem:[%s2640 + $0x1] sm:$0xff]
        %v2789 = vld [vmem:[%s2640 + $0x11] sm:$0xff]
        %v2790 = vld [vmem:[%s2640 + $0x21] sm:$0xff]
        %v2791 = vld [vmem:[%s2640 + $0x31] sm:$0xff]
        %v2792 = vld [vmem:[%s2640 + $0x41] sm:$0xff]
        %v2793 = vld [vmem:[%s2640 + $0x51] sm:$0xff]
        %v2794 = vld [vmem:[%s2640 + $0x61] sm:$0xff]
        %v2795 = vld [vmem:[%s2640 + $0x71] sm:$0xff]
        %s2796 = scalar_lea.vmem %s3, 128
        %v2797 = vld [vmem:[%s2796] sm:$0xff]
        %v2799 = vsel %vm467, %v2788, 0
        %v2802 = vsel %vm467, %v2789, 0
        %v2805 = vsel %vm467, %v2790, 0
        %v2808 = vsel %vm467, %v2791, 0
        %v2811 = vsel %vm467, %v2792, 0
        %v2814 = vsel %vm467, %v2793, 0
        %v2817 = vsel %vm467, %v2794, 0
        %v2820 = vsel %vm467, %v2795, 0
        %2822 = vmatprep.subr.mxu0 0.0
        %2823 = vmatpush1.msra.mxu0 0.0
        %2824 = vmatprep.subr.mxu0 0.0
        %2825 = vmatpush1.msra.mxu0 0.0
        %2826 = vmatprep.subr.mxu0 0.0
        %2827 = vmatpush1.msra.mxu0 0.0
        %2828 = vmatprep.subr.mxu0 0.0
        %2829 = vmatpush1.msra.mxu0 0.0
        %2830 = vmatprep.subr.mxu0 0.0
        %2831 = vmatpush1.msra.mxu0 0.0
        %2832 = vmatprep.subr.mxu0 0.0
        %2833 = vmatpush1.msra.mxu0 0.0
        %2834 = vmatprep.subr.mxu0 0.0
        %2835 = vmatpush1.msra.mxu0 0.0
        %2836 = vmatprep.subr.mxu0 0.0
        %2837 = vmatpush1.msra.mxu0 0.0
        %2838 = vmatprep.subr.mxu0 0.0
        %2839 = vmatpush1.msra.mxu0 0.0
        %2840 = vmatprep.subr.mxu0 0.0
        %2841 = vmatpush1.msra.mxu0 0.0
        %2842 = vmatprep.subr.mxu0 0.0
        %2843 = vmatpush1.msra.mxu0 0.0
        %2844 = vmatprep.subr.mxu0 0.0
        %2845 = vmatpush1.msra.mxu0 0.0
        %2846 = vmatprep.subr.mxu0 0.0
        %2847 = vmatpush1.msra.mxu0 0.0
        %2848 = vmatprep.subr.mxu0 0.0
        %2849 = vmatpush1.msra.mxu0 0.0
        %2850 = vmatprep.subr.mxu0 0.0
        %2851 = vmatpush1.msra.mxu0 0.0
        %2852 = vmatprep.subr.mxu0 0.0
        %2853 = vmatpush1.msra.mxu0 %v2797
        %2854 = vmatprep.subr.mxu0 0.0
        %2855 = vmatpush2.msra.mxu0 0.0
        %2856 = vmatprep.subr.mxu0 0.0
        %2857 = vmatpush2.msra.mxu0 0.0
        %2858 = vmatprep.subr.mxu0 0.0
        %2859 = vmatpush2.msra.mxu0 0.0
        %2860 = vmatprep.subr.mxu0 0.0
        %2861 = vmatpush2.msra.mxu0 0.0
        %2862 = vmatprep.subr.mxu0 0.0
        %2863 = vmatpush2.msra.mxu0 0.0
        %2864 = vmatprep.subr.mxu0 0.0
        %2865 = vmatpush2.msra.mxu0 0.0
        %2866 = vmatprep.subr.mxu0 0.0
        %2867 = vmatpush2.msra.mxu0 0.0
        %2868 = vmatprep.subr.mxu0 0.0
        %2869 = vmatpush2.msra.mxu0 0.0
        %2870 = vmatprep.subr.mxu0 0.0
        %2871 = vmatpush2.msra.mxu0 0.0
        %2872 = vmatprep.subr.mxu0 0.0
        %2873 = vmatpush2.msra.mxu0 0.0
        %2874 = vmatprep.subr.mxu0 0.0
        %2875 = vmatpush2.msra.mxu0 0.0
        %2876 = vmatprep.subr.mxu0 0.0
        %2877 = vmatpush2.msra.mxu0 0.0
        %2878 = vmatprep.subr.mxu0 0.0
        %2879 = vmatpush2.msra.mxu0 0.0
        %2880 = vmatprep.subr.mxu0 0.0
        %2881 = vmatpush2.msra.mxu0 0.0
        %2882 = vmatprep.subr.mxu0 0.0
        %2883 = vmatpush2.msra.mxu0 0.0
        %2884 = vmatprep.subr.mxu0 0.0
        %2885 = vmatpush2.msra.mxu0 0.0
        %2886 = vmatprep.mubr.f32.mxu0 0.0
        %2887 = vmatmul.mubr.f32.gmra.mxu0 %v2799
        %v2888 = vpop.f32.mrf.mxu0
        %v2889 = vadd.f32 0.0, %v2888
        %v2890 = vpop.f32.mrf.mxu0
        %2891 = vmatprep.mubr.f32.mxu0 0.0
        %2892 = vmatmul.mubr.f32.gmra.mxu0 %v2802
        %v2893 = vpop.f32.mrf.mxu0
        %v2894 = vadd.f32 0.0, %v2893
        %v2895 = vpop.f32.mrf.mxu0
        %2896 = vmatprep.mubr.f32.mxu0 0.0
        %2897 = vmatmul.mubr.f32.gmra.mxu0 %v2805
        %v2898 = vpop.f32.mrf.mxu0
        %v2899 = vadd.f32 0.0, %v2898
        %v2900 = vpop.f32.mrf.mxu0
        %2901 = vmatprep.mubr.f32.mxu0 0.0
        %2902 = vmatmul.mubr.f32.gmra.mxu0 %v2808
        %v2903 = vpop.f32.mrf.mxu0
        %v2904 = vadd.f32 0.0, %v2903
        %v2905 = vpop.f32.mrf.mxu0
        %2906 = vmatprep.mubr.f32.mxu0 0.0
        %2907 = vmatmul.mubr.f32.gmra.mxu0 %v2811
        %v2908 = vpop.f32.mrf.mxu0
        %v2909 = vadd.f32 0.0, %v2908
        %v2910 = vpop.f32.mrf.mxu0
        %2911 = vmatprep.mubr.f32.mxu0 0.0
        %2912 = vmatmul.mubr.f32.gmra.mxu0 %v2814
        %v2913 = vpop.f32.mrf.mxu0
        %v2914 = vadd.f32 0.0, %v2913
        %v2915 = vpop.f32.mrf.mxu0
        %2916 = vmatprep.mubr.f32.mxu0 0.0
        %2917 = vmatmul.mubr.f32.gmra.mxu0 %v2817
        %v2918 = vpop.f32.mrf.mxu0
        %v2919 = vadd.f32 0.0, %v2918
        %v2920 = vpop.f32.mrf.mxu0
        %2921 = vmatprep.mubr.f32.mxu0 0.0
        %2922 = vmatmul.mubr.f32.gmra.mxu0 %v2820
        %v2923 = vpop.f32.mrf.mxu0
        %v2924 = vadd.f32 0.0, %v2923
        %v2925 = vpop.f32.mrf.mxu0
        %2926 = vdwg.mxu0
        %v2927 = vadd.f32 %v2780, %v2889
        %v2928 = vadd.f32 %v2781, %v2894
        %v2929 = vadd.f32 %v2782, %v2899
        %v2930 = vadd.f32 %v2783, %v2904
        %v2931 = vadd.f32 %v2784, %v2909
        %v2932 = vadd.f32 %v2785, %v2914
        %v2933 = vadd.f32 %v2786, %v2919
        %v2934 = vadd.f32 %v2787, %v2924
        %v2935 = vld [vmem:[%s2640 + $0x2] sm:$0xff]
        %v2936 = vld [vmem:[%s2640 + $0x12] sm:$0xff]
        %v2937 = vld [vmem:[%s2640 + $0x22] sm:$0xff]
        %v2938 = vld [vmem:[%s2640 + $0x32] sm:$0xff]
        %v2939 = vld [vmem:[%s2640 + $0x42] sm:$0xff]
        %v2940 = vld [vmem:[%s2640 + $0x52] sm:$0xff]
        %v2941 = vld [vmem:[%s2640 + $0x62] sm:$0xff]
        %v2942 = vld [vmem:[%s2640 + $0x72] sm:$0xff]
        %s2943 = scalar_lea.vmem %s3, 136
        %v2944 = vld [vmem:[%s2943] sm:$0xff]
        %v2946 = vsel %vm467, %v2935, 0
        %v2949 = vsel %vm467, %v2936, 0
        %v2952 = vsel %vm467, %v2937, 0
        %v2955 = vsel %vm467, %v2938, 0
        %v2958 = vsel %vm467, %v2939, 0
        %v2961 = vsel %vm467, %v2940, 0
        %v2964 = vsel %vm467, %v2941, 0
        %v2967 = vsel %vm467, %v2942, 0
        %2969 = vmatprep.subr.mxu0 0.0
        %2970 = vmatpush1.msra.mxu0 0.0
        %2971 = vmatprep.subr.mxu0 0.0
        %2972 = vmatpush1.msra.mxu0 0.0
        %2973 = vmatprep.subr.mxu0 0.0
        %2974 = vmatpush1.msra.mxu0 0.0
        %2975 = vmatprep.subr.mxu0 0.0
        %2976 = vmatpush1.msra.mxu0 0.0
        %2977 = vmatprep.subr.mxu0 0.0
        %2978 = vmatpush1.msra.mxu0 0.0
        %2979 = vmatprep.subr.mxu0 0.0
        %2980 = vmatpush1.msra.mxu0 0.0
        %2981 = vmatprep.subr.mxu0 0.0
        %2982 = vmatpush1.msra.mxu0 0.0
        %2983 = vmatprep.subr.mxu0 0.0
        %2984 = vmatpush1.msra.mxu0 0.0
        %2985 = vmatprep.subr.mxu0 0.0
        %2986 = vmatpush1.msra.mxu0 0.0
        %2987 = vmatprep.subr.mxu0 0.0
        %2988 = vmatpush1.msra.mxu0 0.0
        %2989 = vmatprep.subr.mxu0 0.0
        %2990 = vmatpush1.msra.mxu0 0.0
        %2991 = vmatprep.subr.mxu0 0.0
        %2992 = vmatpush1.msra.mxu0 0.0
        %2993 = vmatprep.subr.mxu0 0.0
        %2994 = vmatpush1.msra.mxu0 0.0
        %2995 = vmatprep.subr.mxu0 0.0
        %2996 = vmatpush1.msra.mxu0 0.0
        %2997 = vmatprep.subr.mxu0 0.0
        %2998 = vmatpush1.msra.mxu0 0.0
        %2999 = vmatprep.subr.mxu0 0.0
        %3000 = vmatpush1.msra.mxu0 %v2944
        %3001 = vmatprep.subr.mxu0 0.0
        %3002 = vmatpush2.msra.mxu0 0.0
        %3003 = vmatprep.subr.mxu0 0.0
        %3004 = vmatpush2.msra.mxu0 0.0
        %3005 = vmatprep.subr.mxu0 0.0
        %3006 = vmatpush2.msra.mxu0 0.0
        %3007 = vmatprep.subr.mxu0 0.0
        %3008 = vmatpush2.msra.mxu0 0.0
        %3009 = vmatprep.subr.mxu0 0.0
        %3010 = vmatpush2.msra.mxu0 0.0
        %3011 = vmatprep.subr.mxu0 0.0
        %3012 = vmatpush2.msra.mxu0 0.0
        %3013 = vmatprep.subr.mxu0 0.0
        %3014 = vmatpush2.msra.mxu0 0.0
        %3015 = vmatprep.subr.mxu0 0.0
        %3016 = vmatpush2.msra.mxu0 0.0
        %3017 = vmatprep.subr.mxu0 0.0
        %3018 = vmatpush2.msra.mxu0 0.0
        %3019 = vmatprep.subr.mxu0 0.0
        %3020 = vmatpush2.msra.mxu0 0.0
        %3021 = vmatprep.subr.mxu0 0.0
        %3022 = vmatpush2.msra.mxu0 0.0
        %3023 = vmatprep.subr.mxu0 0.0
        %3024 = vmatpush2.msra.mxu0 0.0
        %3025 = vmatprep.subr.mxu0 0.0
        %3026 = vmatpush2.msra.mxu0 0.0
        %3027 = vmatprep.subr.mxu0 0.0
        %3028 = vmatpush2.msra.mxu0 0.0
        %3029 = vmatprep.subr.mxu0 0.0
        %3030 = vmatpush2.msra.mxu0 0.0
        %3031 = vmatprep.subr.mxu0 0.0
        %3032 = vmatpush2.msra.mxu0 0.0
        %3033 = vmatprep.mubr.f32.mxu0 0.0
        %3034 = vmatmul.mubr.f32.gmra.mxu0 %v2946
        %v3035 = vpop.f32.mrf.mxu0
        %v3036 = vadd.f32 0.0, %v3035
        %v3037 = vpop.f32.mrf.mxu0
        %3038 = vmatprep.mubr.f32.mxu0 0.0
        %3039 = vmatmul.mubr.f32.gmra.mxu0 %v2949
        %v3040 = vpop.f32.mrf.mxu0
        %v3041 = vadd.f32 0.0, %v3040
        %v3042 = vpop.f32.mrf.mxu0
        %3043 = vmatprep.mubr.f32.mxu0 0.0
        %3044 = vmatmul.mubr.f32.gmra.mxu0 %v2952
        %v3045 = vpop.f32.mrf.mxu0
        %v3046 = vadd.f32 0.0, %v3045
        %v3047 = vpop.f32.mrf.mxu0
        %3048 = vmatprep.mubr.f32.mxu0 0.0
        %3049 = vmatmul.mubr.f32.gmra.mxu0 %v2955
        %v3050 = vpop.f32.mrf.mxu0
        %v3051 = vadd.f32 0.0, %v3050
        %v3052 = vpop.f32.mrf.mxu0
        %3053 = vmatprep.mubr.f32.mxu0 0.0
        %3054 = vmatmul.mubr.f32.gmra.mxu0 %v2958
        %v3055 = vpop.f32.mrf.mxu0
        %v3056 = vadd.f32 0.0, %v3055
        %v3057 = vpop.f32.mrf.mxu0
        %3058 = vmatprep.mubr.f32.mxu0 0.0
        %3059 = vmatmul.mubr.f32.gmra.mxu0 %v2961
        %v3060 = vpop.f32.mrf.mxu0
        %v3061 = vadd.f32 0.0, %v3060
        %v3062 = vpop.f32.mrf.mxu0
        %3063 = vmatprep.mubr.f32.mxu0 0.0
        %3064 = vmatmul.mubr.f32.gmra.mxu0 %v2964
        %v3065 = vpop.f32.mrf.mxu0
        %v3066 = vadd.f32 0.0, %v3065
        %v3067 = vpop.f32.mrf.mxu0
        %3068 = vmatprep.mubr.f32.mxu0 0.0
        %3069 = vmatmul.mubr.f32.gmra.mxu0 %v2967
        %v3070 = vpop.f32.mrf.mxu0
        %v3071 = vadd.f32 0.0, %v3070
        %v3072 = vpop.f32.mrf.mxu0
        %3073 = vdwg.mxu0
        %v3074 = vadd.f32 %v2927, %v3036
        %v3075 = vadd.f32 %v2928, %v3041
        %v3076 = vadd.f32 %v2929, %v3046
        %v3077 = vadd.f32 %v2930, %v3051
        %v3078 = vadd.f32 %v2931, %v3056
        %v3079 = vadd.f32 %v2932, %v3061
        %v3080 = vadd.f32 %v2933, %v3066
        %v3081 = vadd.f32 %v2934, %v3071
        %v3082 = vld [vmem:[%s437] sm:$0xff]
        %v3083 = vld [vmem:[%s437 + $0x10] sm:$0xff]
        %v3084 = vld [vmem:[%s437 + $0x20] sm:$0xff]
        %v3085 = vld [vmem:[%s437 + $0x30] sm:$0xff]
        %v3086 = vld [vmem:[%s437 + $0x40] sm:$0xff]
        %v3087 = vld [vmem:[%s437 + $0x50] sm:$0xff]
        %v3088 = vld [vmem:[%s437 + $0x60] sm:$0xff]
        %v3089 = vld [vmem:[%s437 + $0x70] sm:$0xff]
        %s3090 = scalar_lea.vmem %s3, 144
        %v3091 = vld [vmem:[%s3090] sm:$0xff]
        %v3093 = vsel %vm467, %v3082, 0
        %v3096 = vsel %vm467, %v3083, 0
        %v3099 = vsel %vm467, %v3084, 0
        %v3102 = vsel %vm467, %v3085, 0
        %v3105 = vsel %vm467, %v3086, 0
        %v3108 = vsel %vm467, %v3087, 0
        %v3111 = vsel %vm467, %v3088, 0
        %v3114 = vsel %vm467, %v3089, 0
        %3116 = vmatprep.subr.mxu0 0.0
        %3117 = vmatpush1.msra.mxu0 0.0
        %3118 = vmatprep.subr.mxu0 0.0
        %3119 = vmatpush1.msra.mxu0 0.0
        %3120 = vmatprep.subr.mxu0 0.0
        %3121 = vmatpush1.msra.mxu0 0.0
        %3122 = vmatprep.subr.mxu0 0.0
        %3123 = vmatpush1.msra.mxu0 0.0
        %3124 = vmatprep.subr.mxu0 0.0
        %3125 = vmatpush1.msra.mxu0 0.0
        %3126 = vmatprep.subr.mxu0 0.0
        %3127 = vmatpush1.msra.mxu0 0.0
        %3128 = vmatprep.subr.mxu0 0.0
        %3129 = vmatpush1.msra.mxu0 0.0
        %3130 = vmatprep.subr.mxu0 0.0
        %3131 = vmatpush1.msra.mxu0 0.0
        %3132 = vmatprep.subr.mxu0 0.0
        %3133 = vmatpush1.msra.mxu0 0.0
        %3134 = vmatprep.subr.mxu0 0.0
        %3135 = vmatpush1.msra.mxu0 0.0
        %3136 = vmatprep.subr.mxu0 0.0
        %3137 = vmatpush1.msra.mxu0 0.0
        %3138 = vmatprep.subr.mxu0 0.0
        %3139 = vmatpush1.msra.mxu0 0.0
        %3140 = vmatprep.subr.mxu0 0.0
        %3141 = vmatpush1.msra.mxu0 0.0
        %3142 = vmatprep.subr.mxu0 0.0
        %3143 = vmatpush1.msra.mxu0 0.0
        %3144 = vmatprep.subr.mxu0 0.0
        %3145 = vmatpush1.msra.mxu0 0.0
        %3146 = vmatprep.subr.mxu0 0.0
        %3147 = vmatpush1.msra.mxu0 %v3091
        %3148 = vmatprep.subr.mxu0 0.0
        %3149 = vmatpush2.msra.mxu0 0.0
        %3150 = vmatprep.subr.mxu0 0.0
        %3151 = vmatpush2.msra.mxu0 0.0
        %3152 = vmatprep.subr.mxu0 0.0
        %3153 = vmatpush2.msra.mxu0 0.0
        %3154 = vmatprep.subr.mxu0 0.0
        %3155 = vmatpush2.msra.mxu0 0.0
        %3156 = vmatprep.subr.mxu0 0.0
        %3157 = vmatpush2.msra.mxu0 0.0
        %3158 = vmatprep.subr.mxu0 0.0
        %3159 = vmatpush2.msra.mxu0 0.0
        %3160 = vmatprep.subr.mxu0 0.0
        %3161 = vmatpush2.msra.mxu0 0.0
        %3162 = vmatprep.subr.mxu0 0.0
        %3163 = vmatpush2.msra.mxu0 0.0
        %3164 = vmatprep.subr.mxu0 0.0
        %3165 = vmatpush2.msra.mxu0 0.0
        %3166 = vmatprep.subr.mxu0 0.0
        %3167 = vmatpush2.msra.mxu0 0.0
        %3168 = vmatprep.subr.mxu0 0.0
        %3169 = vmatpush2.msra.mxu0 0.0
        %3170 = vmatprep.subr.mxu0 0.0
        %3171 = vmatpush2.msra.mxu0 0.0
        %3172 = vmatprep.subr.mxu0 0.0
        %3173 = vmatpush2.msra.mxu0 0.0
        %3174 = vmatprep.subr.mxu0 0.0
        %3175 = vmatpush2.msra.mxu0 0.0
        %3176 = vmatprep.subr.mxu0 0.0
        %3177 = vmatpush2.msra.mxu0 0.0
        %3178 = vmatprep.subr.mxu0 0.0
        %3179 = vmatpush2.msra.mxu0 0.0
        %3180 = vmatprep.mubr.f32.mxu0 0.0
        %3181 = vmatmul.mubr.f32.gmra.mxu0 %v3093
        %v3182 = vpop.f32.mrf.mxu0
        %v3183 = vadd.f32 0.0, %v3182
        %v3184 = vpop.f32.mrf.mxu0
        %3185 = vmatprep.mubr.f32.mxu0 0.0
        %3186 = vmatmul.mubr.f32.gmra.mxu0 %v3096
        %v3187 = vpop.f32.mrf.mxu0
        %v3188 = vadd.f32 0.0, %v3187
        %v3189 = vpop.f32.mrf.mxu0
        %3190 = vmatprep.mubr.f32.mxu0 0.0
        %3191 = vmatmul.mubr.f32.gmra.mxu0 %v3099
        %v3192 = vpop.f32.mrf.mxu0
        %v3193 = vadd.f32 0.0, %v3192
        %v3194 = vpop.f32.mrf.mxu0
        %3195 = vmatprep.mubr.f32.mxu0 0.0
        %3196 = vmatmul.mubr.f32.gmra.mxu0 %v3102
        %v3197 = vpop.f32.mrf.mxu0
        %v3198 = vadd.f32 0.0, %v3197
        %v3199 = vpop.f32.mrf.mxu0
        %3200 = vmatprep.mubr.f32.mxu0 0.0
        %3201 = vmatmul.mubr.f32.gmra.mxu0 %v3105
        %v3202 = vpop.f32.mrf.mxu0
        %v3203 = vadd.f32 0.0, %v3202
        %v3204 = vpop.f32.mrf.mxu0
        %3205 = vmatprep.mubr.f32.mxu0 0.0
        %3206 = vmatmul.mubr.f32.gmra.mxu0 %v3108
        %v3207 = vpop.f32.mrf.mxu0
        %v3208 = vadd.f32 0.0, %v3207
        %v3209 = vpop.f32.mrf.mxu0
        %3210 = vmatprep.mubr.f32.mxu0 0.0
        %3211 = vmatmul.mubr.f32.gmra.mxu0 %v3111
        %v3212 = vpop.f32.mrf.mxu0
        %v3213 = vadd.f32 0.0, %v3212
        %v3214 = vpop.f32.mrf.mxu0
        %3215 = vmatprep.mubr.f32.mxu0 0.0
        %3216 = vmatmul.mubr.f32.gmra.mxu0 %v3114
        %v3217 = vpop.f32.mrf.mxu0
        %v3218 = vadd.f32 0.0, %v3217
        %v3219 = vpop.f32.mrf.mxu0
        %3220 = vdwg.mxu0
        %v3221 = vadd.f32 %v3074, %v3183
        %v3222 = vadd.f32 %v3075, %v3188
        %v3223 = vadd.f32 %v3076, %v3193
        %v3224 = vadd.f32 %v3077, %v3198
        %v3225 = vadd.f32 %v3078, %v3203
        %v3226 = vadd.f32 %v3079, %v3208
        %v3227 = vadd.f32 %v3080, %v3213
        %v3228 = vadd.f32 %v3081, %v3218
        %v3229 = vld [vmem:[%s437 + $0x1] sm:$0xff]
        %v3230 = vld [vmem:[%s437 + $0x11] sm:$0xff]
        %v3231 = vld [vmem:[%s437 + $0x21] sm:$0xff]
        %v3232 = vld [vmem:[%s437 + $0x31] sm:$0xff]
        %v3233 = vld [vmem:[%s437 + $0x41] sm:$0xff]
        %v3234 = vld [vmem:[%s437 + $0x51] sm:$0xff]
        %v3235 = vld [vmem:[%s437 + $0x61] sm:$0xff]
        %v3236 = vld [vmem:[%s437 + $0x71] sm:$0xff]
        %s3237 = scalar_lea.vmem %s3, 152
        %v3238 = vld [vmem:[%s3237] sm:$0xff]
        %v3240 = vsel %vm467, %v3229, 0
        %v3243 = vsel %vm467, %v3230, 0
        %v3246 = vsel %vm467, %v3231, 0
        %v3249 = vsel %vm467, %v3232, 0
        %v3252 = vsel %vm467, %v3233, 0
        %v3255 = vsel %vm467, %v3234, 0
        %v3258 = vsel %vm467, %v3235, 0
        %v3261 = vsel %vm467, %v3236, 0
        %3263 = vmatprep.subr.mxu0 0.0
        %3264 = vmatpush1.msra.mxu0 0.0
        %3265 = vmatprep.subr.mxu0 0.0
        %3266 = vmatpush1.msra.mxu0 0.0
        %3267 = vmatprep.subr.mxu0 0.0
        %3268 = vmatpush1.msra.mxu0 0.0
        %3269 = vmatprep.subr.mxu0 0.0
        %3270 = vmatpush1.msra.mxu0 0.0
        %3271 = vmatprep.subr.mxu0 0.0
        %3272 = vmatpush1.msra.mxu0 0.0
        %3273 = vmatprep.subr.mxu0 0.0
        %3274 = vmatpush1.msra.mxu0 0.0
        %3275 = vmatprep.subr.mxu0 0.0
        %3276 = vmatpush1.msra.mxu0 0.0
        %3277 = vmatprep.subr.mxu0 0.0
        %3278 = vmatpush1.msra.mxu0 0.0
        %3279 = vmatprep.subr.mxu0 0.0
        %3280 = vmatpush1.msra.mxu0 0.0
        %3281 = vmatprep.subr.mxu0 0.0
        %3282 = vmatpush1.msra.mxu0 0.0
        %3283 = vmatprep.subr.mxu0 0.0
        %3284 = vmatpush1.msra.mxu0 0.0
        %3285 = vmatprep.subr.mxu0 0.0
        %3286 = vmatpush1.msra.mxu0 0.0
        %3287 = vmatprep.subr.mxu0 0.0
        %3288 = vmatpush1.msra.mxu0 0.0
        %3289 = vmatprep.subr.mxu0 0.0
        %3290 = vmatpush1.msra.mxu0 0.0
        %3291 = vmatprep.subr.mxu0 0.0
        %3292 = vmatpush1.msra.mxu0 0.0
        %3293 = vmatprep.subr.mxu0 0.0
        %3294 = vmatpush1.msra.mxu0 %v3238
        %3295 = vmatprep.subr.mxu0 0.0
        %3296 = vmatpush2.msra.mxu0 0.0
        %3297 = vmatprep.subr.mxu0 0.0
        %3298 = vmatpush2.msra.mxu0 0.0
        %3299 = vmatprep.subr.mxu0 0.0
        %3300 = vmatpush2.msra.mxu0 0.0
        %3301 = vmatprep.subr.mxu0 0.0
        %3302 = vmatpush2.msra.mxu0 0.0
        %3303 = vmatprep.subr.mxu0 0.0
        %3304 = vmatpush2.msra.mxu0 0.0
        %3305 = vmatprep.subr.mxu0 0.0
        %3306 = vmatpush2.msra.mxu0 0.0
        %3307 = vmatprep.subr.mxu0 0.0
        %3308 = vmatpush2.msra.mxu0 0.0
        %3309 = vmatprep.subr.mxu0 0.0
        %3310 = vmatpush2.msra.mxu0 0.0
        %3311 = vmatprep.subr.mxu0 0.0
        %3312 = vmatpush2.msra.mxu0 0.0
        %3313 = vmatprep.subr.mxu0 0.0
        %3314 = vmatpush2.msra.mxu0 0.0
        %3315 = vmatprep.subr.mxu0 0.0
        %3316 = vmatpush2.msra.mxu0 0.0
        %3317 = vmatprep.subr.mxu0 0.0
        %3318 = vmatpush2.msra.mxu0 0.0
        %3319 = vmatprep.subr.mxu0 0.0
        %3320 = vmatpush2.msra.mxu0 0.0
        %3321 = vmatprep.subr.mxu0 0.0
        %3322 = vmatpush2.msra.mxu0 0.0
        %3323 = vmatprep.subr.mxu0 0.0
        %3324 = vmatpush2.msra.mxu0 0.0
        %3325 = vmatprep.subr.mxu0 0.0
        %3326 = vmatpush2.msra.mxu0 0.0
        %3327 = vmatprep.mubr.f32.mxu0 0.0
        %3328 = vmatmul.mubr.f32.gmra.mxu0 %v3240
        %v3329 = vpop.f32.mrf.mxu0
        %v3330 = vadd.f32 0.0, %v3329
        %v3331 = vpop.f32.mrf.mxu0
        %3332 = vmatprep.mubr.f32.mxu0 0.0
        %3333 = vmatmul.mubr.f32.gmra.mxu0 %v3243
        %v3334 = vpop.f32.mrf.mxu0
        %v3335 = vadd.f32 0.0, %v3334
        %v3336 = vpop.f32.mrf.mxu0
        %3337 = vmatprep.mubr.f32.mxu0 0.0
        %3338 = vmatmul.mubr.f32.gmra.mxu0 %v3246
        %v3339 = vpop.f32.mrf.mxu0
        %v3340 = vadd.f32 0.0, %v3339
        %v3341 = vpop.f32.mrf.mxu0
        %3342 = vmatprep.mubr.f32.mxu0 0.0
        %3343 = vmatmul.mubr.f32.gmra.mxu0 %v3249
        %v3344 = vpop.f32.mrf.mxu0
        %v3345 = vadd.f32 0.0, %v3344
        %v3346 = vpop.f32.mrf.mxu0
        %3347 = vmatprep.mubr.f32.mxu0 0.0
        %3348 = vmatmul.mubr.f32.gmra.mxu0 %v3252
        %v3349 = vpop.f32.mrf.mxu0
        %v3350 = vadd.f32 0.0, %v3349
        %v3351 = vpop.f32.mrf.mxu0
        %3352 = vmatprep.mubr.f32.mxu0 0.0
        %3353 = vmatmul.mubr.f32.gmra.mxu0 %v3255
        %v3354 = vpop.f32.mrf.mxu0
        %v3355 = vadd.f32 0.0, %v3354
        %v3356 = vpop.f32.mrf.mxu0
        %3357 = vmatprep.mubr.f32.mxu0 0.0
        %3358 = vmatmul.mubr.f32.gmra.mxu0 %v3258
        %v3359 = vpop.f32.mrf.mxu0
        %v3360 = vadd.f32 0.0, %v3359
        %v3361 = vpop.f32.mrf.mxu0
        %3362 = vmatprep.mubr.f32.mxu0 0.0
        %3363 = vmatmul.mubr.f32.gmra.mxu0 %v3261
        %v3364 = vpop.f32.mrf.mxu0
        %v3365 = vadd.f32 0.0, %v3364
        %v3366 = vpop.f32.mrf.mxu0
        %3367 = vdwg.mxu0
        %v3368 = vadd.f32 %v3221, %v3330
        %v3369 = vadd.f32 %v3222, %v3335
        %v3370 = vadd.f32 %v3223, %v3340
        %v3371 = vadd.f32 %v3224, %v3345
        %v3372 = vadd.f32 %v3225, %v3350
        %v3373 = vadd.f32 %v3226, %v3355
        %v3374 = vadd.f32 %v3227, %v3360
        %v3375 = vadd.f32 %v3228, %v3365
        %v3376 = vld [vmem:[%s437 + $0x2] sm:$0xff]
        %v3377 = vld [vmem:[%s437 + $0x12] sm:$0xff]
        %v3378 = vld [vmem:[%s437 + $0x22] sm:$0xff]
        %v3379 = vld [vmem:[%s437 + $0x32] sm:$0xff]
        %v3380 = vld [vmem:[%s437 + $0x42] sm:$0xff]
        %v3381 = vld [vmem:[%s437 + $0x52] sm:$0xff]
        %v3382 = vld [vmem:[%s437 + $0x62] sm:$0xff]
        %v3383 = vld [vmem:[%s437 + $0x72] sm:$0xff]
        %s3384 = scalar_lea.vmem %s3, 160
        %v3385 = vld [vmem:[%s3384] sm:$0xff]
        %v3387 = vsel %vm467, %v3376, 0
        %v3390 = vsel %vm467, %v3377, 0
        %v3393 = vsel %vm467, %v3378, 0
        %v3396 = vsel %vm467, %v3379, 0
        %v3399 = vsel %vm467, %v3380, 0
        %v3402 = vsel %vm467, %v3381, 0
        %v3405 = vsel %vm467, %v3382, 0
        %v3408 = vsel %vm467, %v3383, 0
        %3410 = vmatprep.subr.mxu0 0.0
        %3411 = vmatpush1.msra.mxu0 0.0
        %3412 = vmatprep.subr.mxu0 0.0
        %3413 = vmatpush1.msra.mxu0 0.0
        %3414 = vmatprep.subr.mxu0 0.0
        %3415 = vmatpush1.msra.mxu0 0.0
        %3416 = vmatprep.subr.mxu0 0.0
        %3417 = vmatpush1.msra.mxu0 0.0
        %3418 = vmatprep.subr.mxu0 0.0
        %3419 = vmatpush1.msra.mxu0 0.0
        %3420 = vmatprep.subr.mxu0 0.0
        %3421 = vmatpush1.msra.mxu0 0.0
        %3422 = vmatprep.subr.mxu0 0.0
        %3423 = vmatpush1.msra.mxu0 0.0
        %3424 = vmatprep.subr.mxu0 0.0
        %3425 = vmatpush1.msra.mxu0 0.0
        %3426 = vmatprep.subr.mxu0 0.0
        %3427 = vmatpush1.msra.mxu0 0.0
        %3428 = vmatprep.subr.mxu0 0.0
        %3429 = vmatpush1.msra.mxu0 0.0
        %3430 = vmatprep.subr.mxu0 0.0
        %3431 = vmatpush1.msra.mxu0 0.0
        %3432 = vmatprep.subr.mxu0 0.0
        %3433 = vmatpush1.msra.mxu0 0.0
        %3434 = vmatprep.subr.mxu0 0.0
        %3435 = vmatpush1.msra.mxu0 0.0
        %3436 = vmatprep.subr.mxu0 0.0
        %3437 = vmatpush1.msra.mxu0 0.0
        %3438 = vmatprep.subr.mxu0 0.0
        %3439 = vmatpush1.msra.mxu0 0.0
        %3440 = vmatprep.subr.mxu0 0.0
        %3441 = vmatpush1.msra.mxu0 %v3385
        %3442 = vmatprep.subr.mxu0 0.0
        %3443 = vmatpush2.msra.mxu0 0.0
        %3444 = vmatprep.subr.mxu0 0.0
        %3445 = vmatpush2.msra.mxu0 0.0
        %3446 = vmatprep.subr.mxu0 0.0
        %3447 = vmatpush2.msra.mxu0 0.0
        %3448 = vmatprep.subr.mxu0 0.0
        %3449 = vmatpush2.msra.mxu0 0.0
        %3450 = vmatprep.subr.mxu0 0.0
        %3451 = vmatpush2.msra.mxu0 0.0
        %3452 = vmatprep.subr.mxu0 0.0
        %3453 = vmatpush2.msra.mxu0 0.0
        %3454 = vmatprep.subr.mxu0 0.0
        %3455 = vmatpush2.msra.mxu0 0.0
        %3456 = vmatprep.subr.mxu0 0.0
        %3457 = vmatpush2.msra.mxu0 0.0
        %3458 = vmatprep.subr.mxu0 0.0
        %3459 = vmatpush2.msra.mxu0 0.0
        %3460 = vmatprep.subr.mxu0 0.0
        %3461 = vmatpush2.msra.mxu0 0.0
        %3462 = vmatprep.subr.mxu0 0.0
        %3463 = vmatpush2.msra.mxu0 0.0
        %3464 = vmatprep.subr.mxu0 0.0
        %3465 = vmatpush2.msra.mxu0 0.0
        %3466 = vmatprep.subr.mxu0 0.0
        %3467 = vmatpush2.msra.mxu0 0.0
        %3468 = vmatprep.subr.mxu0 0.0
        %3469 = vmatpush2.msra.mxu0 0.0
        %3470 = vmatprep.subr.mxu0 0.0
        %3471 = vmatpush2.msra.mxu0 0.0
        %3472 = vmatprep.subr.mxu0 0.0
        %3473 = vmatpush2.msra.mxu0 0.0
        %3474 = vmatprep.mubr.f32.mxu0 0.0
        %3475 = vmatmul.mubr.f32.gmra.mxu0 %v3387
        %v3476 = vpop.f32.mrf.mxu0
        %v3477 = vadd.f32 0.0, %v3476
        %v3478 = vpop.f32.mrf.mxu0
        %3479 = vmatprep.mubr.f32.mxu0 0.0
        %3480 = vmatmul.mubr.f32.gmra.mxu0 %v3390
        %v3481 = vpop.f32.mrf.mxu0
        %v3482 = vadd.f32 0.0, %v3481
        %v3483 = vpop.f32.mrf.mxu0
        %3484 = vmatprep.mubr.f32.mxu0 0.0
        %3485 = vmatmul.mubr.f32.gmra.mxu0 %v3393
        %v3486 = vpop.f32.mrf.mxu0
        %v3487 = vadd.f32 0.0, %v3486
        %v3488 = vpop.f32.mrf.mxu0
        %3489 = vmatprep.mubr.f32.mxu0 0.0
        %3490 = vmatmul.mubr.f32.gmra.mxu0 %v3396
        %v3491 = vpop.f32.mrf.mxu0
        %v3492 = vadd.f32 0.0, %v3491
        %v3493 = vpop.f32.mrf.mxu0
        %3494 = vmatprep.mubr.f32.mxu0 0.0
        %3495 = vmatmul.mubr.f32.gmra.mxu0 %v3399
        %v3496 = vpop.f32.mrf.mxu0
        %v3497 = vadd.f32 0.0, %v3496
        %v3498 = vpop.f32.mrf.mxu0
        %3499 = vmatprep.mubr.f32.mxu0 0.0
        %3500 = vmatmul.mubr.f32.gmra.mxu0 %v3402
        %v3501 = vpop.f32.mrf.mxu0
        %v3502 = vadd.f32 0.0, %v3501
        %v3503 = vpop.f32.mrf.mxu0
        %3504 = vmatprep.mubr.f32.mxu0 0.0
        %3505 = vmatmul.mubr.f32.gmra.mxu0 %v3405
        %v3506 = vpop.f32.mrf.mxu0
        %v3507 = vadd.f32 0.0, %v3506
        %v3508 = vpop.f32.mrf.mxu0
        %3509 = vmatprep.mubr.f32.mxu0 0.0
        %3510 = vmatmul.mubr.f32.gmra.mxu0 %v3408
        %v3511 = vpop.f32.mrf.mxu0
        %v3512 = vadd.f32 0.0, %v3511
        %v3513 = vpop.f32.mrf.mxu0
        %3514 = vdwg.mxu0
        %v3515 = vadd.f32 %v3368, %v3477
        %v3516 = vadd.f32 %v3369, %v3482
        %v3517 = vadd.f32 %v3370, %v3487
        %v3518 = vadd.f32 %v3371, %v3492
        %v3519 = vadd.f32 %v3372, %v3497
        %v3520 = vadd.f32 %v3373, %v3502
        %v3521 = vadd.f32 %v3374, %v3507
        %v3522 = vadd.f32 %v3375, %v3512
        %s3523 = scalar_lea.vmem %s437, 16
        %v3524 = vld [vmem:[%s3523] sm:$0xff]
        %v3525 = vld [vmem:[%s3523 + $0x10] sm:$0xff]
        %v3526 = vld [vmem:[%s3523 + $0x20] sm:$0xff]
        %v3527 = vld [vmem:[%s3523 + $0x30] sm:$0xff]
        %v3528 = vld [vmem:[%s3523 + $0x40] sm:$0xff]
        %v3529 = vld [vmem:[%s3523 + $0x50] sm:$0xff]
        %v3530 = vld [vmem:[%s3523 + $0x60] sm:$0xff]
        %v3531 = vld [vmem:[%s3523 + $0x70] sm:$0xff]
        %s3532 = scalar_lea.vmem %s3, 168
        %v3533 = vld [vmem:[%s3532] sm:$0xff]
        %v3535 = vsel %vm467, %v3524, 0
        %v3538 = vsel %vm467, %v3525, 0
        %v3541 = vsel %vm467, %v3526, 0
        %v3544 = vsel %vm467, %v3527, 0
        %v3547 = vsel %vm467, %v3528, 0
        %v3550 = vsel %vm467, %v3529, 0
        %v3553 = vsel %vm467, %v3530, 0
        %v3556 = vsel %vm467, %v3531, 0
        %3558 = vmatprep.subr.mxu0 0.0
        %3559 = vmatpush1.msra.mxu0 0.0
        %3560 = vmatprep.subr.mxu0 0.0
        %3561 = vmatpush1.msra.mxu0 0.0
        %3562 = vmatprep.subr.mxu0 0.0
        %3563 = vmatpush1.msra.mxu0 0.0
        %3564 = vmatprep.subr.mxu0 0.0
        %3565 = vmatpush1.msra.mxu0 0.0
        %3566 = vmatprep.subr.mxu0 0.0
        %3567 = vmatpush1.msra.mxu0 0.0
        %3568 = vmatprep.subr.mxu0 0.0
        %3569 = vmatpush1.msra.mxu0 0.0
        %3570 = vmatprep.subr.mxu0 0.0
        %3571 = vmatpush1.msra.mxu0 0.0
        %3572 = vmatprep.subr.mxu0 0.0
        %3573 = vmatpush1.msra.mxu0 0.0
        %3574 = vmatprep.subr.mxu0 0.0
        %3575 = vmatpush1.msra.mxu0 0.0
        %3576 = vmatprep.subr.mxu0 0.0
        %3577 = vmatpush1.msra.mxu0 0.0
        %3578 = vmatprep.subr.mxu0 0.0
        %3579 = vmatpush1.msra.mxu0 0.0
        %3580 = vmatprep.subr.mxu0 0.0
        %3581 = vmatpush1.msra.mxu0 0.0
        %3582 = vmatprep.subr.mxu0 0.0
        %3583 = vmatpush1.msra.mxu0 0.0
        %3584 = vmatprep.subr.mxu0 0.0
        %3585 = vmatpush1.msra.mxu0 0.0
        %3586 = vmatprep.subr.mxu0 0.0
        %3587 = vmatpush1.msra.mxu0 0.0
        %3588 = vmatprep.subr.mxu0 0.0
        %3589 = vmatpush1.msra.mxu0 %v3533
        %3590 = vmatprep.subr.mxu0 0.0
        %3591 = vmatpush2.msra.mxu0 0.0
        %3592 = vmatprep.subr.mxu0 0.0
        %3593 = vmatpush2.msra.mxu0 0.0
        %3594 = vmatprep.subr.mxu0 0.0
        %3595 = vmatpush2.msra.mxu0 0.0
        %3596 = vmatprep.subr.mxu0 0.0
        %3597 = vmatpush2.msra.mxu0 0.0
        %3598 = vmatprep.subr.mxu0 0.0
        %3599 = vmatpush2.msra.mxu0 0.0
        %3600 = vmatprep.subr.mxu0 0.0
        %3601 = vmatpush2.msra.mxu0 0.0
        %3602 = vmatprep.subr.mxu0 0.0
        %3603 = vmatpush2.msra.mxu0 0.0
        %3604 = vmatprep.subr.mxu0 0.0
        %3605 = vmatpush2.msra.mxu0 0.0
        %3606 = vmatprep.subr.mxu0 0.0
        %3607 = vmatpush2.msra.mxu0 0.0
        %3608 = vmatprep.subr.mxu0 0.0
        %3609 = vmatpush2.msra.mxu0 0.0
        %3610 = vmatprep.subr.mxu0 0.0
        %3611 = vmatpush2.msra.mxu0 0.0
        %3612 = vmatprep.subr.mxu0 0.0
        %3613 = vmatpush2.msra.mxu0 0.0
        %3614 = vmatprep.subr.mxu0 0.0
        %3615 = vmatpush2.msra.mxu0 0.0
        %3616 = vmatprep.subr.mxu0 0.0
        %3617 = vmatpush2.msra.mxu0 0.0
        %3618 = vmatprep.subr.mxu0 0.0
        %3619 = vmatpush2.msra.mxu0 0.0
        %3620 = vmatprep.subr.mxu0 0.0
        %3621 = vmatpush2.msra.mxu0 0.0
        %3622 = vmatprep.mubr.f32.mxu0 0.0
        %3623 = vmatmul.mubr.f32.gmra.mxu0 %v3535
        %v3624 = vpop.f32.mrf.mxu0
        %v3625 = vadd.f32 0.0, %v3624
        %v3626 = vpop.f32.mrf.mxu0
        %3627 = vmatprep.mubr.f32.mxu0 0.0
        %3628 = vmatmul.mubr.f32.gmra.mxu0 %v3538
        %v3629 = vpop.f32.mrf.mxu0
        %v3630 = vadd.f32 0.0, %v3629
        %v3631 = vpop.f32.mrf.mxu0
        %3632 = vmatprep.mubr.f32.mxu0 0.0
        %3633 = vmatmul.mubr.f32.gmra.mxu0 %v3541
        %v3634 = vpop.f32.mrf.mxu0
        %v3635 = vadd.f32 0.0, %v3634
        %v3636 = vpop.f32.mrf.mxu0
        %3637 = vmatprep.mubr.f32.mxu0 0.0
        %3638 = vmatmul.mubr.f32.gmra.mxu0 %v3544
        %v3639 = vpop.f32.mrf.mxu0
        %v3640 = vadd.f32 0.0, %v3639
        %v3641 = vpop.f32.mrf.mxu0
        %3642 = vmatprep.mubr.f32.mxu0 0.0
        %3643 = vmatmul.mubr.f32.gmra.mxu0 %v3547
        %v3644 = vpop.f32.mrf.mxu0
        %v3645 = vadd.f32 0.0, %v3644
        %v3646 = vpop.f32.mrf.mxu0
        %3647 = vmatprep.mubr.f32.mxu0 0.0
        %3648 = vmatmul.mubr.f32.gmra.mxu0 %v3550
        %v3649 = vpop.f32.mrf.mxu0
        %v3650 = vadd.f32 0.0, %v3649
        %v3651 = vpop.f32.mrf.mxu0
        %3652 = vmatprep.mubr.f32.mxu0 0.0
        %3653 = vmatmul.mubr.f32.gmra.mxu0 %v3553
        %v3654 = vpop.f32.mrf.mxu0
        %v3655 = vadd.f32 0.0, %v3654
        %v3656 = vpop.f32.mrf.mxu0
        %3657 = vmatprep.mubr.f32.mxu0 0.0
        %3658 = vmatmul.mubr.f32.gmra.mxu0 %v3556
        %v3659 = vpop.f32.mrf.mxu0
        %v3660 = vadd.f32 0.0, %v3659
        %v3661 = vpop.f32.mrf.mxu0
        %3662 = vdwg.mxu0
        %v3663 = vadd.f32 %v3515, %v3625
        %v3664 = vadd.f32 %v3516, %v3630
        %v3665 = vadd.f32 %v3517, %v3635
        %v3666 = vadd.f32 %v3518, %v3640
        %v3667 = vadd.f32 %v3519, %v3645
        %v3668 = vadd.f32 %v3520, %v3650
        %v3669 = vadd.f32 %v3521, %v3655
        %v3670 = vadd.f32 %v3522, %v3660
        %v3671 = vld [vmem:[%s3523 + $0x1] sm:$0xff]
        %v3672 = vld [vmem:[%s3523 + $0x11] sm:$0xff]
        %v3673 = vld [vmem:[%s3523 + $0x21] sm:$0xff]
        %v3674 = vld [vmem:[%s3523 + $0x31] sm:$0xff]
        %v3675 = vld [vmem:[%s3523 + $0x41] sm:$0xff]
        %v3676 = vld [vmem:[%s3523 + $0x51] sm:$0xff]
        %v3677 = vld [vmem:[%s3523 + $0x61] sm:$0xff]
        %v3678 = vld [vmem:[%s3523 + $0x71] sm:$0xff]
        %s3679 = scalar_lea.vmem %s3, 176
        %v3680 = vld [vmem:[%s3679] sm:$0xff]
        %v3682 = vsel %vm467, %v3671, 0
        %v3685 = vsel %vm467, %v3672, 0
        %v3688 = vsel %vm467, %v3673, 0
        %v3691 = vsel %vm467, %v3674, 0
        %v3694 = vsel %vm467, %v3675, 0
        %v3697 = vsel %vm467, %v3676, 0
        %v3700 = vsel %vm467, %v3677, 0
        %v3703 = vsel %vm467, %v3678, 0
        %3705 = vmatprep.subr.mxu0 0.0
        %3706 = vmatpush1.msra.mxu0 0.0
        %3707 = vmatprep.subr.mxu0 0.0
        %3708 = vmatpush1.msra.mxu0 0.0
        %3709 = vmatprep.subr.mxu0 0.0
        %3710 = vmatpush1.msra.mxu0 0.0
        %3711 = vmatprep.subr.mxu0 0.0
        %3712 = vmatpush1.msra.mxu0 0.0
        %3713 = vmatprep.subr.mxu0 0.0
        %3714 = vmatpush1.msra.mxu0 0.0
        %3715 = vmatprep.subr.mxu0 0.0
        %3716 = vmatpush1.msra.mxu0 0.0
        %3717 = vmatprep.subr.mxu0 0.0
        %3718 = vmatpush1.msra.mxu0 0.0
        %3719 = vmatprep.subr.mxu0 0.0
        %3720 = vmatpush1.msra.mxu0 0.0
        %3721 = vmatprep.subr.mxu0 0.0
        %3722 = vmatpush1.msra.mxu0 0.0
        %3723 = vmatprep.subr.mxu0 0.0
        %3724 = vmatpush1.msra.mxu0 0.0
        %3725 = vmatprep.subr.mxu0 0.0
        %3726 = vmatpush1.msra.mxu0 0.0
        %3727 = vmatprep.subr.mxu0 0.0
        %3728 = vmatpush1.msra.mxu0 0.0
        %3729 = vmatprep.subr.mxu0 0.0
        %3730 = vmatpush1.msra.mxu0 0.0
        %3731 = vmatprep.subr.mxu0 0.0
        %3732 = vmatpush1.msra.mxu0 0.0
        %3733 = vmatprep.subr.mxu0 0.0
        %3734 = vmatpush1.msra.mxu0 0.0
        %3735 = vmatprep.subr.mxu0 0.0
        %3736 = vmatpush1.msra.mxu0 %v3680
        %3737 = vmatprep.subr.mxu0 0.0
        %3738 = vmatpush2.msra.mxu0 0.0
        %3739 = vmatprep.subr.mxu0 0.0
        %3740 = vmatpush2.msra.mxu0 0.0
        %3741 = vmatprep.subr.mxu0 0.0
        %3742 = vmatpush2.msra.mxu0 0.0
        %3743 = vmatprep.subr.mxu0 0.0
        %3744 = vmatpush2.msra.mxu0 0.0
        %3745 = vmatprep.subr.mxu0 0.0
        %3746 = vmatpush2.msra.mxu0 0.0
        %3747 = vmatprep.subr.mxu0 0.0
        %3748 = vmatpush2.msra.mxu0 0.0
        %3749 = vmatprep.subr.mxu0 0.0
        %3750 = vmatpush2.msra.mxu0 0.0
        %3751 = vmatprep.subr.mxu0 0.0
        %3752 = vmatpush2.msra.mxu0 0.0
        %3753 = vmatprep.subr.mxu0 0.0
        %3754 = vmatpush2.msra.mxu0 0.0
        %3755 = vmatprep.subr.mxu0 0.0
        %3756 = vmatpush2.msra.mxu0 0.0
        %3757 = vmatprep.subr.mxu0 0.0
        %3758 = vmatpush2.msra.mxu0 0.0
        %3759 = vmatprep.subr.mxu0 0.0
        %3760 = vmatpush2.msra.mxu0 0.0
        %3761 = vmatprep.subr.mxu0 0.0
        %3762 = vmatpush2.msra.mxu0 0.0
        %3763 = vmatprep.subr.mxu0 0.0
        %3764 = vmatpush2.msra.mxu0 0.0
        %3765 = vmatprep.subr.mxu0 0.0
        %3766 = vmatpush2.msra.mxu0 0.0
        %3767 = vmatprep.subr.mxu0 0.0
        %3768 = vmatpush2.msra.mxu0 0.0
        %3769 = vmatprep.mubr.f32.mxu0 0.0
        %3770 = vmatmul.mubr.f32.gmra.mxu0 %v3682
        %v3771 = vpop.f32.mrf.mxu0
        %v3772 = vadd.f32 0.0, %v3771
        %v3773 = vpop.f32.mrf.mxu0
        %3774 = vmatprep.mubr.f32.mxu0 0.0
        %3775 = vmatmul.mubr.f32.gmra.mxu0 %v3685
        %v3776 = vpop.f32.mrf.mxu0
        %v3777 = vadd.f32 0.0, %v3776
        %v3778 = vpop.f32.mrf.mxu0
        %3779 = vmatprep.mubr.f32.mxu0 0.0
        %3780 = vmatmul.mubr.f32.gmra.mxu0 %v3688
        %v3781 = vpop.f32.mrf.mxu0
        %v3782 = vadd.f32 0.0, %v3781
        %v3783 = vpop.f32.mrf.mxu0
        %3784 = vmatprep.mubr.f32.mxu0 0.0
        %3785 = vmatmul.mubr.f32.gmra.mxu0 %v3691
        %v3786 = vpop.f32.mrf.mxu0
        %v3787 = vadd.f32 0.0, %v3786
        %v3788 = vpop.f32.mrf.mxu0
        %3789 = vmatprep.mubr.f32.mxu0 0.0
        %3790 = vmatmul.mubr.f32.gmra.mxu0 %v3694
        %v3791 = vpop.f32.mrf.mxu0
        %v3792 = vadd.f32 0.0, %v3791
        %v3793 = vpop.f32.mrf.mxu0
        %3794 = vmatprep.mubr.f32.mxu0 0.0
        %3795 = vmatmul.mubr.f32.gmra.mxu0 %v3697
        %v3796 = vpop.f32.mrf.mxu0
        %v3797 = vadd.f32 0.0, %v3796
        %v3798 = vpop.f32.mrf.mxu0
        %3799 = vmatprep.mubr.f32.mxu0 0.0
        %3800 = vmatmul.mubr.f32.gmra.mxu0 %v3700
        %v3801 = vpop.f32.mrf.mxu0
        %v3802 = vadd.f32 0.0, %v3801
        %v3803 = vpop.f32.mrf.mxu0
        %3804 = vmatprep.mubr.f32.mxu0 0.0
        %3805 = vmatmul.mubr.f32.gmra.mxu0 %v3703
        %v3806 = vpop.f32.mrf.mxu0
        %v3807 = vadd.f32 0.0, %v3806
        %v3808 = vpop.f32.mrf.mxu0
        %3809 = vdwg.mxu0
        %v3810 = vadd.f32 %v3663, %v3772
        %v3811 = vadd.f32 %v3664, %v3777
        %v3812 = vadd.f32 %v3665, %v3782
        %v3813 = vadd.f32 %v3666, %v3787
        %v3814 = vadd.f32 %v3667, %v3792
        %v3815 = vadd.f32 %v3668, %v3797
        %v3816 = vadd.f32 %v3669, %v3802
        %v3817 = vadd.f32 %v3670, %v3807
        %v3818 = vld [vmem:[%s3523 + $0x2] sm:$0xff]
        %v3819 = vld [vmem:[%s3523 + $0x12] sm:$0xff]
        %v3820 = vld [vmem:[%s3523 + $0x22] sm:$0xff]
        %v3821 = vld [vmem:[%s3523 + $0x32] sm:$0xff]
        %v3822 = vld [vmem:[%s3523 + $0x42] sm:$0xff]
        %v3823 = vld [vmem:[%s3523 + $0x52] sm:$0xff]
        %v3824 = vld [vmem:[%s3523 + $0x62] sm:$0xff]
        %v3825 = vld [vmem:[%s3523 + $0x72] sm:$0xff]
        %s3826 = scalar_lea.vmem %s3, 184
        %v3827 = vld [vmem:[%s3826] sm:$0xff]
        %v3829 = vsel %vm467, %v3818, 0
        %v3832 = vsel %vm467, %v3819, 0
        %v3835 = vsel %vm467, %v3820, 0
        %v3838 = vsel %vm467, %v3821, 0
        %v3841 = vsel %vm467, %v3822, 0
        %v3844 = vsel %vm467, %v3823, 0
        %v3847 = vsel %vm467, %v3824, 0
        %v3850 = vsel %vm467, %v3825, 0
        %3852 = vmatprep.subr.mxu0 0.0
        %3853 = vmatpush1.msra.mxu0 0.0
        %3854 = vmatprep.subr.mxu0 0.0
        %3855 = vmatpush1.msra.mxu0 0.0
        %3856 = vmatprep.subr.mxu0 0.0
        %3857 = vmatpush1.msra.mxu0 0.0
        %3858 = vmatprep.subr.mxu0 0.0
        %3859 = vmatpush1.msra.mxu0 0.0
        %3860 = vmatprep.subr.mxu0 0.0
        %3861 = vmatpush1.msra.mxu0 0.0
        %3862 = vmatprep.subr.mxu0 0.0
        %3863 = vmatpush1.msra.mxu0 0.0
        %3864 = vmatprep.subr.mxu0 0.0
        %3865 = vmatpush1.msra.mxu0 0.0
        %3866 = vmatprep.subr.mxu0 0.0
        %3867 = vmatpush1.msra.mxu0 0.0
        %3868 = vmatprep.subr.mxu0 0.0
        %3869 = vmatpush1.msra.mxu0 0.0
        %3870 = vmatprep.subr.mxu0 0.0
        %3871 = vmatpush1.msra.mxu0 0.0
        %3872 = vmatprep.subr.mxu0 0.0
        %3873 = vmatpush1.msra.mxu0 0.0
        %3874 = vmatprep.subr.mxu0 0.0
        %3875 = vmatpush1.msra.mxu0 0.0
        %3876 = vmatprep.subr.mxu0 0.0
        %3877 = vmatpush1.msra.mxu0 0.0
        %3878 = vmatprep.subr.mxu0 0.0
        %3879 = vmatpush1.msra.mxu0 0.0
        %3880 = vmatprep.subr.mxu0 0.0
        %3881 = vmatpush1.msra.mxu0 0.0
        %3882 = vmatprep.subr.mxu0 0.0
        %3883 = vmatpush1.msra.mxu0 %v3827
        %3884 = vmatprep.subr.mxu0 0.0
        %3885 = vmatpush2.msra.mxu0 0.0
        %3886 = vmatprep.subr.mxu0 0.0
        %3887 = vmatpush2.msra.mxu0 0.0
        %3888 = vmatprep.subr.mxu0 0.0
        %3889 = vmatpush2.msra.mxu0 0.0
        %3890 = vmatprep.subr.mxu0 0.0
        %3891 = vmatpush2.msra.mxu0 0.0
        %3892 = vmatprep.subr.mxu0 0.0
        %3893 = vmatpush2.msra.mxu0 0.0
        %3894 = vmatprep.subr.mxu0 0.0
        %3895 = vmatpush2.msra.mxu0 0.0
        %3896 = vmatprep.subr.mxu0 0.0
        %3897 = vmatpush2.msra.mxu0 0.0
        %3898 = vmatprep.subr.mxu0 0.0
        %3899 = vmatpush2.msra.mxu0 0.0
        %3900 = vmatprep.subr.mxu0 0.0
        %3901 = vmatpush2.msra.mxu0 0.0
        %3902 = vmatprep.subr.mxu0 0.0
        %3903 = vmatpush2.msra.mxu0 0.0
        %3904 = vmatprep.subr.mxu0 0.0
        %3905 = vmatpush2.msra.mxu0 0.0
        %3906 = vmatprep.subr.mxu0 0.0
        %3907 = vmatpush2.msra.mxu0 0.0
        %3908 = vmatprep.subr.mxu0 0.0
        %3909 = vmatpush2.msra.mxu0 0.0
        %3910 = vmatprep.subr.mxu0 0.0
        %3911 = vmatpush2.msra.mxu0 0.0
        %3912 = vmatprep.subr.mxu0 0.0
        %3913 = vmatpush2.msra.mxu0 0.0
        %3914 = vmatprep.subr.mxu0 0.0
        %3915 = vmatpush2.msra.mxu0 0.0
        %3916 = vmatprep.mubr.f32.mxu0 0.0
        %3917 = vmatmul.mubr.f32.gmra.mxu0 %v3829
        %v3918 = vpop.f32.mrf.mxu0
        %v3919 = vadd.f32 0.0, %v3918
        %v3920 = vpop.f32.mrf.mxu0
        %3921 = vmatprep.mubr.f32.mxu0 0.0
        %3922 = vmatmul.mubr.f32.gmra.mxu0 %v3832
        %v3923 = vpop.f32.mrf.mxu0
        %v3924 = vadd.f32 0.0, %v3923
        %v3925 = vpop.f32.mrf.mxu0
        %3926 = vmatprep.mubr.f32.mxu0 0.0
        %3927 = vmatmul.mubr.f32.gmra.mxu0 %v3835
        %v3928 = vpop.f32.mrf.mxu0
        %v3929 = vadd.f32 0.0, %v3928
        %v3930 = vpop.f32.mrf.mxu0
        %3931 = vmatprep.mubr.f32.mxu0 0.0
        %3932 = vmatmul.mubr.f32.gmra.mxu0 %v3838
        %v3933 = vpop.f32.mrf.mxu0
        %v3934 = vadd.f32 0.0, %v3933
        %v3935 = vpop.f32.mrf.mxu0
        %3936 = vmatprep.mubr.f32.mxu0 0.0
        %3937 = vmatmul.mubr.f32.gmra.mxu0 %v3841
        %v3938 = vpop.f32.mrf.mxu0
        %v3939 = vadd.f32 0.0, %v3938
        %v3940 = vpop.f32.mrf.mxu0
        %3941 = vmatprep.mubr.f32.mxu0 0.0
        %3942 = vmatmul.mubr.f32.gmra.mxu0 %v3844
        %v3943 = vpop.f32.mrf.mxu0
        %v3944 = vadd.f32 0.0, %v3943
        %v3945 = vpop.f32.mrf.mxu0
        %3946 = vmatprep.mubr.f32.mxu0 0.0
        %3947 = vmatmul.mubr.f32.gmra.mxu0 %v3847
        %v3948 = vpop.f32.mrf.mxu0
        %v3949 = vadd.f32 0.0, %v3948
        %v3950 = vpop.f32.mrf.mxu0
        %3951 = vmatprep.mubr.f32.mxu0 0.0
        %3952 = vmatmul.mubr.f32.gmra.mxu0 %v3850
        %v3953 = vpop.f32.mrf.mxu0
        %v3954 = vadd.f32 0.0, %v3953
        %v3955 = vpop.f32.mrf.mxu0
        %3956 = vdwg.mxu0
        %v3957 = vadd.f32 %v3810, %v3919
        %v3958 = vadd.f32 %v3811, %v3924
        %v3959 = vadd.f32 %v3812, %v3929
        %v3960 = vadd.f32 %v3813, %v3934
        %v3961 = vadd.f32 %v3814, %v3939
        %v3962 = vadd.f32 %v3815, %v3944
        %v3963 = vadd.f32 %v3816, %v3949
        %v3964 = vadd.f32 %v3817, %v3954
        %s3965 = scalar_lea.vmem %s437, 32
        %v3966 = vld [vmem:[%s3965] sm:$0xff]
        %v3967 = vld [vmem:[%s3965 + $0x10] sm:$0xff]
        %v3968 = vld [vmem:[%s3965 + $0x20] sm:$0xff]
        %v3969 = vld [vmem:[%s3965 + $0x30] sm:$0xff]
        %v3970 = vld [vmem:[%s3965 + $0x40] sm:$0xff]
        %v3971 = vld [vmem:[%s3965 + $0x50] sm:$0xff]
        %v3972 = vld [vmem:[%s3965 + $0x60] sm:$0xff]
        %v3973 = vld [vmem:[%s3965 + $0x70] sm:$0xff]
        %s3974 = scalar_lea.vmem %s3, 192
        %v3975 = vld [vmem:[%s3974] sm:$0xff]
        %v3977 = vsel %vm467, %v3966, 0
        %v3980 = vsel %vm467, %v3967, 0
        %v3983 = vsel %vm467, %v3968, 0
        %v3986 = vsel %vm467, %v3969, 0
        %v3989 = vsel %vm467, %v3970, 0
        %v3992 = vsel %vm467, %v3971, 0
        %v3995 = vsel %vm467, %v3972, 0
        %v3998 = vsel %vm467, %v3973, 0
        %4000 = vmatprep.subr.mxu0 0.0
        %4001 = vmatpush1.msra.mxu0 0.0
        %4002 = vmatprep.subr.mxu0 0.0
        %4003 = vmatpush1.msra.mxu0 0.0
        %4004 = vmatprep.subr.mxu0 0.0
        %4005 = vmatpush1.msra.mxu0 0.0
        %4006 = vmatprep.subr.mxu0 0.0
        %4007 = vmatpush1.msra.mxu0 0.0
        %4008 = vmatprep.subr.mxu0 0.0
        %4009 = vmatpush1.msra.mxu0 0.0
        %4010 = vmatprep.subr.mxu0 0.0
        %4011 = vmatpush1.msra.mxu0 0.0
        %4012 = vmatprep.subr.mxu0 0.0
        %4013 = vmatpush1.msra.mxu0 0.0
        %4014 = vmatprep.subr.mxu0 0.0
        %4015 = vmatpush1.msra.mxu0 0.0
        %4016 = vmatprep.subr.mxu0 0.0
        %4017 = vmatpush1.msra.mxu0 0.0
        %4018 = vmatprep.subr.mxu0 0.0
        %4019 = vmatpush1.msra.mxu0 0.0
        %4020 = vmatprep.subr.mxu0 0.0
        %4021 = vmatpush1.msra.mxu0 0.0
        %4022 = vmatprep.subr.mxu0 0.0
        %4023 = vmatpush1.msra.mxu0 0.0
        %4024 = vmatprep.subr.mxu0 0.0
        %4025 = vmatpush1.msra.mxu0 0.0
        %4026 = vmatprep.subr.mxu0 0.0
        %4027 = vmatpush1.msra.mxu0 0.0
        %4028 = vmatprep.subr.mxu0 0.0
        %4029 = vmatpush1.msra.mxu0 0.0
        %4030 = vmatprep.subr.mxu0 0.0
        %4031 = vmatpush1.msra.mxu0 %v3975
        %4032 = vmatprep.subr.mxu0 0.0
        %4033 = vmatpush2.msra.mxu0 0.0
        %4034 = vmatprep.subr.mxu0 0.0
        %4035 = vmatpush2.msra.mxu0 0.0
        %4036 = vmatprep.subr.mxu0 0.0
        %4037 = vmatpush2.msra.mxu0 0.0
        %4038 = vmatprep.subr.mxu0 0.0
        %4039 = vmatpush2.msra.mxu0 0.0
        %4040 = vmatprep.subr.mxu0 0.0
        %4041 = vmatpush2.msra.mxu0 0.0
        %4042 = vmatprep.subr.mxu0 0.0
        %4043 = vmatpush2.msra.mxu0 0.0
        %4044 = vmatprep.subr.mxu0 0.0
        %4045 = vmatpush2.msra.mxu0 0.0
        %4046 = vmatprep.subr.mxu0 0.0
        %4047 = vmatpush2.msra.mxu0 0.0
        %4048 = vmatprep.subr.mxu0 0.0
        %4049 = vmatpush2.msra.mxu0 0.0
        %4050 = vmatprep.subr.mxu0 0.0
        %4051 = vmatpush2.msra.mxu0 0.0
        %4052 = vmatprep.subr.mxu0 0.0
        %4053 = vmatpush2.msra.mxu0 0.0
        %4054 = vmatprep.subr.mxu0 0.0
        %4055 = vmatpush2.msra.mxu0 0.0
        %4056 = vmatprep.subr.mxu0 0.0
        %4057 = vmatpush2.msra.mxu0 0.0
        %4058 = vmatprep.subr.mxu0 0.0
        %4059 = vmatpush2.msra.mxu0 0.0
        %4060 = vmatprep.subr.mxu0 0.0
        %4061 = vmatpush2.msra.mxu0 0.0
        %4062 = vmatprep.subr.mxu0 0.0
        %4063 = vmatpush2.msra.mxu0 0.0
        %4064 = vmatprep.mubr.f32.mxu0 0.0
        %4065 = vmatmul.mubr.f32.gmra.mxu0 %v3977
        %v4066 = vpop.f32.mrf.mxu0
        %v4067 = vadd.f32 0.0, %v4066
        %v4068 = vpop.f32.mrf.mxu0
        %4069 = vmatprep.mubr.f32.mxu0 0.0
        %4070 = vmatmul.mubr.f32.gmra.mxu0 %v3980
        %v4071 = vpop.f32.mrf.mxu0
        %v4072 = vadd.f32 0.0, %v4071
        %v4073 = vpop.f32.mrf.mxu0
        %4074 = vmatprep.mubr.f32.mxu0 0.0
        %4075 = vmatmul.mubr.f32.gmra.mxu0 %v3983
        %v4076 = vpop.f32.mrf.mxu0
        %v4077 = vadd.f32 0.0, %v4076
        %v4078 = vpop.f32.mrf.mxu0
        %4079 = vmatprep.mubr.f32.mxu0 0.0
        %4080 = vmatmul.mubr.f32.gmra.mxu0 %v3986
        %v4081 = vpop.f32.mrf.mxu0
        %v4082 = vadd.f32 0.0, %v4081
        %v4083 = vpop.f32.mrf.mxu0
        %4084 = vmatprep.mubr.f32.mxu0 0.0
        %4085 = vmatmul.mubr.f32.gmra.mxu0 %v3989
        %v4086 = vpop.f32.mrf.mxu0
        %v4087 = vadd.f32 0.0, %v4086
        %v4088 = vpop.f32.mrf.mxu0
        %4089 = vmatprep.mubr.f32.mxu0 0.0
        %4090 = vmatmul.mubr.f32.gmra.mxu0 %v3992
        %v4091 = vpop.f32.mrf.mxu0
        %v4092 = vadd.f32 0.0, %v4091
        %v4093 = vpop.f32.mrf.mxu0
        %4094 = vmatprep.mubr.f32.mxu0 0.0
        %4095 = vmatmul.mubr.f32.gmra.mxu0 %v3995
        %v4096 = vpop.f32.mrf.mxu0
        %v4097 = vadd.f32 0.0, %v4096
        %v4098 = vpop.f32.mrf.mxu0
        %4099 = vmatprep.mubr.f32.mxu0 0.0
        %4100 = vmatmul.mubr.f32.gmra.mxu0 %v3998
        %v4101 = vpop.f32.mrf.mxu0
        %v4102 = vadd.f32 0.0, %v4101
        %v4103 = vpop.f32.mrf.mxu0
        %4104 = vdwg.mxu0
        %v4105 = vadd.f32 %v3957, %v4067
        %v4106 = vadd.f32 %v3958, %v4072
        %v4107 = vadd.f32 %v3959, %v4077
        %v4108 = vadd.f32 %v3960, %v4082
        %v4109 = vadd.f32 %v3961, %v4087
        %v4110 = vadd.f32 %v3962, %v4092
        %v4111 = vadd.f32 %v3963, %v4097
        %v4112 = vadd.f32 %v3964, %v4102
        %v4113 = vld [vmem:[%s3965 + $0x1] sm:$0xff]
        %v4114 = vld [vmem:[%s3965 + $0x11] sm:$0xff]
        %v4115 = vld [vmem:[%s3965 + $0x21] sm:$0xff]
        %v4116 = vld [vmem:[%s3965 + $0x31] sm:$0xff]
        %v4117 = vld [vmem:[%s3965 + $0x41] sm:$0xff]
        %v4118 = vld [vmem:[%s3965 + $0x51] sm:$0xff]
        %v4119 = vld [vmem:[%s3965 + $0x61] sm:$0xff]
        %v4120 = vld [vmem:[%s3965 + $0x71] sm:$0xff]
        %s4121 = scalar_lea.vmem %s3, 200
        %v4122 = vld [vmem:[%s4121] sm:$0xff]
        %v4124 = vsel %vm467, %v4113, 0
        %v4127 = vsel %vm467, %v4114, 0
        %v4130 = vsel %vm467, %v4115, 0
        %v4133 = vsel %vm467, %v4116, 0
        %v4136 = vsel %vm467, %v4117, 0
        %v4139 = vsel %vm467, %v4118, 0
        %v4142 = vsel %vm467, %v4119, 0
        %v4145 = vsel %vm467, %v4120, 0
        %4147 = vmatprep.subr.mxu0 0.0
        %4148 = vmatpush1.msra.mxu0 0.0
        %4149 = vmatprep.subr.mxu0 0.0
        %4150 = vmatpush1.msra.mxu0 0.0
        %4151 = vmatprep.subr.mxu0 0.0
        %4152 = vmatpush1.msra.mxu0 0.0
        %4153 = vmatprep.subr.mxu0 0.0
        %4154 = vmatpush1.msra.mxu0 0.0
        %4155 = vmatprep.subr.mxu0 0.0
        %4156 = vmatpush1.msra.mxu0 0.0
        %4157 = vmatprep.subr.mxu0 0.0
        %4158 = vmatpush1.msra.mxu0 0.0
        %4159 = vmatprep.subr.mxu0 0.0
        %4160 = vmatpush1.msra.mxu0 0.0
        %4161 = vmatprep.subr.mxu0 0.0
        %4162 = vmatpush1.msra.mxu0 0.0
        %4163 = vmatprep.subr.mxu0 0.0
        %4164 = vmatpush1.msra.mxu0 0.0
        %4165 = vmatprep.subr.mxu0 0.0
        %4166 = vmatpush1.msra.mxu0 0.0
        %4167 = vmatprep.subr.mxu0 0.0
        %4168 = vmatpush1.msra.mxu0 0.0
        %4169 = vmatprep.subr.mxu0 0.0
        %4170 = vmatpush1.msra.mxu0 0.0
        %4171 = vmatprep.subr.mxu0 0.0
        %4172 = vmatpush1.msra.mxu0 0.0
        %4173 = vmatprep.subr.mxu0 0.0
        %4174 = vmatpush1.msra.mxu0 0.0
        %4175 = vmatprep.subr.mxu0 0.0
        %4176 = vmatpush1.msra.mxu0 0.0
        %4177 = vmatprep.subr.mxu0 0.0
        %4178 = vmatpush1.msra.mxu0 %v4122
        %4179 = vmatprep.subr.mxu0 0.0
        %4180 = vmatpush2.msra.mxu0 0.0
        %4181 = vmatprep.subr.mxu0 0.0
        %4182 = vmatpush2.msra.mxu0 0.0
        %4183 = vmatprep.subr.mxu0 0.0
        %4184 = vmatpush2.msra.mxu0 0.0
        %4185 = vmatprep.subr.mxu0 0.0
        %4186 = vmatpush2.msra.mxu0 0.0
        %4187 = vmatprep.subr.mxu0 0.0
        %4188 = vmatpush2.msra.mxu0 0.0
        %4189 = vmatprep.subr.mxu0 0.0
        %4190 = vmatpush2.msra.mxu0 0.0
        %4191 = vmatprep.subr.mxu0 0.0
        %4192 = vmatpush2.msra.mxu0 0.0
        %4193 = vmatprep.subr.mxu0 0.0
        %4194 = vmatpush2.msra.mxu0 0.0
        %4195 = vmatprep.subr.mxu0 0.0
        %4196 = vmatpush2.msra.mxu0 0.0
        %4197 = vmatprep.subr.mxu0 0.0
        %4198 = vmatpush2.msra.mxu0 0.0
        %4199 = vmatprep.subr.mxu0 0.0
        %4200 = vmatpush2.msra.mxu0 0.0
        %4201 = vmatprep.subr.mxu0 0.0
        %4202 = vmatpush2.msra.mxu0 0.0
        %4203 = vmatprep.subr.mxu0 0.0
        %4204 = vmatpush2.msra.mxu0 0.0
        %4205 = vmatprep.subr.mxu0 0.0
        %4206 = vmatpush2.msra.mxu0 0.0
        %4207 = vmatprep.subr.mxu0 0.0
        %4208 = vmatpush2.msra.mxu0 0.0
        %4209 = vmatprep.subr.mxu0 0.0
        %4210 = vmatpush2.msra.mxu0 0.0
        %4211 = vmatprep.mubr.f32.mxu0 0.0
        %4212 = vmatmul.mubr.f32.gmra.mxu0 %v4124
        %v4213 = vpop.f32.mrf.mxu0
        %v4214 = vadd.f32 0.0, %v4213
        %v4215 = vpop.f32.mrf.mxu0
        %4216 = vmatprep.mubr.f32.mxu0 0.0
        %4217 = vmatmul.mubr.f32.gmra.mxu0 %v4127
        %v4218 = vpop.f32.mrf.mxu0
        %v4219 = vadd.f32 0.0, %v4218
        %v4220 = vpop.f32.mrf.mxu0
        %4221 = vmatprep.mubr.f32.mxu0 0.0
        %4222 = vmatmul.mubr.f32.gmra.mxu0 %v4130
        %v4223 = vpop.f32.mrf.mxu0
        %v4224 = vadd.f32 0.0, %v4223
        %v4225 = vpop.f32.mrf.mxu0
        %4226 = vmatprep.mubr.f32.mxu0 0.0
        %4227 = vmatmul.mubr.f32.gmra.mxu0 %v4133
        %v4228 = vpop.f32.mrf.mxu0
        %v4229 = vadd.f32 0.0, %v4228
        %v4230 = vpop.f32.mrf.mxu0
        %4231 = vmatprep.mubr.f32.mxu0 0.0
        %4232 = vmatmul.mubr.f32.gmra.mxu0 %v4136
        %v4233 = vpop.f32.mrf.mxu0
        %v4234 = vadd.f32 0.0, %v4233
        %v4235 = vpop.f32.mrf.mxu0
        %4236 = vmatprep.mubr.f32.mxu0 0.0
        %4237 = vmatmul.mubr.f32.gmra.mxu0 %v4139
        %v4238 = vpop.f32.mrf.mxu0
        %v4239 = vadd.f32 0.0, %v4238
        %v4240 = vpop.f32.mrf.mxu0
        %4241 = vmatprep.mubr.f32.mxu0 0.0
        %4242 = vmatmul.mubr.f32.gmra.mxu0 %v4142
        %v4243 = vpop.f32.mrf.mxu0
        %v4244 = vadd.f32 0.0, %v4243
        %v4245 = vpop.f32.mrf.mxu0
        %4246 = vmatprep.mubr.f32.mxu0 0.0
        %4247 = vmatmul.mubr.f32.gmra.mxu0 %v4145
        %v4248 = vpop.f32.mrf.mxu0
        %v4249 = vadd.f32 0.0, %v4248
        %v4250 = vpop.f32.mrf.mxu0
        %4251 = vdwg.mxu0
        %v4252 = vadd.f32 %v4105, %v4214
        %v4253 = vadd.f32 %v4106, %v4219
        %v4254 = vadd.f32 %v4107, %v4224
        %v4255 = vadd.f32 %v4108, %v4229
        %v4256 = vadd.f32 %v4109, %v4234
        %v4257 = vadd.f32 %v4110, %v4239
        %v4258 = vadd.f32 %v4111, %v4244
        %v4259 = vadd.f32 %v4112, %v4249
        %v4260 = vld [vmem:[%s3965 + $0x2] sm:$0xff]
        %v4261 = vld [vmem:[%s3965 + $0x12] sm:$0xff]
        %v4262 = vld [vmem:[%s3965 + $0x22] sm:$0xff]
        %v4263 = vld [vmem:[%s3965 + $0x32] sm:$0xff]
        %v4264 = vld [vmem:[%s3965 + $0x42] sm:$0xff]
        %v4265 = vld [vmem:[%s3965 + $0x52] sm:$0xff]
        %v4266 = vld [vmem:[%s3965 + $0x62] sm:$0xff]
        %v4267 = vld [vmem:[%s3965 + $0x72] sm:$0xff]
        %s4268 = scalar_lea.vmem %s3, 208
        %v4269 = vld [vmem:[%s4268] sm:$0xff]
        %v4271 = vsel %vm467, %v4260, 0
        %v4274 = vsel %vm467, %v4261, 0
        %v4277 = vsel %vm467, %v4262, 0
        %v4280 = vsel %vm467, %v4263, 0
        %v4283 = vsel %vm467, %v4264, 0
        %v4286 = vsel %vm467, %v4265, 0
        %v4289 = vsel %vm467, %v4266, 0
        %v4292 = vsel %vm467, %v4267, 0
        %4294 = vmatprep.subr.mxu0 0.0
        %4295 = vmatpush1.msra.mxu0 0.0
        %4296 = vmatprep.subr.mxu0 0.0
        %4297 = vmatpush1.msra.mxu0 0.0
        %4298 = vmatprep.subr.mxu0 0.0
        %4299 = vmatpush1.msra.mxu0 0.0
        %4300 = vmatprep.subr.mxu0 0.0
        %4301 = vmatpush1.msra.mxu0 0.0
        %4302 = vmatprep.subr.mxu0 0.0
        %4303 = vmatpush1.msra.mxu0 0.0
        %4304 = vmatprep.subr.mxu0 0.0
        %4305 = vmatpush1.msra.mxu0 0.0
        %4306 = vmatprep.subr.mxu0 0.0
        %4307 = vmatpush1.msra.mxu0 0.0
        %4308 = vmatprep.subr.mxu0 0.0
        %4309 = vmatpush1.msra.mxu0 0.0
        %4310 = vmatprep.subr.mxu0 0.0
        %4311 = vmatpush1.msra.mxu0 0.0
        %4312 = vmatprep.subr.mxu0 0.0
        %4313 = vmatpush1.msra.mxu0 0.0
        %4314 = vmatprep.subr.mxu0 0.0
        %4315 = vmatpush1.msra.mxu0 0.0
        %4316 = vmatprep.subr.mxu0 0.0
        %4317 = vmatpush1.msra.mxu0 0.0
        %4318 = vmatprep.subr.mxu0 0.0
        %4319 = vmatpush1.msra.mxu0 0.0
        %4320 = vmatprep.subr.mxu0 0.0
        %4321 = vmatpush1.msra.mxu0 0.0
        %4322 = vmatprep.subr.mxu0 0.0
        %4323 = vmatpush1.msra.mxu0 0.0
        %4324 = vmatprep.subr.mxu0 0.0
        %4325 = vmatpush1.msra.mxu0 %v4269
        %4326 = vmatprep.subr.mxu0 0.0
        %4327 = vmatpush2.msra.mxu0 0.0
        %4328 = vmatprep.subr.mxu0 0.0
        %4329 = vmatpush2.msra.mxu0 0.0
        %4330 = vmatprep.subr.mxu0 0.0
        %4331 = vmatpush2.msra.mxu0 0.0
        %4332 = vmatprep.subr.mxu0 0.0
        %4333 = vmatpush2.msra.mxu0 0.0
        %4334 = vmatprep.subr.mxu0 0.0
        %4335 = vmatpush2.msra.mxu0 0.0
        %4336 = vmatprep.subr.mxu0 0.0
        %4337 = vmatpush2.msra.mxu0 0.0
        %4338 = vmatprep.subr.mxu0 0.0
        %4339 = vmatpush2.msra.mxu0 0.0
        %4340 = vmatprep.subr.mxu0 0.0
        %4341 = vmatpush2.msra.mxu0 0.0
        %4342 = vmatprep.subr.mxu0 0.0
        %4343 = vmatpush2.msra.mxu0 0.0
        %4344 = vmatprep.subr.mxu0 0.0
        %4345 = vmatpush2.msra.mxu0 0.0
        %4346 = vmatprep.subr.mxu0 0.0
        %4347 = vmatpush2.msra.mxu0 0.0
        %4348 = vmatprep.subr.mxu0 0.0
        %4349 = vmatpush2.msra.mxu0 0.0
        %4350 = vmatprep.subr.mxu0 0.0
        %4351 = vmatpush2.msra.mxu0 0.0
        %4352 = vmatprep.subr.mxu0 0.0
        %4353 = vmatpush2.msra.mxu0 0.0
        %4354 = vmatprep.subr.mxu0 0.0
        %4355 = vmatpush2.msra.mxu0 0.0
        %4356 = vmatprep.subr.mxu0 0.0
        %4357 = vmatpush2.msra.mxu0 0.0
        %4358 = vmatprep.mubr.f32.mxu0 0.0
        %4359 = vmatmul.mubr.f32.gmra.mxu0 %v4271
        %v4360 = vpop.f32.mrf.mxu0
        %v4361 = vadd.f32 0.0, %v4360
        %v4362 = vpop.f32.mrf.mxu0
        %4363 = vmatprep.mubr.f32.mxu0 0.0
        %4364 = vmatmul.mubr.f32.gmra.mxu0 %v4274
        %v4365 = vpop.f32.mrf.mxu0
        %v4366 = vadd.f32 0.0, %v4365
        %v4367 = vpop.f32.mrf.mxu0
        %4368 = vmatprep.mubr.f32.mxu0 0.0
        %4369 = vmatmul.mubr.f32.gmra.mxu0 %v4277
        %v4370 = vpop.f32.mrf.mxu0
        %v4371 = vadd.f32 0.0, %v4370
        %v4372 = vpop.f32.mrf.mxu0
        %4373 = vmatprep.mubr.f32.mxu0 0.0
        %4374 = vmatmul.mubr.f32.gmra.mxu0 %v4280
        %v4375 = vpop.f32.mrf.mxu0
        %v4376 = vadd.f32 0.0, %v4375
        %v4377 = vpop.f32.mrf.mxu0
        %4378 = vmatprep.mubr.f32.mxu0 0.0
        %4379 = vmatmul.mubr.f32.gmra.mxu0 %v4283
        %v4380 = vpop.f32.mrf.mxu0
        %v4381 = vadd.f32 0.0, %v4380
        %v4382 = vpop.f32.mrf.mxu0
        %4383 = vmatprep.mubr.f32.mxu0 0.0
        %4384 = vmatmul.mubr.f32.gmra.mxu0 %v4286
        %v4385 = vpop.f32.mrf.mxu0
        %v4386 = vadd.f32 0.0, %v4385
        %v4387 = vpop.f32.mrf.mxu0
        %4388 = vmatprep.mubr.f32.mxu0 0.0
        %4389 = vmatmul.mubr.f32.gmra.mxu0 %v4289
        %v4390 = vpop.f32.mrf.mxu0
        %v4391 = vadd.f32 0.0, %v4390
        %v4392 = vpop.f32.mrf.mxu0
        %4393 = vmatprep.mubr.f32.mxu0 0.0
        %4394 = vmatmul.mubr.f32.gmra.mxu0 %v4292
        %v4395 = vpop.f32.mrf.mxu0
        %v4396 = vadd.f32 0.0, %v4395
        %v4397 = vpop.f32.mrf.mxu0
        %4398 = vdwg.mxu0
        %v4399 = vadd.f32 %v4252, %v4361
        %v4400 = vadd.f32 %v4253, %v4366
        %v4401 = vadd.f32 %v4254, %v4371
        %v4402 = vadd.f32 %v4255, %v4376
        %v4403 = vadd.f32 %v4256, %v4381
        %v4404 = vadd.f32 %v4257, %v4386
        %v4405 = vadd.f32 %v4258, %v4391
        %v4406 = vadd.f32 %v4259, %v4396
        %v4407 = vld [vmem:[%s4] sm:$0x1]
        %v4409 = vlaneseq
        %v4410 = vshrl.u32 %v4409, 7
        %v4411 = vsub.s32 0, %v4410
        %v4412 = vrot.slane %v4407, %v4411
        %v4414 = vadd.f32 %v4399, %v4412
        %v4415 = vadd.f32 %v4400, %v4412
        %v4416 = vadd.f32 %v4401, %v4412
        %v4417 = vadd.f32 %v4402, %v4412
        %v4418 = vadd.f32 %v4403, %v4412
        %v4419 = vadd.f32 %v4404, %v4412
        %v4420 = vadd.f32 %v4405, %v4412
        %v4421 = vadd.f32 %v4406, %v4412
        %v4422 = vmax.f32 %v4414, 0.0
        %v4423 = vmax.f32 %v4415, 0.0
        %v4424 = vmax.f32 %v4416, 0.0
        %v4425 = vmax.f32 %v4417, 0.0
        %v4426 = vmax.f32 %v4418, 0.0
        %v4427 = vmax.f32 %v4419, 0.0
        %v4428 = vmax.f32 %v4420, 0.0
        %v4429 = vmax.f32 %v4421, 0.0
        %v4430 = vld [vmem:[%s5] sm:$0xff]
        %v4431 = vld [vmem:[%s6] sm:$0x1]
        %v4433 = vlaneseq
        %v4434 = vshrl.u32 %v4433, 7
        %v4435 = vsub.s32 0, %v4434
        %v4436 = vrot.slane %v4431, %v4435
        %v4439 = vsel %vm467, %v4422, 0
        %v4442 = vsel %vm467, %v4423, 0
        %v4445 = vsel %vm467, %v4424, 0
        %v4448 = vsel %vm467, %v4425, 0
        %v4451 = vsel %vm467, %v4426, 0
        %v4454 = vsel %vm467, %v4427, 0
        %v4457 = vsel %vm467, %v4428, 0
        %v4460 = vsel %vm467, %v4429, 0
        %4462 = vmatprep.subr.mxu0 0.0
        %4463 = vmatpush1.msra.mxu0 0.0
        %4464 = vmatprep.subr.mxu0 0.0
        %4465 = vmatpush1.msra.mxu0 0.0
        %4466 = vmatprep.subr.mxu0 0.0
        %4467 = vmatpush1.msra.mxu0 0.0
        %4468 = vmatprep.subr.mxu0 0.0
        %4469 = vmatpush1.msra.mxu0 0.0
        %4470 = vmatprep.subr.mxu0 0.0
        %4471 = vmatpush1.msra.mxu0 0.0
        %4472 = vmatprep.subr.mxu0 0.0
        %4473 = vmatpush1.msra.mxu0 0.0
        %4474 = vmatprep.subr.mxu0 0.0
        %4475 = vmatpush1.msra.mxu0 0.0
        %4476 = vmatprep.subr.mxu0 0.0
        %4477 = vmatpush1.msra.mxu0 0.0
        %4478 = vmatprep.subr.mxu0 0.0
        %4479 = vmatpush1.msra.mxu0 0.0
        %4480 = vmatprep.subr.mxu0 0.0
        %4481 = vmatpush1.msra.mxu0 0.0
        %4482 = vmatprep.subr.mxu0 0.0
        %4483 = vmatpush1.msra.mxu0 0.0
        %4484 = vmatprep.subr.mxu0 0.0
        %4485 = vmatpush1.msra.mxu0 0.0
        %4486 = vmatprep.subr.mxu0 0.0
        %4487 = vmatpush1.msra.mxu0 0.0
        %4488 = vmatprep.subr.mxu0 0.0
        %4489 = vmatpush1.msra.mxu0 0.0
        %4490 = vmatprep.subr.mxu0 0.0
        %4491 = vmatpush1.msra.mxu0 0.0
        %4492 = vmatprep.subr.mxu0 0.0
        %4493 = vmatpush1.msra.mxu0 %v4430
        %4494 = vmatprep.subr.mxu0 0.0
        %4495 = vmatpush2.msra.mxu0 0.0
        %4496 = vmatprep.subr.mxu0 0.0
        %4497 = vmatpush2.msra.mxu0 0.0
        %4498 = vmatprep.subr.mxu0 0.0
        %4499 = vmatpush2.msra.mxu0 0.0
        %4500 = vmatprep.subr.mxu0 0.0
        %4501 = vmatpush2.msra.mxu0 0.0
        %4502 = vmatprep.subr.mxu0 0.0
        %4503 = vmatpush2.msra.mxu0 0.0
        %4504 = vmatprep.subr.mxu0 0.0
        %4505 = vmatpush2.msra.mxu0 0.0
        %4506 = vmatprep.subr.mxu0 0.0
        %4507 = vmatpush2.msra.mxu0 0.0
        %4508 = vmatprep.subr.mxu0 0.0
        %4509 = vmatpush2.msra.mxu0 0.0
        %4510 = vmatprep.subr.mxu0 0.0
        %4511 = vmatpush2.msra.mxu0 0.0
        %4512 = vmatprep.subr.mxu0 0.0
        %4513 = vmatpush2.msra.mxu0 0.0
        %4514 = vmatprep.subr.mxu0 0.0
        %4515 = vmatpush2.msra.mxu0 0.0
        %4516 = vmatprep.subr.mxu0 0.0
        %4517 = vmatpush2.msra.mxu0 0.0
        %4518 = vmatprep.subr.mxu0 0.0
        %4519 = vmatpush2.msra.mxu0 0.0
        %4520 = vmatprep.subr.mxu0 0.0
        %4521 = vmatpush2.msra.mxu0 0.0
        %4522 = vmatprep.subr.mxu0 0.0
        %4523 = vmatpush2.msra.mxu0 0.0
        %4524 = vmatprep.subr.mxu0 0.0
        %4525 = vmatpush2.msra.mxu0 0.0
        %4526 = vmatprep.mubr.f32.mxu0 0.0
        %4527 = vmatmul.mubr.f32.gmra.mxu0 %v4439
        %v4528 = vpop.f32.mrf.mxu0
        %v4529 = vadd.f32 %v4436, %v4528
        %v4530 = vpop.f32.mrf.mxu0
        %4531 = vmatprep.mubr.f32.mxu0 0.0
        %4532 = vmatmul.mubr.f32.gmra.mxu0 %v4442
        %v4533 = vpop.f32.mrf.mxu0
        %v4534 = vadd.f32 %v4436, %v4533
        %v4535 = vpop.f32.mrf.mxu0
        %4536 = vmatprep.mubr.f32.mxu0 0.0
        %4537 = vmatmul.mubr.f32.gmra.mxu0 %v4445
        %v4538 = vpop.f32.mrf.mxu0
        %v4539 = vadd.f32 %v4436, %v4538
        %v4540 = vpop.f32.mrf.mxu0
        %4541 = vmatprep.mubr.f32.mxu0 0.0
        %4542 = vmatmul.mubr.f32.gmra.mxu0 %v4448
        %v4543 = vpop.f32.mrf.mxu0
        %v4544 = vadd.f32 %v4436, %v4543
        %v4545 = vpop.f32.mrf.mxu0
        %4546 = vmatprep.mubr.f32.mxu0 0.0
        %4547 = vmatmul.mubr.f32.gmra.mxu0 %v4451
        %v4548 = vpop.f32.mrf.mxu0
        %v4549 = vadd.f32 %v4436, %v4548
        %v4550 = vpop.f32.mrf.mxu0
        %4551 = vmatprep.mubr.f32.mxu0 0.0
        %4552 = vmatmul.mubr.f32.gmra.mxu0 %v4454
        %v4553 = vpop.f32.mrf.mxu0
        %v4554 = vadd.f32 %v4436, %v4553
        %v4555 = vpop.f32.mrf.mxu0
        %4556 = vmatprep.mubr.f32.mxu0 0.0
        %4557 = vmatmul.mubr.f32.gmra.mxu0 %v4457
        %v4558 = vpop.f32.mrf.mxu0
        %v4559 = vadd.f32 %v4436, %v4558
        %v4560 = vpop.f32.mrf.mxu0
        %4561 = vmatprep.mubr.f32.mxu0 0.0
        %4562 = vmatmul.mubr.f32.gmra.mxu0 %v4460
        %v4563 = vpop.f32.mrf.mxu0
        %v4564 = vadd.f32 %v4436, %v4563
        %v4565 = vpop.f32.mrf.mxu0
        %4566 = vdwg.mxu0
        %v4567 = vld [vmem:[%s447] sm:$0xff]
        %v4568 = vld [vmem:[%s447 + $0x8] sm:$0xff]
        %v4569 = vld [vmem:[%s447 + $0x10] sm:$0xff]
        %v4570 = vld [vmem:[%s447 + $0x18] sm:$0xff]
        %v4571 = vld [vmem:[%s447 + $0x20] sm:$0xff]
        %v4572 = vld [vmem:[%s447 + $0x28] sm:$0xff]
        %v4573 = vld [vmem:[%s447 + $0x30] sm:$0xff]
        %v4574 = vld [vmem:[%s447 + $0x38] sm:$0xff]
        %v4575 = vadd.f32 %v4529, %v4567
        %v4576 = vadd.f32 %v4534, %v4568
        %v4577 = vadd.f32 %v4539, %v4569
        %v4578 = vadd.f32 %v4544, %v4570
        %v4579 = vadd.f32 %v4549, %v4571
        %v4580 = vadd.f32 %v4554, %v4572
        %v4581 = vadd.f32 %v4559, %v4573
        %v4582 = vadd.f32 %v4564, %v4574
        %v4583 = vmax.f32 %v4575, 0.0
        %v4584 = vmax.f32 %v4576, 0.0
        %v4585 = vmax.f32 %v4577, 0.0
        %v4586 = vmax.f32 %v4578, 0.0
        %v4587 = vmax.f32 %v4579, 0.0
        %v4588 = vmax.f32 %v4580, 0.0
        %v4589 = vmax.f32 %v4581, 0.0
        %v4590 = vmax.f32 %v4582, 0.0
        %vm4591 = vcmask 261120
        %4592 = vst.msk [vmem:[%s407] sm:$0xff] %vm4591, %v4583
        %4593 = vst.msk [vmem:[%s407 + $0x8] sm:$0xff] %vm4591, %v4584
        %4594 = vst.msk [vmem:[%s407 + $0x10] sm:$0xff] %vm4591, %v4585
        %4595 = vst.msk [vmem:[%s407 + $0x18] sm:$0xff] %vm4591, %v4586
        %4596 = vst.msk [vmem:[%s407 + $0x20] sm:$0xff] %vm4591, %v4587
        %4597 = vst.msk [vmem:[%s407 + $0x28] sm:$0xff] %vm4591, %v4588
        %4598 = vst.msk [vmem:[%s407 + $0x30] sm:$0xff] %vm4591, %v4589
        %4599 = vst.msk [vmem:[%s407 + $0x38] sm:$0xff] %vm4591, %v4590
        %s4600 = sand.u32 %s244, 1
        %s4601 = scalar_lea.sflag [#allocation3], %s4600
        %s4602 = sand.u32 %s244, 1
        %s4603 = smul.addr %s4602, 64
        %s4604 = scalar_lea.vmem [#allocation2], %s4603
        // Predicated region
        $region53: #{bottleneck_forward.3} parent=51 // pred_check
          %p4605 = pneg %p254
        $region54: #{bottleneck_forward.3} parent=51 // pred_check_branch
          %4607 = sbr.rel (%p4605) target = $region56
        $region55: #{bottleneck_forward.3} parent=51 // pred_region
          %s4609 = ssub.s32 1024, 1024
          %4610 = vsyncadd %s4601, %s4609
          %s4611 = smul.addr %s27, 8
          %s4612 = smul.addr %s26, 64
          %s4613 = sadd.s32 %s4611, %s4612
          %s4614 = smul.addr %s4613, 128
          %s4615 = scalar_lea.hbm %s8, %s4614
          %s4616 = sshll.u32 %s4604, 4
          %s4617 = int_to_ptr.vmem [resolvable:$true] %s4616
          %4622 = dma.vmem_to_hbm [thread:$0]  %s4617, 1024, %s4615, %s4601, 128, 128, 8
        $region56: #{bottleneck_forward.3} parent=51 // pred_fallthru
          _
      $region52: #{bottleneck_forward.3} parent=5 // pred_fallthru
        _
      %p4623 = scmp.le.s32.totalorder 2, %s17
      // Predicated region
      $region57: #{bottleneck_forward.3} parent=5 // pred_check
        %p4624 = pneg %p4623
      $region58: #{bottleneck_forward.3} parent=5 // pred_check_branch
        %4626 = sbr.rel (%p4624) target = $region60
      $region59: #{bottleneck_forward.3} parent=5 // pred_region
        %s4627 = ssub.s32 %s17, 2
        // Predicated region
        $region61: #{bottleneck_forward.3} parent=59 // pred_check
          %p4628 = pneg %p260
        $region62: #{bottleneck_forward.3} parent=59 // pred_check_branch
          %4630 = sbr.rel (%p4628) target = $region64
        $region63: #{bottleneck_forward.3} parent=59 // pred_region
          %s4631 = sand.u32 %s245, 1
          %s4632 = scalar_lea.sflag [#allocation3], %s4631
          %s4633 = sand.u32 %s245, 1
          %s4634 = smul.addr %s4633, 64
          %s4635 = scalar_lea.vmem [#allocation2], %s4634
          %4636 = dma.done %s4632, 1024
        $region64: #{bottleneck_forward.3} parent=59 // pred_fallthru
          _
      $region60: #{bottleneck_forward.3} parent=5 // pred_fallthru
        _
    $region6: #{bottleneck_forward.3} parent=1 // loop_footer
      %s21 = sadd.s32 1, %s17
    $region7: #{bottleneck_forward.3} parent=1 // loop_footer_branch
      %16 = sbr.rel target = $region3
    $region8: #{bottleneck_forward.3} parent=1 // loop_exit
      _
    %4637 = vsyncpa [#allocation3], 1
    %s4638 = scalar_lea.sflag [#allocation3], 1
    %4639 = vsyncpa %s4638, 1

</llo_original>
